<compile_context>
chip_gen: v7x
topology: tpu7x:2x2x1
jax: 0.10.0
libtpu: 0.0.40
codegen_flags: <defaults>
</compile_context>

<pallas_src>
import functools

import jax
import jax.numpy as jnp
import numpy as np
from jax import lax
from jax.experimental import pallas as pl
from jax.experimental.pallas import tpu as pltpu


def _resblk_kernel(scal_ref, x_ref, w1_ref, w2_ref, o_ref, *, H, W, use_mxu):
    """One band of images per grid step.

    Refs:
      scal_ref: SMEM (7,)  [bias1a, prelu1_a, bias1b, bias2a, prelu2_a, bias2b, scale]
      x_ref:    VMEM (C, L) input, channels x flattened pixels, L = imgs*H*W
      w1_ref:   VMEM (C, 9*C)  conv1 weights, column block k = ky*3+kx holds W[ky,kx]
      w2_ref:   VMEM (C, 9*C)  conv2 weights
      o_ref:    VMEM (C, L) output
    """
    C, L = x_ref.shape
    HW = H * W

    b1a = scal_ref[0]
    a1 = scal_ref[1]
    b1b = scal_ref[2]
    b2a = scal_ref[3]
    a2 = scal_ref[4]
    b2b = scal_ref[5]
    scale = scal_ref[6]

    x = x_ref[...]                                    # (C, L) f32, lane-dense

    # Per-pixel (y, x) coordinates within each image, computed at (1, L) so the
    # VALU cost is independent of C; shift/and when H, W are powers of two.
    pos = lax.broadcasted_iota(jnp.int32, (1, L), 1)
    if (W & (W - 1)) == 0 and (H & (H - 1)) == 0:
        p_local = pos & (HW - 1)
        xx = p_local & (W - 1)
        yy = p_local >> (W.bit_length() - 1)
    else:
        p_local = pos % HW
        xx = p_local % W
        yy = p_local // W

    # Tap (ky, kx): value at flat pixel p is v[p + (ky-1)*W + (kx-1)], i.e. a
    # roll by -((ky-1)*W + (kx-1)), zeroed outside the image border.  The zero
    # mask also kills any pixel whose rolled source crosses an image boundary.
    tap_params = []
    for ky in range(3):
        for kx in range(3):
            dy, dx = ky - 1, kx - 1
            shift = (-(dy * W + dx)) % L
            conds = []
            if dy == -1:
                conds.append(yy >= 1)
            elif dy == 1:
                conds.append(yy <= H - 2)
            if dx == -1:
                conds.append(xx >= 1)
            elif dx == 1:
                conds.append(xx <= W - 2)
            mask = functools.reduce(jnp.logical_and, conds) if conds else None
            tap_params.append((shift, mask))

    def taps(v):
        for k, (shift, mask) in enumerate(tap_params):
            t = v if shift == 0 else pltpu.roll(v, shift, axis=1)
            if mask is not None:
                t = jnp.where(mask, t, jnp.zeros_like(t))   # (1,L) mask broadcast
            yield k, t

    if use_mxu:
        # Per-tap accumulated MXU matmuls (no im2col scratch).  Operands may be
        # bf16 (weights arrive already cast); accumulation stays f32.
        def conv3x3(v, w_ref):
            w = w_ref[...]                                   # (Cout, 9*Cin)
            acc = jnp.zeros((C, L), jnp.float32)
            for k, t in taps(v):
                wk = w[:, k * C:(k + 1) * C]                 # (Cout, Cin)
                acc = acc + jnp.dot(wk, t.astype(wk.dtype),
                                    preferred_element_type=jnp.float32)
            return acc
    else:
        # Small-C path: 9*C broadcast FMAs on the VPU; MXU would be M=C-starved.
        def conv3x3(v, w_ref):
            w = w_ref[...]                                   # (Cout, 9*Cin) f32
            acc = jnp.zeros((C, L), jnp.float32)
            for k, t in taps(v):
                for ci in range(C):
                    col = w[:, k * C + ci:k * C + ci + 1]    # (Cout, 1)
                    acc = acc + col * t[ci:ci + 1, :]        # (Cout,1)*(1,L)
            return acc

    def prelu(v, a):
        return jnp.where(v > 0, v, a * v)

    out = prelu(x + b1a, a1)
    out = conv3x3(out + b1b, w1_ref)
    out = prelu(out + b2a, a2)
    out = conv3x3(out + b2b, w2_ref)
    o_ref[...] = (out * scale + x).astype(o_ref.dtype)       # lane-dense store


def resblk_pallas(x_nchw, w1_hwio, w2_hwio, scalars, *, images_per_step=None,
                  use_mxu=None, matmul_dtype=jnp.bfloat16):
    N, C, H, W = x_nchw.shape
    HW = H * W
    assert w1_hwio.shape == (3, 3, C, C) and w2_hwio.shape == (3, 3, C, C), (
        "ResBlk Pallas kernel assumes stride=1, planes == inplanes, no downsample")
    assert HW % 128 == 0, "H*W must be a multiple of 128 for lane-dense blocks"
    assert scalars.shape == (7,)

    if use_mxu is None:
        use_mxu = C >= 16                     # MXU only when M=C fills enough rows
    if images_per_step is None:
        # Largest divisor of N whose f32 activation band stays <= 4 MiB so the
        # double-buffered in/out blocks fit comfortably in the default scoped VMEM.
        images_per_step = 1
        for d in range(N, 0, -1):
            if N % d == 0 and C * d * HW * 4 <= 4 * 1024 * 1024:
                images_per_step = d
                break
    band = images_per_step * HW
    grid = (N // images_per_step,)

    # HWIO (3,3,Cin,Cout) -> (Cout, 9*Cin); column block k = ky*3+kx holds W[ky,kx].
    w1m = jnp.transpose(w1_hwio, (3, 0, 1, 2)).reshape(C, 9 * C)
    w2m = jnp.transpose(w2_hwio, (3, 0, 1, 2)).reshape(C, 9 * C)
    if use_mxu:
        w1m = w1m.astype(matmul_dtype)        # bf16 operands -> native MXU rate
        w2m = w2m.astype(matmul_dtype)

    # NCHW -> (C, N*H*W): channels on sublanes, all pixels of all images on lanes.
    x_cl = jnp.transpose(x_nchw, (1, 0, 2, 3)).reshape(C, N * HW)

    kernel = functools.partial(_resblk_kernel, H=H, W=W, use_mxu=use_mxu)
    out_cl = pl.pallas_call(
        kernel,
        out_shape=jax.ShapeDtypeStruct((C, N * HW), jnp.float32),
        grid_spec=pltpu.PrefetchScalarGridSpec(
            num_scalar_prefetch=0,
            grid=grid,
            in_specs=[
                pl.BlockSpec(memory_space=pltpu.MemorySpace.SMEM),   # scalar params
                pl.BlockSpec((C, band), lambda g: (0, g)),           # x band
                pl.BlockSpec((C, 9 * C), lambda g: (0, 0)),          # W1
                pl.BlockSpec((C, 9 * C), lambda g: (0, 0)),          # W2
            ],
            out_specs=pl.BlockSpec((C, band), lambda g: (0, g)),
        ),
        compiler_params=pltpu.CompilerParams(
            dimension_semantics=("parallel",)),
    )(scalars.astype(jnp.float32), x_cl, w1m, w2m)
    return jnp.transpose(out_cl.reshape(C, N, H, W), (1, 0, 2, 3))


def resblk_reference(x_nhwc, w1_hwio, w2_hwio, scalars):
    """Pure-JAX reference (same math as the PyTorch module, NHWC/HWIO)."""
    b1a, a1, b1b, b2a, a2, b2b, scale = [scalars[i] for i in range(7)]

    def prelu(v, a):
        return jnp.where(v > 0, v, a * v)

    def conv(v, w):
        return lax.conv_general_dilated(
            v, w, window_strides=(1, 1), padding="SAME",
            dimension_numbers=("NHWC", "HWIO", "NHWC"))

    out = prelu(x_nhwc + b1a, a1)
    out = conv(out + b1b, w1_hwio)
    out = prelu(out + b2a, a2)
    out = conv(out + b2b, w2_hwio)
    return out * scale + x_nhwc


if __name__ == "__main__":
    # Small shapes: batch=2, channels=4, spatial=16 (planes == inplanes, stride=1).
    N, C, H, W = 2, 4, 16, 16

    key = jax.random.PRNGKey(0)
    k_x, k_w1, k_w2, k_b = jax.random.split(key, 4)

    x_nchw = jax.random.normal(k_x, (N, C, H, W), dtype=jnp.float32)

    w_scale = 1.0 / np.sqrt(9 * C)
    w1 = jax.random.normal(k_w1, (3, 3, C, C), dtype=jnp.float32) * w_scale
    w2 = jax.random.normal(k_w2, (3, 3, C, C), dtype=jnp.float32) * w_scale

    # Scalar params: bias1a, prelu1_a, bias1b, bias2a, prelu2_a, bias2b, scale.
    b = jax.random.normal(k_b, (4,), dtype=jnp.float32) * 0.1
    scalars = jnp.array(
        [b[0], 0.25, b[1], b[2], 0.25, b[3], 1.0], dtype=jnp.float32)

    ref_nhwc = resblk_reference(
        jnp.transpose(x_nchw, (0, 2, 3, 1)), w1, w2, scalars)
    ref_nchw = jnp.transpose(ref_nhwc, (0, 3, 1, 2))

    # Default path at C=4: VPU multiply-accumulate conv, f32 throughout.
    out = jax.block_until_ready(resblk_pallas(x_nchw, w1, w2, scalars))
    np.testing.assert_allclose(np.asarray(out), np.asarray(ref_nchw),
                               rtol=1e-4, atol=1e-4)

    # Production-style path: per-tap MXU matmuls with bf16 operands, f32 acc.
    out_mxu = jax.block_until_ready(
        resblk_pallas(x_nchw, w1, w2, scalars, use_mxu=True,
                      matmul_dtype=jnp.bfloat16))
    np.testing.assert_allclose(np.asarray(out_mxu), np.asarray(ref_nchw),
                               rtol=2e-2, atol=2e-2)

    print("KERNEL_OK")
</pallas_src>

<mosaic_0001>
module attributes {stable_mosaic.version = 11 : i64} {
  func.func @_resblk_kernel(%arg0: i32, %arg1: memref<7xf32, #tpu.memory_space<smem>>, %arg2: memref<4x512xf32, #tpu.memory_space<vmem>>, %arg3: memref<4x36xf32, #tpu.memory_space<vmem>>, %arg4: memref<4x36xf32, #tpu.memory_space<vmem>>, %arg5: memref<4x512xf32, #tpu.memory_space<vmem>>) attributes {dimension_semantics = [#tpu.dimension_semantics<parallel>], iteration_bounds = array<i64: 1>, scalar_prefetch = 0 : i64, scratch_operands = 0 : i64, tpu.core_type = #tpu.core_type<tc>, window_params = [{transform_indices = @transform_0, window_bounds = array<i64: 7>}, {transform_indices = @transform_1, window_bounds = array<i64: 4, 512>}, {pipeline_mode = #tpu.pipeline_mode<synchronous>, transform_indices = @transform_2, window_bounds = array<i64: 4, 36>}, {pipeline_mode = #tpu.pipeline_mode<synchronous>, transform_indices = @transform_3, window_bounds = array<i64: 4, 36>}, {transform_indices = @transform_4, window_bounds = array<i64: 4, 512>}]} {
    %c0 = arith.constant 0 : index
    %0 = memref.load %arg1[%c0] : memref<7xf32, #tpu.memory_space<smem>>
    %c1 = arith.constant 1 : index
    %1 = memref.load %arg1[%c1] : memref<7xf32, #tpu.memory_space<smem>>
    %c2 = arith.constant 2 : index
    %2 = memref.load %arg1[%c2] : memref<7xf32, #tpu.memory_space<smem>>
    %c3 = arith.constant 3 : index
    %3 = memref.load %arg1[%c3] : memref<7xf32, #tpu.memory_space<smem>>
    %c4 = arith.constant 4 : index
    %4 = memref.load %arg1[%c4] : memref<7xf32, #tpu.memory_space<smem>>
    %c5 = arith.constant 5 : index
    %5 = memref.load %arg1[%c5] : memref<7xf32, #tpu.memory_space<smem>>
    %c6 = arith.constant 6 : index
    %6 = memref.load %arg1[%c6] : memref<7xf32, #tpu.memory_space<smem>>
    %c0_0 = arith.constant 0 : index
    %c0_1 = arith.constant 0 : index
    %7 = vector.load %arg2[%c0_0, %c0_1] : memref<4x512xf32, #tpu.memory_space<vmem>>, vector<4x512xf32>
    %8 = tpu.iota {dimensions = array<i32: 1>} : vector<1x512xi32>
    %c255_i32 = arith.constant 255 : i32
    %9 = vector.broadcast %c255_i32 : i32 to vector<1x512xi32>
    %10 = arith.andi %8, %9 : vector<1x512xi32>
    %c15_i32 = arith.constant 15 : i32
    %11 = vector.broadcast %c15_i32 : i32 to vector<1x512xi32>
    %12 = arith.andi %10, %11 : vector<1x512xi32>
    %c4_i32 = arith.constant 4 : i32
    %13 = vector.broadcast %c4_i32 : i32 to vector<1x512xi32>
    %14 = arith.shrsi %10, %13 : vector<1x512xi32>
    %c1_i32 = arith.constant 1 : i32
    %15 = vector.broadcast %c1_i32 : i32 to vector<1x512xi32>
    %16 = arith.cmpi sge, %14, %15 : vector<1x512xi32>
    %c1_i32_2 = arith.constant 1 : i32
    %17 = vector.broadcast %c1_i32_2 : i32 to vector<1x512xi32>
    %18 = arith.cmpi sge, %12, %17 : vector<1x512xi32>
    %19 = arith.andi %16, %18 : vector<1x512xi1>
    %c1_i32_3 = arith.constant 1 : i32
    %20 = vector.broadcast %c1_i32_3 : i32 to vector<1x512xi32>
    %21 = arith.cmpi sge, %14, %20 : vector<1x512xi32>
    %c1_i32_4 = arith.constant 1 : i32
    %22 = vector.broadcast %c1_i32_4 : i32 to vector<1x512xi32>
    %23 = arith.cmpi sge, %14, %22 : vector<1x512xi32>
    %c14_i32 = arith.constant 14 : i32
    %24 = vector.broadcast %c14_i32 : i32 to vector<1x512xi32>
    %25 = arith.cmpi sle, %12, %24 : vector<1x512xi32>
    %26 = arith.andi %23, %25 : vector<1x512xi1>
    %c1_i32_5 = arith.constant 1 : i32
    %27 = vector.broadcast %c1_i32_5 : i32 to vector<1x512xi32>
    %28 = arith.cmpi sge, %12, %27 : vector<1x512xi32>
    %c14_i32_6 = arith.constant 14 : i32
    %29 = vector.broadcast %c14_i32_6 : i32 to vector<1x512xi32>
    %30 = arith.cmpi sle, %12, %29 : vector<1x512xi32>
    %c14_i32_7 = arith.constant 14 : i32
    %31 = vector.broadcast %c14_i32_7 : i32 to vector<1x512xi32>
    %32 = arith.cmpi sle, %14, %31 : vector<1x512xi32>
    %c1_i32_8 = arith.constant 1 : i32
    %33 = vector.broadcast %c1_i32_8 : i32 to vector<1x512xi32>
    %34 = arith.cmpi sge, %12, %33 : vector<1x512xi32>
    %35 = arith.andi %32, %34 : vector<1x512xi1>
    %c14_i32_9 = arith.constant 14 : i32
    %36 = vector.broadcast %c14_i32_9 : i32 to vector<1x512xi32>
    %37 = arith.cmpi sle, %14, %36 : vector<1x512xi32>
    %c14_i32_10 = arith.constant 14 : i32
    %38 = vector.broadcast %c14_i32_10 : i32 to vector<1x512xi32>
    %39 = arith.cmpi sle, %14, %38 : vector<1x512xi32>
    %c14_i32_11 = arith.constant 14 : i32
    %40 = vector.broadcast %c14_i32_11 : i32 to vector<1x512xi32>
    %41 = arith.cmpi sle, %12, %40 : vector<1x512xi32>
    %42 = arith.andi %39, %41 : vector<1x512xi1>
    %43 = vector.broadcast %0 : f32 to vector<4x512xf32>
    %44 = arith.addf %7, %43 : vector<4x512xf32>
    %cst = arith.constant 0.000000e+00 : f32
    %45 = vector.broadcast %cst : f32 to vector<4x512xf32>
    %46 = arith.cmpf ogt, %44, %45 : vector<4x512xf32>
    %47 = vector.broadcast %1 : f32 to vector<4x512xf32>
    %48 = arith.mulf %47, %44 : vector<4x512xf32>
    %49 = arith.select %46, %44, %48 : vector<4x512xi1>, vector<4x512xf32>
    %50 = vector.broadcast %2 : f32 to vector<4x512xf32>
    %51 = arith.addf %49, %50 : vector<4x512xf32>
    %c0_12 = arith.constant 0 : index
    %c0_13 = arith.constant 0 : index
    %52 = vector.load %arg3[%c0_12, %c0_13] : memref<4x36xf32, #tpu.memory_space<vmem>>, vector<4x36xf32>
    %cst_14 = arith.constant 0.000000e+00 : f32
    %53 = vector.broadcast %cst_14 : f32 to vector<4x512xf32>
    %c17_i32 = arith.constant 17 : i32
    %54 = tpu.dynamic_rotate %51 by %c17_i32 dim 1 : vector<4x512xf32>, i32 -> vector<4x512xf32>
    %cst_15 = arith.constant 0.000000e+00 : f32
    %55 = vector.broadcast %cst_15 : f32 to vector<4x512xf32>
    %56 = vector.shape_cast %19 : vector<1x512xi1> to vector<1x512xi1>
    %57 = vector.broadcast %56 : vector<1x512xi1> to vector<4x512xi1>
    %58 = arith.select %57, %54, %55 : vector<4x512xi1>, vector<4x512xf32>
    %59 = vector.extract_strided_slice %52 {offsets = [0, 0], sizes = [4, 1], strides = [1, 1]} : vector<4x36xf32> to vector<4x1xf32>
    %60 = vector.extract_strided_slice %58 {offsets = [0, 0], sizes = [1, 512], strides = [1, 1]} : vector<4x512xf32> to vector<1x512xf32>
    %61 = vector.broadcast %59 : vector<4x1xf32> to vector<4x512xf32>
    %62 = vector.broadcast %60 : vector<1x512xf32> to vector<4x512xf32>
    %63 = arith.mulf %61, %62 : vector<4x512xf32>
    %64 = arith.addf %53, %63 : vector<4x512xf32>
    %65 = vector.extract_strided_slice %52 {offsets = [0, 1], sizes = [4, 1], strides = [1, 1]} : vector<4x36xf32> to vector<4x1xf32>
    %66 = vector.extract_strided_slice %58 {offsets = [1, 0], sizes = [1, 512], strides = [1, 1]} : vector<4x512xf32> to vector<1x512xf32>
    %67 = vector.broadcast %65 : vector<4x1xf32> to vector<4x512xf32>
    %68 = vector.broadcast %66 : vector<1x512xf32> to vector<4x512xf32>
    %69 = arith.mulf %67, %68 : vector<4x512xf32>
    %70 = arith.addf %64, %69 : vector<4x512xf32>
    %71 = vector.extract_strided_slice %52 {offsets = [0, 2], sizes = [4, 1], strides = [1, 1]} : vector<4x36xf32> to vector<4x1xf32>
    %72 = vector.extract_strided_slice %58 {offsets = [2, 0], sizes = [1, 512], strides = [1, 1]} : vector<4x512xf32> to vector<1x512xf32>
    %73 = vector.broadcast %71 : vector<4x1xf32> to vector<4x512xf32>
    %74 = vector.broadcast %72 : vector<1x512xf32> to vector<4x512xf32>
    %75 = arith.mulf %73, %74 : vector<4x512xf32>
    %76 = arith.addf %70, %75 : vector<4x512xf32>
    %77 = vector.extract_strided_slice %52 {offsets = [0, 3], sizes = [4, 1], strides = [1, 1]} : vector<4x36xf32> to vector<4x1xf32>
    %78 = vector.extract_strided_slice %58 {offsets = [3, 0], sizes = [1, 512], strides = [1, 1]} : vector<4x512xf32> to vector<1x512xf32>
    %79 = vector.broadcast %77 : vector<4x1xf32> to vector<4x512xf32>
    %80 = vector.broadcast %78 : vector<1x512xf32> to vector<4x512xf32>
    %81 = arith.mulf %79, %80 : vector<4x512xf32>
    %82 = arith.addf %76, %81 : vector<4x512xf32>
    %c16_i32 = arith.constant 16 : i32
    %83 = tpu.dynamic_rotate %51 by %c16_i32 dim 1 : vector<4x512xf32>, i32 -> vector<4x512xf32>
    %cst_16 = arith.constant 0.000000e+00 : f32
    %84 = vector.broadcast %cst_16 : f32 to vector<4x512xf32>
    %85 = vector.shape_cast %21 : vector<1x512xi1> to vector<1x512xi1>
    %86 = vector.broadcast %85 : vector<1x512xi1> to vector<4x512xi1>
    %87 = arith.select %86, %83, %84 : vector<4x512xi1>, vector<4x512xf32>
    %88 = vector.extract_strided_slice %52 {offsets = [0, 4], sizes = [4, 1], strides = [1, 1]} : vector<4x36xf32> to vector<4x1xf32>
    %89 = vector.extract_strided_slice %87 {offsets = [0, 0], sizes = [1, 512], strides = [1, 1]} : vector<4x512xf32> to vector<1x512xf32>
    %90 = vector.broadcast %88 : vector<4x1xf32> to vector<4x512xf32>
    %91 = vector.broadcast %89 : vector<1x512xf32> to vector<4x512xf32>
    %92 = arith.mulf %90, %91 : vector<4x512xf32>
    %93 = arith.addf %82, %92 : vector<4x512xf32>
    %94 = vector.extract_strided_slice %52 {offsets = [0, 5], sizes = [4, 1], strides = [1, 1]} : vector<4x36xf32> to vector<4x1xf32>
    %95 = vector.extract_strided_slice %87 {offsets = [1, 0], sizes = [1, 512], strides = [1, 1]} : vector<4x512xf32> to vector<1x512xf32>
    %96 = vector.broadcast %94 : vector<4x1xf32> to vector<4x512xf32>
    %97 = vector.broadcast %95 : vector<1x512xf32> to vector<4x512xf32>
    %98 = arith.mulf %96, %97 : vector<4x512xf32>
    %99 = arith.addf %93, %98 : vector<4x512xf32>
    %100 = vector.extract_strided_slice %52 {offsets = [0, 6], sizes = [4, 1], strides = [1, 1]} : vector<4x36xf32> to vector<4x1xf32>
    %101 = vector.extract_strided_slice %87 {offsets = [2, 0], sizes = [1, 512], strides = [1, 1]} : vector<4x512xf32> to vector<1x512xf32>
    %102 = vector.broadcast %100 : vector<4x1xf32> to vector<4x512xf32>
    %103 = vector.broadcast %101 : vector<1x512xf32> to vector<4x512xf32>
    %104 = arith.mulf %102, %103 : vector<4x512xf32>
    %105 = arith.addf %99, %104 : vector<4x512xf32>
    %106 = vector.extract_strided_slice %52 {offsets = [0, 7], sizes = [4, 1], strides = [1, 1]} : vector<4x36xf32> to vector<4x1xf32>
    %107 = vector.extract_strided_slice %87 {offsets = [3, 0], sizes = [1, 512], strides = [1, 1]} : vector<4x512xf32> to vector<1x512xf32>
    %108 = vector.broadcast %106 : vector<4x1xf32> to vector<4x512xf32>
    %109 = vector.broadcast %107 : vector<1x512xf32> to vector<4x512xf32>
    %110 = arith.mulf %108, %109 : vector<4x512xf32>
    %111 = arith.addf %105, %110 : vector<4x512xf32>
    %c15_i32_17 = arith.constant 15 : i32
    %112 = tpu.dynamic_rotate %51 by %c15_i32_17 dim 1 : vector<4x512xf32>, i32 -> vector<4x512xf32>
    %cst_18 = arith.constant 0.000000e+00 : f32
    %113 = vector.broadcast %cst_18 : f32 to vector<4x512xf32>
    %114 = vector.shape_cast %26 : vector<1x512xi1> to vector<1x512xi1>
    %115 = vector.broadcast %114 : vector<1x512xi1> to vector<4x512xi1>
    %116 = arith.select %115, %112, %113 : vector<4x512xi1>, vector<4x512xf32>
    %117 = vector.extract_strided_slice %52 {offsets = [0, 8], sizes = [4, 1], strides = [1, 1]} : vector<4x36xf32> to vector<4x1xf32>
    %118 = vector.extract_strided_slice %116 {offsets = [0, 0], sizes = [1, 512], strides = [1, 1]} : vector<4x512xf32> to vector<1x512xf32>
    %119 = vector.broadcast %117 : vector<4x1xf32> to vector<4x512xf32>
    %120 = vector.broadcast %118 : vector<1x512xf32> to vector<4x512xf32>
    %121 = arith.mulf %119, %120 : vector<4x512xf32>
    %122 = arith.addf %111, %121 : vector<4x512xf32>
    %123 = vector.extract_strided_slice %52 {offsets = [0, 9], sizes = [4, 1], strides = [1, 1]} : vector<4x36xf32> to vector<4x1xf32>
    %124 = vector.extract_strided_slice %116 {offsets = [1, 0], sizes = [1, 512], strides = [1, 1]} : vector<4x512xf32> to vector<1x512xf32>
    %125 = vector.broadcast %123 : vector<4x1xf32> to vector<4x512xf32>
    %126 = vector.broadcast %124 : vector<1x512xf32> to vector<4x512xf32>
    %127 = arith.mulf %125, %126 : vector<4x512xf32>
    %128 = arith.addf %122, %127 : vector<4x512xf32>
    %129 = vector.extract_strided_slice %52 {offsets = [0, 10], sizes = [4, 1], strides = [1, 1]} : vector<4x36xf32> to vector<4x1xf32>
    %130 = vector.extract_strided_slice %116 {offsets = [2, 0], sizes = [1, 512], strides = [1, 1]} : vector<4x512xf32> to vector<1x512xf32>
    %131 = vector.broadcast %129 : vector<4x1xf32> to vector<4x512xf32>
    %132 = vector.broadcast %130 : vector<1x512xf32> to vector<4x512xf32>
    %133 = arith.mulf %131, %132 : vector<4x512xf32>
    %134 = arith.addf %128, %133 : vector<4x512xf32>
    %135 = vector.extract_strided_slice %52 {offsets = [0, 11], sizes = [4, 1], strides = [1, 1]} : vector<4x36xf32> to vector<4x1xf32>
    %136 = vector.extract_strided_slice %116 {offsets = [3, 0], sizes = [1, 512], strides = [1, 1]} : vector<4x512xf32> to vector<1x512xf32>
    %137 = vector.broadcast %135 : vector<4x1xf32> to vector<4x512xf32>
    %138 = vector.broadcast %136 : vector<1x512xf32> to vector<4x512xf32>
    %139 = arith.mulf %137, %138 : vector<4x512xf32>
    %140 = arith.addf %134, %139 : vector<4x512xf32>
    %c1_i32_19 = arith.constant 1 : i32
    %141 = tpu.dynamic_rotate %51 by %c1_i32_19 dim 1 : vector<4x512xf32>, i32 -> vector<4x512xf32>
    %cst_20 = arith.constant 0.000000e+00 : f32
    %142 = vector.broadcast %cst_20 : f32 to vector<4x512xf32>
    %143 = vector.shape_cast %28 : vector<1x512xi1> to vector<1x512xi1>
    %144 = vector.broadcast %143 : vector<1x512xi1> to vector<4x512xi1>
    %145 = arith.select %144, %141, %142 : vector<4x512xi1>, vector<4x512xf32>
    %146 = vector.extract_strided_slice %52 {offsets = [0, 12], sizes = [4, 1], strides = [1, 1]} : vector<4x36xf32> to vector<4x1xf32>
    %147 = vector.extract_strided_slice %145 {offsets = [0, 0], sizes = [1, 512], strides = [1, 1]} : vector<4x512xf32> to vector<1x512xf32>
    %148 = vector.broadcast %146 : vector<4x1xf32> to vector<4x512xf32>
    %149 = vector.broadcast %147 : vector<1x512xf32> to vector<4x512xf32>
    %150 = arith.mulf %148, %149 : vector<4x512xf32>
    %151 = arith.addf %140, %150 : vector<4x512xf32>
    %152 = vector.extract_strided_slice %52 {offsets = [0, 13], sizes = [4, 1], strides = [1, 1]} : vector<4x36xf32> to vector<4x1xf32>
    %153 = vector.extract_strided_slice %145 {offsets = [1, 0], sizes = [1, 512], strides = [1, 1]} : vector<4x512xf32> to vector<1x512xf32>
    %154 = vector.broadcast %152 : vector<4x1xf32> to vector<4x512xf32>
    %155 = vector.broadcast %153 : vector<1x512xf32> to vector<4x512xf32>
    %156 = arith.mulf %154, %155 : vector<4x512xf32>
    %157 = arith.addf %151, %156 : vector<4x512xf32>
    %158 = vector.extract_strided_slice %52 {offsets = [0, 14], sizes = [4, 1], strides = [1, 1]} : vector<4x36xf32> to vector<4x1xf32>
    %159 = vector.extract_strided_slice %145 {offsets = [2, 0], sizes = [1, 512], strides = [1, 1]} : vector<4x512xf32> to vector<1x512xf32>
    %160 = vector.broadcast %158 : vector<4x1xf32> to vector<4x512xf32>
    %161 = vector.broadcast %159 : vector<1x512xf32> to vector<4x512xf32>
    %162 = arith.mulf %160, %161 : vector<4x512xf32>
    %163 = arith.addf %157, %162 : vector<4x512xf32>
    %164 = vector.extract_strided_slice %52 {offsets = [0, 15], sizes = [4, 1], strides = [1, 1]} : vector<4x36xf32> to vector<4x1xf32>
    %165 = vector.extract_strided_slice %145 {offsets = [3, 0], sizes = [1, 512], strides = [1, 1]} : vector<4x512xf32> to vector<1x512xf32>
    %166 = vector.broadcast %164 : vector<4x1xf32> to vector<4x512xf32>
    %167 = vector.broadcast %165 : vector<1x512xf32> to vector<4x512xf32>
    %168 = arith.mulf %166, %167 : vector<4x512xf32>
    %169 = arith.addf %163, %168 : vector<4x512xf32>
    %170 = vector.extract_strided_slice %52 {offsets = [0, 16], sizes = [4, 1], strides = [1, 1]} : vector<4x36xf32> to vector<4x1xf32>
    %171 = vector.extract_strided_slice %51 {offsets = [0, 0], sizes = [1, 512], strides = [1, 1]} : vector<4x512xf32> to vector<1x512xf32>
    %172 = vector.broadcast %170 : vector<4x1xf32> to vector<4x512xf32>
    %173 = vector.broadcast %171 : vector<1x512xf32> to vector<4x512xf32>
    %174 = arith.mulf %172, %173 : vector<4x512xf32>
    %175 = arith.addf %169, %174 : vector<4x512xf32>
    %176 = vector.extract_strided_slice %52 {offsets = [0, 17], sizes = [4, 1], strides = [1, 1]} : vector<4x36xf32> to vector<4x1xf32>
    %177 = vector.extract_strided_slice %51 {offsets = [1, 0], sizes = [1, 512], strides = [1, 1]} : vector<4x512xf32> to vector<1x512xf32>
    %178 = vector.broadcast %176 : vector<4x1xf32> to vector<4x512xf32>
    %179 = vector.broadcast %177 : vector<1x512xf32> to vector<4x512xf32>
    %180 = arith.mulf %178, %179 : vector<4x512xf32>
    %181 = arith.addf %175, %180 : vector<4x512xf32>
    %182 = vector.extract_strided_slice %52 {offsets = [0, 18], sizes = [4, 1], strides = [1, 1]} : vector<4x36xf32> to vector<4x1xf32>
    %183 = vector.extract_strided_slice %51 {offsets = [2, 0], sizes = [1, 512], strides = [1, 1]} : vector<4x512xf32> to vector<1x512xf32>
    %184 = vector.broadcast %182 : vector<4x1xf32> to vector<4x512xf32>
    %185 = vector.broadcast %183 : vector<1x512xf32> to vector<4x512xf32>
    %186 = arith.mulf %184, %185 : vector<4x512xf32>
    %187 = arith.addf %181, %186 : vector<4x512xf32>
    %188 = vector.extract_strided_slice %52 {offsets = [0, 19], sizes = [4, 1], strides = [1, 1]} : vector<4x36xf32> to vector<4x1xf32>
    %189 = vector.extract_strided_slice %51 {offsets = [3, 0], sizes = [1, 512], strides = [1, 1]} : vector<4x512xf32> to vector<1x512xf32>
    %190 = vector.broadcast %188 : vector<4x1xf32> to vector<4x512xf32>
    %191 = vector.broadcast %189 : vector<1x512xf32> to vector<4x512xf32>
    %192 = arith.mulf %190, %191 : vector<4x512xf32>
    %193 = arith.addf %187, %192 : vector<4x512xf32>
    %c511_i32 = arith.constant 511 : i32
    %194 = tpu.dynamic_rotate %51 by %c511_i32 dim 1 : vector<4x512xf32>, i32 -> vector<4x512xf32>
    %cst_21 = arith.constant 0.000000e+00 : f32
    %195 = vector.broadcast %cst_21 : f32 to vector<4x512xf32>
    %196 = vector.shape_cast %30 : vector<1x512xi1> to vector<1x512xi1>
    %197 = vector.broadcast %196 : vector<1x512xi1> to vector<4x512xi1>
    %198 = arith.select %197, %194, %195 : vector<4x512xi1>, vector<4x512xf32>
    %199 = vector.extract_strided_slice %52 {offsets = [0, 20], sizes = [4, 1], strides = [1, 1]} : vector<4x36xf32> to vector<4x1xf32>
    %200 = vector.extract_strided_slice %198 {offsets = [0, 0], sizes = [1, 512], strides = [1, 1]} : vector<4x512xf32> to vector<1x512xf32>
    %201 = vector.broadcast %199 : vector<4x1xf32> to vector<4x512xf32>
    %202 = vector.broadcast %200 : vector<1x512xf32> to vector<4x512xf32>
    %203 = arith.mulf %201, %202 : vector<4x512xf32>
    %204 = arith.addf %193, %203 : vector<4x512xf32>
    %205 = vector.extract_strided_slice %52 {offsets = [0, 21], sizes = [4, 1], strides = [1, 1]} : vector<4x36xf32> to vector<4x1xf32>
    %206 = vector.extract_strided_slice %198 {offsets = [1, 0], sizes = [1, 512], strides = [1, 1]} : vector<4x512xf32> to vector<1x512xf32>
    %207 = vector.broadcast %205 : vector<4x1xf32> to vector<4x512xf32>
    %208 = vector.broadcast %206 : vector<1x512xf32> to vector<4x512xf32>
    %209 = arith.mulf %207, %208 : vector<4x512xf32>
    %210 = arith.addf %204, %209 : vector<4x512xf32>
    %211 = vector.extract_strided_slice %52 {offsets = [0, 22], sizes = [4, 1], strides = [1, 1]} : vector<4x36xf32> to vector<4x1xf32>
    %212 = vector.extract_strided_slice %198 {offsets = [2, 0], sizes = [1, 512], strides = [1, 1]} : vector<4x512xf32> to vector<1x512xf32>
    %213 = vector.broadcast %211 : vector<4x1xf32> to vector<4x512xf32>
    %214 = vector.broadcast %212 : vector<1x512xf32> to vector<4x512xf32>
    %215 = arith.mulf %213, %214 : vector<4x512xf32>
    %216 = arith.addf %210, %215 : vector<4x512xf32>
    %217 = vector.extract_strided_slice %52 {offsets = [0, 23], sizes = [4, 1], strides = [1, 1]} : vector<4x36xf32> to vector<4x1xf32>
    %218 = vector.extract_strided_slice %198 {offsets = [3, 0], sizes = [1, 512], strides = [1, 1]} : vector<4x512xf32> to vector<1x512xf32>
    %219 = vector.broadcast %217 : vector<4x1xf32> to vector<4x512xf32>
    %220 = vector.broadcast %218 : vector<1x512xf32> to vector<4x512xf32>
    %221 = arith.mulf %219, %220 : vector<4x512xf32>
    %222 = arith.addf %216, %221 : vector<4x512xf32>
    %c497_i32 = arith.constant 497 : i32
    %223 = tpu.dynamic_rotate %51 by %c497_i32 dim 1 : vector<4x512xf32>, i32 -> vector<4x512xf32>
    %cst_22 = arith.constant 0.000000e+00 : f32
    %224 = vector.broadcast %cst_22 : f32 to vector<4x512xf32>
    %225 = vector.shape_cast %35 : vector<1x512xi1> to vector<1x512xi1>
    %226 = vector.broadcast %225 : vector<1x512xi1> to vector<4x512xi1>
    %227 = arith.select %226, %223, %224 : vector<4x512xi1>, vector<4x512xf32>
    %228 = vector.extract_strided_slice %52 {offsets = [0, 24], sizes = [4, 1], strides = [1, 1]} : vector<4x36xf32> to vector<4x1xf32>
    %229 = vector.extract_strided_slice %227 {offsets = [0, 0], sizes = [1, 512], strides = [1, 1]} : vector<4x512xf32> to vector<1x512xf32>
    %230 = vector.broadcast %228 : vector<4x1xf32> to vector<4x512xf32>
    %231 = vector.broadcast %229 : vector<1x512xf32> to vector<4x512xf32>
    %232 = arith.mulf %230, %231 : vector<4x512xf32>
    %233 = arith.addf %222, %232 : vector<4x512xf32>
    %234 = vector.extract_strided_slice %52 {offsets = [0, 25], sizes = [4, 1], strides = [1, 1]} : vector<4x36xf32> to vector<4x1xf32>
    %235 = vector.extract_strided_slice %227 {offsets = [1, 0], sizes = [1, 512], strides = [1, 1]} : vector<4x512xf32> to vector<1x512xf32>
    %236 = vector.broadcast %234 : vector<4x1xf32> to vector<4x512xf32>
    %237 = vector.broadcast %235 : vector<1x512xf32> to vector<4x512xf32>
    %238 = arith.mulf %236, %237 : vector<4x512xf32>
    %239 = arith.addf %233, %238 : vector<4x512xf32>
    %240 = vector.extract_strided_slice %52 {offsets = [0, 26], sizes = [4, 1], strides = [1, 1]} : vector<4x36xf32> to vector<4x1xf32>
    %241 = vector.extract_strided_slice %227 {offsets = [2, 0], sizes = [1, 512], strides = [1, 1]} : vector<4x512xf32> to vector<1x512xf32>
    %242 = vector.broadcast %240 : vector<4x1xf32> to vector<4x512xf32>
    %243 = vector.broadcast %241 : vector<1x512xf32> to vector<4x512xf32>
    %244 = arith.mulf %242, %243 : vector<4x512xf32>
    %245 = arith.addf %239, %244 : vector<4x512xf32>
    %246 = vector.extract_strided_slice %52 {offsets = [0, 27], sizes = [4, 1], strides = [1, 1]} : vector<4x36xf32> to vector<4x1xf32>
    %247 = vector.extract_strided_slice %227 {offsets = [3, 0], sizes = [1, 512], strides = [1, 1]} : vector<4x512xf32> to vector<1x512xf32>
    %248 = vector.broadcast %246 : vector<4x1xf32> to vector<4x512xf32>
    %249 = vector.broadcast %247 : vector<1x512xf32> to vector<4x512xf32>
    %250 = arith.mulf %248, %249 : vector<4x512xf32>
    %251 = arith.addf %245, %250 : vector<4x512xf32>
    %c496_i32 = arith.constant 496 : i32
    %252 = tpu.dynamic_rotate %51 by %c496_i32 dim 1 : vector<4x512xf32>, i32 -> vector<4x512xf32>
    %cst_23 = arith.constant 0.000000e+00 : f32
    %253 = vector.broadcast %cst_23 : f32 to vector<4x512xf32>
    %254 = vector.shape_cast %37 : vector<1x512xi1> to vector<1x512xi1>
    %255 = vector.broadcast %254 : vector<1x512xi1> to vector<4x512xi1>
    %256 = arith.select %255, %252, %253 : vector<4x512xi1>, vector<4x512xf32>
    %257 = vector.extract_strided_slice %52 {offsets = [0, 28], sizes = [4, 1], strides = [1, 1]} : vector<4x36xf32> to vector<4x1xf32>
    %258 = vector.extract_strided_slice %256 {offsets = [0, 0], sizes = [1, 512], strides = [1, 1]} : vector<4x512xf32> to vector<1x512xf32>
    %259 = vector.broadcast %257 : vector<4x1xf32> to vector<4x512xf32>
    %260 = vector.broadcast %258 : vector<1x512xf32> to vector<4x512xf32>
    %261 = arith.mulf %259, %260 : vector<4x512xf32>
    %262 = arith.addf %251, %261 : vector<4x512xf32>
    %263 = vector.extract_strided_slice %52 {offsets = [0, 29], sizes = [4, 1], strides = [1, 1]} : vector<4x36xf32> to vector<4x1xf32>
    %264 = vector.extract_strided_slice %256 {offsets = [1, 0], sizes = [1, 512], strides = [1, 1]} : vector<4x512xf32> to vector<1x512xf32>
    %265 = vector.broadcast %263 : vector<4x1xf32> to vector<4x512xf32>
    %266 = vector.broadcast %264 : vector<1x512xf32> to vector<4x512xf32>
    %267 = arith.mulf %265, %266 : vector<4x512xf32>
    %268 = arith.addf %262, %267 : vector<4x512xf32>
    %269 = vector.extract_strided_slice %52 {offsets = [0, 30], sizes = [4, 1], strides = [1, 1]} : vector<4x36xf32> to vector<4x1xf32>
    %270 = vector.extract_strided_slice %256 {offsets = [2, 0], sizes = [1, 512], strides = [1, 1]} : vector<4x512xf32> to vector<1x512xf32>
    %271 = vector.broadcast %269 : vector<4x1xf32> to vector<4x512xf32>
    %272 = vector.broadcast %270 : vector<1x512xf32> to vector<4x512xf32>
    %273 = arith.mulf %271, %272 : vector<4x512xf32>
    %274 = arith.addf %268, %273 : vector<4x512xf32>
    %275 = vector.extract_strided_slice %52 {offsets = [0, 31], sizes = [4, 1], strides = [1, 1]} : vector<4x36xf32> to vector<4x1xf32>
    %276 = vector.extract_strided_slice %256 {offsets = [3, 0], sizes = [1, 512], strides = [1, 1]} : vector<4x512xf32> to vector<1x512xf32>
    %277 = vector.broadcast %275 : vector<4x1xf32> to vector<4x512xf32>
    %278 = vector.broadcast %276 : vector<1x512xf32> to vector<4x512xf32>
    %279 = arith.mulf %277, %278 : vector<4x512xf32>
    %280 = arith.addf %274, %279 : vector<4x512xf32>
    %c495_i32 = arith.constant 495 : i32
    %281 = tpu.dynamic_rotate %51 by %c495_i32 dim 1 : vector<4x512xf32>, i32 -> vector<4x512xf32>
    %cst_24 = arith.constant 0.000000e+00 : f32
    %282 = vector.broadcast %cst_24 : f32 to vector<4x512xf32>
    %283 = vector.shape_cast %42 : vector<1x512xi1> to vector<1x512xi1>
    %284 = vector.broadcast %283 : vector<1x512xi1> to vector<4x512xi1>
    %285 = arith.select %284, %281, %282 : vector<4x512xi1>, vector<4x512xf32>
    %286 = vector.extract_strided_slice %52 {offsets = [0, 32], sizes = [4, 1], strides = [1, 1]} : vector<4x36xf32> to vector<4x1xf32>
    %287 = vector.extract_strided_slice %285 {offsets = [0, 0], sizes = [1, 512], strides = [1, 1]} : vector<4x512xf32> to vector<1x512xf32>
    %288 = vector.broadcast %286 : vector<4x1xf32> to vector<4x512xf32>
    %289 = vector.broadcast %287 : vector<1x512xf32> to vector<4x512xf32>
    %290 = arith.mulf %288, %289 : vector<4x512xf32>
    %291 = arith.addf %280, %290 : vector<4x512xf32>
    %292 = vector.extract_strided_slice %52 {offsets = [0, 33], sizes = [4, 1], strides = [1, 1]} : vector<4x36xf32> to vector<4x1xf32>
    %293 = vector.extract_strided_slice %285 {offsets = [1, 0], sizes = [1, 512], strides = [1, 1]} : vector<4x512xf32> to vector<1x512xf32>
    %294 = vector.broadcast %292 : vector<4x1xf32> to vector<4x512xf32>
    %295 = vector.broadcast %293 : vector<1x512xf32> to vector<4x512xf32>
    %296 = arith.mulf %294, %295 : vector<4x512xf32>
    %297 = arith.addf %291, %296 : vector<4x512xf32>
    %298 = vector.extract_strided_slice %52 {offsets = [0, 34], sizes = [4, 1], strides = [1, 1]} : vector<4x36xf32> to vector<4x1xf32>
    %299 = vector.extract_strided_slice %285 {offsets = [2, 0], sizes = [1, 512], strides = [1, 1]} : vector<4x512xf32> to vector<1x512xf32>
    %300 = vector.broadcast %298 : vector<4x1xf32> to vector<4x512xf32>
    %301 = vector.broadcast %299 : vector<1x512xf32> to vector<4x512xf32>
    %302 = arith.mulf %300, %301 : vector<4x512xf32>
    %303 = arith.addf %297, %302 : vector<4x512xf32>
    %304 = vector.extract_strided_slice %52 {offsets = [0, 35], sizes = [4, 1], strides = [1, 1]} : vector<4x36xf32> to vector<4x1xf32>
    %305 = vector.extract_strided_slice %285 {offsets = [3, 0], sizes = [1, 512], strides = [1, 1]} : vector<4x512xf32> to vector<1x512xf32>
    %306 = vector.broadcast %304 : vector<4x1xf32> to vector<4x512xf32>
    %307 = vector.broadcast %305 : vector<1x512xf32> to vector<4x512xf32>
    %308 = arith.mulf %306, %307 : vector<4x512xf32>
    %309 = arith.addf %303, %308 : vector<4x512xf32>
    %310 = vector.broadcast %3 : f32 to vector<4x512xf32>
    %311 = arith.addf %309, %310 : vector<4x512xf32>
    %cst_25 = arith.constant 0.000000e+00 : f32
    %312 = vector.broadcast %cst_25 : f32 to vector<4x512xf32>
    %313 = arith.cmpf ogt, %311, %312 : vector<4x512xf32>
    %314 = vector.broadcast %4 : f32 to vector<4x512xf32>
    %315 = arith.mulf %314, %311 : vector<4x512xf32>
    %316 = arith.select %313, %311, %315 : vector<4x512xi1>, vector<4x512xf32>
    %317 = vector.broadcast %5 : f32 to vector<4x512xf32>
    %318 = arith.addf %316, %317 : vector<4x512xf32>
    %c0_26 = arith.constant 0 : index
    %c0_27 = arith.constant 0 : index
    %319 = vector.load %arg4[%c0_26, %c0_27] : memref<4x36xf32, #tpu.memory_space<vmem>>, vector<4x36xf32>
    %cst_28 = arith.constant 0.000000e+00 : f32
    %320 = vector.broadcast %cst_28 : f32 to vector<4x512xf32>
    %c17_i32_29 = arith.constant 17 : i32
    %321 = tpu.dynamic_rotate %318 by %c17_i32_29 dim 1 : vector<4x512xf32>, i32 -> vector<4x512xf32>
    %cst_30 = arith.constant 0.000000e+00 : f32
    %322 = vector.broadcast %cst_30 : f32 to vector<4x512xf32>
    %323 = vector.shape_cast %19 : vector<1x512xi1> to vector<1x512xi1>
    %324 = vector.broadcast %323 : vector<1x512xi1> to vector<4x512xi1>
    %325 = arith.select %324, %321, %322 : vector<4x512xi1>, vector<4x512xf32>
    %326 = vector.extract_strided_slice %319 {offsets = [0, 0], sizes = [4, 1], strides = [1, 1]} : vector<4x36xf32> to vector<4x1xf32>
    %327 = vector.extract_strided_slice %325 {offsets = [0, 0], sizes = [1, 512], strides = [1, 1]} : vector<4x512xf32> to vector<1x512xf32>
    %328 = vector.broadcast %326 : vector<4x1xf32> to vector<4x512xf32>
    %329 = vector.broadcast %327 : vector<1x512xf32> to vector<4x512xf32>
    %330 = arith.mulf %328, %329 : vector<4x512xf32>
    %331 = arith.addf %320, %330 : vector<4x512xf32>
    %332 = vector.extract_strided_slice %319 {offsets = [0, 1], sizes = [4, 1], strides = [1, 1]} : vector<4x36xf32> to vector<4x1xf32>
    %333 = vector.extract_strided_slice %325 {offsets = [1, 0], sizes = [1, 512], strides = [1, 1]} : vector<4x512xf32> to vector<1x512xf32>
    %334 = vector.broadcast %332 : vector<4x1xf32> to vector<4x512xf32>
    %335 = vector.broadcast %333 : vector<1x512xf32> to vector<4x512xf32>
    %336 = arith.mulf %334, %335 : vector<4x512xf32>
    %337 = arith.addf %331, %336 : vector<4x512xf32>
    %338 = vector.extract_strided_slice %319 {offsets = [0, 2], sizes = [4, 1], strides = [1, 1]} : vector<4x36xf32> to vector<4x1xf32>
    %339 = vector.extract_strided_slice %325 {offsets = [2, 0], sizes = [1, 512], strides = [1, 1]} : vector<4x512xf32> to vector<1x512xf32>
    %340 = vector.broadcast %338 : vector<4x1xf32> to vector<4x512xf32>
    %341 = vector.broadcast %339 : vector<1x512xf32> to vector<4x512xf32>
    %342 = arith.mulf %340, %341 : vector<4x512xf32>
    %343 = arith.addf %337, %342 : vector<4x512xf32>
    %344 = vector.extract_strided_slice %319 {offsets = [0, 3], sizes = [4, 1], strides = [1, 1]} : vector<4x36xf32> to vector<4x1xf32>
    %345 = vector.extract_strided_slice %325 {offsets = [3, 0], sizes = [1, 512], strides = [1, 1]} : vector<4x512xf32> to vector<1x512xf32>
    %346 = vector.broadcast %344 : vector<4x1xf32> to vector<4x512xf32>
    %347 = vector.broadcast %345 : vector<1x512xf32> to vector<4x512xf32>
    %348 = arith.mulf %346, %347 : vector<4x512xf32>
    %349 = arith.addf %343, %348 : vector<4x512xf32>
    %c16_i32_31 = arith.constant 16 : i32
    %350 = tpu.dynamic_rotate %318 by %c16_i32_31 dim 1 : vector<4x512xf32>, i32 -> vector<4x512xf32>
    %cst_32 = arith.constant 0.000000e+00 : f32
    %351 = vector.broadcast %cst_32 : f32 to vector<4x512xf32>
    %352 = vector.shape_cast %21 : vector<1x512xi1> to vector<1x512xi1>
    %353 = vector.broadcast %352 : vector<1x512xi1> to vector<4x512xi1>
    %354 = arith.select %353, %350, %351 : vector<4x512xi1>, vector<4x512xf32>
    %355 = vector.extract_strided_slice %319 {offsets = [0, 4], sizes = [4, 1], strides = [1, 1]} : vector<4x36xf32> to vector<4x1xf32>
    %356 = vector.extract_strided_slice %354 {offsets = [0, 0], sizes = [1, 512], strides = [1, 1]} : vector<4x512xf32> to vector<1x512xf32>
    %357 = vector.broadcast %355 : vector<4x1xf32> to vector<4x512xf32>
    %358 = vector.broadcast %356 : vector<1x512xf32> to vector<4x512xf32>
    %359 = arith.mulf %357, %358 : vector<4x512xf32>
    %360 = arith.addf %349, %359 : vector<4x512xf32>
    %361 = vector.extract_strided_slice %319 {offsets = [0, 5], sizes = [4, 1], strides = [1, 1]} : vector<4x36xf32> to vector<4x1xf32>
    %362 = vector.extract_strided_slice %354 {offsets = [1, 0], sizes = [1, 512], strides = [1, 1]} : vector<4x512xf32> to vector<1x512xf32>
    %363 = vector.broadcast %361 : vector<4x1xf32> to vector<4x512xf32>
    %364 = vector.broadcast %362 : vector<1x512xf32> to vector<4x512xf32>
    %365 = arith.mulf %363, %364 : vector<4x512xf32>
    %366 = arith.addf %360, %365 : vector<4x512xf32>
    %367 = vector.extract_strided_slice %319 {offsets = [0, 6], sizes = [4, 1], strides = [1, 1]} : vector<4x36xf32> to vector<4x1xf32>
    %368 = vector.extract_strided_slice %354 {offsets = [2, 0], sizes = [1, 512], strides = [1, 1]} : vector<4x512xf32> to vector<1x512xf32>
    %369 = vector.broadcast %367 : vector<4x1xf32> to vector<4x512xf32>
    %370 = vector.broadcast %368 : vector<1x512xf32> to vector<4x512xf32>
    %371 = arith.mulf %369, %370 : vector<4x512xf32>
    %372 = arith.addf %366, %371 : vector<4x512xf32>
    %373 = vector.extract_strided_slice %319 {offsets = [0, 7], sizes = [4, 1], strides = [1, 1]} : vector<4x36xf32> to vector<4x1xf32>
    %374 = vector.extract_strided_slice %354 {offsets = [3, 0], sizes = [1, 512], strides = [1, 1]} : vector<4x512xf32> to vector<1x512xf32>
    %375 = vector.broadcast %373 : vector<4x1xf32> to vector<4x512xf32>
    %376 = vector.broadcast %374 : vector<1x512xf32> to vector<4x512xf32>
    %377 = arith.mulf %375, %376 : vector<4x512xf32>
    %378 = arith.addf %372, %377 : vector<4x512xf32>
    %c15_i32_33 = arith.constant 15 : i32
    %379 = tpu.dynamic_rotate %318 by %c15_i32_33 dim 1 : vector<4x512xf32>, i32 -> vector<4x512xf32>
    %cst_34 = arith.constant 0.000000e+00 : f32
    %380 = vector.broadcast %cst_34 : f32 to vector<4x512xf32>
    %381 = vector.shape_cast %26 : vector<1x512xi1> to vector<1x512xi1>
    %382 = vector.broadcast %381 : vector<1x512xi1> to vector<4x512xi1>
    %383 = arith.select %382, %379, %380 : vector<4x512xi1>, vector<4x512xf32>
    %384 = vector.extract_strided_slice %319 {offsets = [0, 8], sizes = [4, 1], strides = [1, 1]} : vector<4x36xf32> to vector<4x1xf32>
    %385 = vector.extract_strided_slice %383 {offsets = [0, 0], sizes = [1, 512], strides = [1, 1]} : vector<4x512xf32> to vector<1x512xf32>
    %386 = vector.broadcast %384 : vector<4x1xf32> to vector<4x512xf32>
    %387 = vector.broadcast %385 : vector<1x512xf32> to vector<4x512xf32>
    %388 = arith.mulf %386, %387 : vector<4x512xf32>
    %389 = arith.addf %378, %388 : vector<4x512xf32>
    %390 = vector.extract_strided_slice %319 {offsets = [0, 9], sizes = [4, 1], strides = [1, 1]} : vector<4x36xf32> to vector<4x1xf32>
    %391 = vector.extract_strided_slice %383 {offsets = [1, 0], sizes = [1, 512], strides = [1, 1]} : vector<4x512xf32> to vector<1x512xf32>
    %392 = vector.broadcast %390 : vector<4x1xf32> to vector<4x512xf32>
    %393 = vector.broadcast %391 : vector<1x512xf32> to vector<4x512xf32>
    %394 = arith.mulf %392, %393 : vector<4x512xf32>
    %395 = arith.addf %389, %394 : vector<4x512xf32>
    %396 = vector.extract_strided_slice %319 {offsets = [0, 10], sizes = [4, 1], strides = [1, 1]} : vector<4x36xf32> to vector<4x1xf32>
    %397 = vector.extract_strided_slice %383 {offsets = [2, 0], sizes = [1, 512], strides = [1, 1]} : vector<4x512xf32> to vector<1x512xf32>
    %398 = vector.broadcast %396 : vector<4x1xf32> to vector<4x512xf32>
    %399 = vector.broadcast %397 : vector<1x512xf32> to vector<4x512xf32>
    %400 = arith.mulf %398, %399 : vector<4x512xf32>
    %401 = arith.addf %395, %400 : vector<4x512xf32>
    %402 = vector.extract_strided_slice %319 {offsets = [0, 11], sizes = [4, 1], strides = [1, 1]} : vector<4x36xf32> to vector<4x1xf32>
    %403 = vector.extract_strided_slice %383 {offsets = [3, 0], sizes = [1, 512], strides = [1, 1]} : vector<4x512xf32> to vector<1x512xf32>
    %404 = vector.broadcast %402 : vector<4x1xf32> to vector<4x512xf32>
    %405 = vector.broadcast %403 : vector<1x512xf32> to vector<4x512xf32>
    %406 = arith.mulf %404, %405 : vector<4x512xf32>
    %407 = arith.addf %401, %406 : vector<4x512xf32>
    %c1_i32_35 = arith.constant 1 : i32
    %408 = tpu.dynamic_rotate %318 by %c1_i32_35 dim 1 : vector<4x512xf32>, i32 -> vector<4x512xf32>
    %cst_36 = arith.constant 0.000000e+00 : f32
    %409 = vector.broadcast %cst_36 : f32 to vector<4x512xf32>
    %410 = vector.shape_cast %28 : vector<1x512xi1> to vector<1x512xi1>
    %411 = vector.broadcast %410 : vector<1x512xi1> to vector<4x512xi1>
    %412 = arith.select %411, %408, %409 : vector<4x512xi1>, vector<4x512xf32>
    %413 = vector.extract_strided_slice %319 {offsets = [0, 12], sizes = [4, 1], strides = [1, 1]} : vector<4x36xf32> to vector<4x1xf32>
    %414 = vector.extract_strided_slice %412 {offsets = [0, 0], sizes = [1, 512], strides = [1, 1]} : vector<4x512xf32> to vector<1x512xf32>
    %415 = vector.broadcast %413 : vector<4x1xf32> to vector<4x512xf32>
    %416 = vector.broadcast %414 : vector<1x512xf32> to vector<4x512xf32>
    %417 = arith.mulf %415, %416 : vector<4x512xf32>
    %418 = arith.addf %407, %417 : vector<4x512xf32>
    %419 = vector.extract_strided_slice %319 {offsets = [0, 13], sizes = [4, 1], strides = [1, 1]} : vector<4x36xf32> to vector<4x1xf32>
    %420 = vector.extract_strided_slice %412 {offsets = [1, 0], sizes = [1, 512], strides = [1, 1]} : vector<4x512xf32> to vector<1x512xf32>
    %421 = vector.broadcast %419 : vector<4x1xf32> to vector<4x512xf32>
    %422 = vector.broadcast %420 : vector<1x512xf32> to vector<4x512xf32>
    %423 = arith.mulf %421, %422 : vector<4x512xf32>
    %424 = arith.addf %418, %423 : vector<4x512xf32>
    %425 = vector.extract_strided_slice %319 {offsets = [0, 14], sizes = [4, 1], strides = [1, 1]} : vector<4x36xf32> to vector<4x1xf32>
    %426 = vector.extract_strided_slice %412 {offsets = [2, 0], sizes = [1, 512], strides = [1, 1]} : vector<4x512xf32> to vector<1x512xf32>
    %427 = vector.broadcast %425 : vector<4x1xf32> to vector<4x512xf32>
    %428 = vector.broadcast %426 : vector<1x512xf32> to vector<4x512xf32>
    %429 = arith.mulf %427, %428 : vector<4x512xf32>
    %430 = arith.addf %424, %429 : vector<4x512xf32>
    %431 = vector.extract_strided_slice %319 {offsets = [0, 15], sizes = [4, 1], strides = [1, 1]} : vector<4x36xf32> to vector<4x1xf32>
    %432 = vector.extract_strided_slice %412 {offsets = [3, 0], sizes = [1, 512], strides = [1, 1]} : vector<4x512xf32> to vector<1x512xf32>
    %433 = vector.broadcast %431 : vector<4x1xf32> to vector<4x512xf32>
    %434 = vector.broadcast %432 : vector<1x512xf32> to vector<4x512xf32>
    %435 = arith.mulf %433, %434 : vector<4x512xf32>
    %436 = arith.addf %430, %435 : vector<4x512xf32>
    %437 = vector.extract_strided_slice %319 {offsets = [0, 16], sizes = [4, 1], strides = [1, 1]} : vector<4x36xf32> to vector<4x1xf32>
    %438 = vector.extract_strided_slice %318 {offsets = [0, 0], sizes = [1, 512], strides = [1, 1]} : vector<4x512xf32> to vector<1x512xf32>
    %439 = vector.broadcast %437 : vector<4x1xf32> to vector<4x512xf32>
    %440 = vector.broadcast %438 : vector<1x512xf32> to vector<4x512xf32>
    %441 = arith.mulf %439, %440 : vector<4x512xf32>
    %442 = arith.addf %436, %441 : vector<4x512xf32>
    %443 = vector.extract_strided_slice %319 {offsets = [0, 17], sizes = [4, 1], strides = [1, 1]} : vector<4x36xf32> to vector<4x1xf32>
    %444 = vector.extract_strided_slice %318 {offsets = [1, 0], sizes = [1, 512], strides = [1, 1]} : vector<4x512xf32> to vector<1x512xf32>
    %445 = vector.broadcast %443 : vector<4x1xf32> to vector<4x512xf32>
    %446 = vector.broadcast %444 : vector<1x512xf32> to vector<4x512xf32>
    %447 = arith.mulf %445, %446 : vector<4x512xf32>
    %448 = arith.addf %442, %447 : vector<4x512xf32>
    %449 = vector.extract_strided_slice %319 {offsets = [0, 18], sizes = [4, 1], strides = [1, 1]} : vector<4x36xf32> to vector<4x1xf32>
    %450 = vector.extract_strided_slice %318 {offsets = [2, 0], sizes = [1, 512], strides = [1, 1]} : vector<4x512xf32> to vector<1x512xf32>
    %451 = vector.broadcast %449 : vector<4x1xf32> to vector<4x512xf32>
    %452 = vector.broadcast %450 : vector<1x512xf32> to vector<4x512xf32>
    %453 = arith.mulf %451, %452 : vector<4x512xf32>
    %454 = arith.addf %448, %453 : vector<4x512xf32>
    %455 = vector.extract_strided_slice %319 {offsets = [0, 19], sizes = [4, 1], strides = [1, 1]} : vector<4x36xf32> to vector<4x1xf32>
    %456 = vector.extract_strided_slice %318 {offsets = [3, 0], sizes = [1, 512], strides = [1, 1]} : vector<4x512xf32> to vector<1x512xf32>
    %457 = vector.broadcast %455 : vector<4x1xf32> to vector<4x512xf32>
    %458 = vector.broadcast %456 : vector<1x512xf32> to vector<4x512xf32>
    %459 = arith.mulf %457, %458 : vector<4x512xf32>
    %460 = arith.addf %454, %459 : vector<4x512xf32>
    %c511_i32_37 = arith.constant 511 : i32
    %461 = tpu.dynamic_rotate %318 by %c511_i32_37 dim 1 : vector<4x512xf32>, i32 -> vector<4x512xf32>
    %cst_38 = arith.constant 0.000000e+00 : f32
    %462 = vector.broadcast %cst_38 : f32 to vector<4x512xf32>
    %463 = vector.shape_cast %30 : vector<1x512xi1> to vector<1x512xi1>
    %464 = vector.broadcast %463 : vector<1x512xi1> to vector<4x512xi1>
    %465 = arith.select %464, %461, %462 : vector<4x512xi1>, vector<4x512xf32>
    %466 = vector.extract_strided_slice %319 {offsets = [0, 20], sizes = [4, 1], strides = [1, 1]} : vector<4x36xf32> to vector<4x1xf32>
    %467 = vector.extract_strided_slice %465 {offsets = [0, 0], sizes = [1, 512], strides = [1, 1]} : vector<4x512xf32> to vector<1x512xf32>
    %468 = vector.broadcast %466 : vector<4x1xf32> to vector<4x512xf32>
    %469 = vector.broadcast %467 : vector<1x512xf32> to vector<4x512xf32>
    %470 = arith.mulf %468, %469 : vector<4x512xf32>
    %471 = arith.addf %460, %470 : vector<4x512xf32>
    %472 = vector.extract_strided_slice %319 {offsets = [0, 21], sizes = [4, 1], strides = [1, 1]} : vector<4x36xf32> to vector<4x1xf32>
    %473 = vector.extract_strided_slice %465 {offsets = [1, 0], sizes = [1, 512], strides = [1, 1]} : vector<4x512xf32> to vector<1x512xf32>
    %474 = vector.broadcast %472 : vector<4x1xf32> to vector<4x512xf32>
    %475 = vector.broadcast %473 : vector<1x512xf32> to vector<4x512xf32>
    %476 = arith.mulf %474, %475 : vector<4x512xf32>
    %477 = arith.addf %471, %476 : vector<4x512xf32>
    %478 = vector.extract_strided_slice %319 {offsets = [0, 22], sizes = [4, 1], strides = [1, 1]} : vector<4x36xf32> to vector<4x1xf32>
    %479 = vector.extract_strided_slice %465 {offsets = [2, 0], sizes = [1, 512], strides = [1, 1]} : vector<4x512xf32> to vector<1x512xf32>
    %480 = vector.broadcast %478 : vector<4x1xf32> to vector<4x512xf32>
    %481 = vector.broadcast %479 : vector<1x512xf32> to vector<4x512xf32>
    %482 = arith.mulf %480, %481 : vector<4x512xf32>
    %483 = arith.addf %477, %482 : vector<4x512xf32>
    %484 = vector.extract_strided_slice %319 {offsets = [0, 23], sizes = [4, 1], strides = [1, 1]} : vector<4x36xf32> to vector<4x1xf32>
    %485 = vector.extract_strided_slice %465 {offsets = [3, 0], sizes = [1, 512], strides = [1, 1]} : vector<4x512xf32> to vector<1x512xf32>
    %486 = vector.broadcast %484 : vector<4x1xf32> to vector<4x512xf32>
    %487 = vector.broadcast %485 : vector<1x512xf32> to vector<4x512xf32>
    %488 = arith.mulf %486, %487 : vector<4x512xf32>
    %489 = arith.addf %483, %488 : vector<4x512xf32>
    %c497_i32_39 = arith.constant 497 : i32
    %490 = tpu.dynamic_rotate %318 by %c497_i32_39 dim 1 : vector<4x512xf32>, i32 -> vector<4x512xf32>
    %cst_40 = arith.constant 0.000000e+00 : f32
    %491 = vector.broadcast %cst_40 : f32 to vector<4x512xf32>
    %492 = vector.shape_cast %35 : vector<1x512xi1> to vector<1x512xi1>
    %493 = vector.broadcast %492 : vector<1x512xi1> to vector<4x512xi1>
    %494 = arith.select %493, %490, %491 : vector<4x512xi1>, vector<4x512xf32>
    %495 = vector.extract_strided_slice %319 {offsets = [0, 24], sizes = [4, 1], strides = [1, 1]} : vector<4x36xf32> to vector<4x1xf32>
    %496 = vector.extract_strided_slice %494 {offsets = [0, 0], sizes = [1, 512], strides = [1, 1]} : vector<4x512xf32> to vector<1x512xf32>
    %497 = vector.broadcast %495 : vector<4x1xf32> to vector<4x512xf32>
    %498 = vector.broadcast %496 : vector<1x512xf32> to vector<4x512xf32>
    %499 = arith.mulf %497, %498 : vector<4x512xf32>
    %500 = arith.addf %489, %499 : vector<4x512xf32>
    %501 = vector.extract_strided_slice %319 {offsets = [0, 25], sizes = [4, 1], strides = [1, 1]} : vector<4x36xf32> to vector<4x1xf32>
    %502 = vector.extract_strided_slice %494 {offsets = [1, 0], sizes = [1, 512], strides = [1, 1]} : vector<4x512xf32> to vector<1x512xf32>
    %503 = vector.broadcast %501 : vector<4x1xf32> to vector<4x512xf32>
    %504 = vector.broadcast %502 : vector<1x512xf32> to vector<4x512xf32>
    %505 = arith.mulf %503, %504 : vector<4x512xf32>
    %506 = arith.addf %500, %505 : vector<4x512xf32>
    %507 = vector.extract_strided_slice %319 {offsets = [0, 26], sizes = [4, 1], strides = [1, 1]} : vector<4x36xf32> to vector<4x1xf32>
    %508 = vector.extract_strided_slice %494 {offsets = [2, 0], sizes = [1, 512], strides = [1, 1]} : vector<4x512xf32> to vector<1x512xf32>
    %509 = vector.broadcast %507 : vector<4x1xf32> to vector<4x512xf32>
    %510 = vector.broadcast %508 : vector<1x512xf32> to vector<4x512xf32>
    %511 = arith.mulf %509, %510 : vector<4x512xf32>
    %512 = arith.addf %506, %511 : vector<4x512xf32>
    %513 = vector.extract_strided_slice %319 {offsets = [0, 27], sizes = [4, 1], strides = [1, 1]} : vector<4x36xf32> to vector<4x1xf32>
    %514 = vector.extract_strided_slice %494 {offsets = [3, 0], sizes = [1, 512], strides = [1, 1]} : vector<4x512xf32> to vector<1x512xf32>
    %515 = vector.broadcast %513 : vector<4x1xf32> to vector<4x512xf32>
    %516 = vector.broadcast %514 : vector<1x512xf32> to vector<4x512xf32>
    %517 = arith.mulf %515, %516 : vector<4x512xf32>
    %518 = arith.addf %512, %517 : vector<4x512xf32>
    %c496_i32_41 = arith.constant 496 : i32
    %519 = tpu.dynamic_rotate %318 by %c496_i32_41 dim 1 : vector<4x512xf32>, i32 -> vector<4x512xf32>
    %cst_42 = arith.constant 0.000000e+00 : f32
    %520 = vector.broadcast %cst_42 : f32 to vector<4x512xf32>
    %521 = vector.shape_cast %37 : vector<1x512xi1> to vector<1x512xi1>
    %522 = vector.broadcast %521 : vector<1x512xi1> to vector<4x512xi1>
    %523 = arith.select %522, %519, %520 : vector<4x512xi1>, vector<4x512xf32>
    %524 = vector.extract_strided_slice %319 {offsets = [0, 28], sizes = [4, 1], strides = [1, 1]} : vector<4x36xf32> to vector<4x1xf32>
    %525 = vector.extract_strided_slice %523 {offsets = [0, 0], sizes = [1, 512], strides = [1, 1]} : vector<4x512xf32> to vector<1x512xf32>
    %526 = vector.broadcast %524 : vector<4x1xf32> to vector<4x512xf32>
    %527 = vector.broadcast %525 : vector<1x512xf32> to vector<4x512xf32>
    %528 = arith.mulf %526, %527 : vector<4x512xf32>
    %529 = arith.addf %518, %528 : vector<4x512xf32>
    %530 = vector.extract_strided_slice %319 {offsets = [0, 29], sizes = [4, 1], strides = [1, 1]} : vector<4x36xf32> to vector<4x1xf32>
    %531 = vector.extract_strided_slice %523 {offsets = [1, 0], sizes = [1, 512], strides = [1, 1]} : vector<4x512xf32> to vector<1x512xf32>
    %532 = vector.broadcast %530 : vector<4x1xf32> to vector<4x512xf32>
    %533 = vector.broadcast %531 : vector<1x512xf32> to vector<4x512xf32>
    %534 = arith.mulf %532, %533 : vector<4x512xf32>
    %535 = arith.addf %529, %534 : vector<4x512xf32>
    %536 = vector.extract_strided_slice %319 {offsets = [0, 30], sizes = [4, 1], strides = [1, 1]} : vector<4x36xf32> to vector<4x1xf32>
    %537 = vector.extract_strided_slice %523 {offsets = [2, 0], sizes = [1, 512], strides = [1, 1]} : vector<4x512xf32> to vector<1x512xf32>
    %538 = vector.broadcast %536 : vector<4x1xf32> to vector<4x512xf32>
    %539 = vector.broadcast %537 : vector<1x512xf32> to vector<4x512xf32>
    %540 = arith.mulf %538, %539 : vector<4x512xf32>
    %541 = arith.addf %535, %540 : vector<4x512xf32>
    %542 = vector.extract_strided_slice %319 {offsets = [0, 31], sizes = [4, 1], strides = [1, 1]} : vector<4x36xf32> to vector<4x1xf32>
    %543 = vector.extract_strided_slice %523 {offsets = [3, 0], sizes = [1, 512], strides = [1, 1]} : vector<4x512xf32> to vector<1x512xf32>
    %544 = vector.broadcast %542 : vector<4x1xf32> to vector<4x512xf32>
    %545 = vector.broadcast %543 : vector<1x512xf32> to vector<4x512xf32>
    %546 = arith.mulf %544, %545 : vector<4x512xf32>
    %547 = arith.addf %541, %546 : vector<4x512xf32>
    %c495_i32_43 = arith.constant 495 : i32
    %548 = tpu.dynamic_rotate %318 by %c495_i32_43 dim 1 : vector<4x512xf32>, i32 -> vector<4x512xf32>
    %cst_44 = arith.constant 0.000000e+00 : f32
    %549 = vector.broadcast %cst_44 : f32 to vector<4x512xf32>
    %550 = vector.shape_cast %42 : vector<1x512xi1> to vector<1x512xi1>
    %551 = vector.broadcast %550 : vector<1x512xi1> to vector<4x512xi1>
    %552 = arith.select %551, %548, %549 : vector<4x512xi1>, vector<4x512xf32>
    %553 = vector.extract_strided_slice %319 {offsets = [0, 32], sizes = [4, 1], strides = [1, 1]} : vector<4x36xf32> to vector<4x1xf32>
    %554 = vector.extract_strided_slice %552 {offsets = [0, 0], sizes = [1, 512], strides = [1, 1]} : vector<4x512xf32> to vector<1x512xf32>
    %555 = vector.broadcast %553 : vector<4x1xf32> to vector<4x512xf32>
    %556 = vector.broadcast %554 : vector<1x512xf32> to vector<4x512xf32>
    %557 = arith.mulf %555, %556 : vector<4x512xf32>
    %558 = arith.addf %547, %557 : vector<4x512xf32>
    %559 = vector.extract_strided_slice %319 {offsets = [0, 33], sizes = [4, 1], strides = [1, 1]} : vector<4x36xf32> to vector<4x1xf32>
    %560 = vector.extract_strided_slice %552 {offsets = [1, 0], sizes = [1, 512], strides = [1, 1]} : vector<4x512xf32> to vector<1x512xf32>
    %561 = vector.broadcast %559 : vector<4x1xf32> to vector<4x512xf32>
    %562 = vector.broadcast %560 : vector<1x512xf32> to vector<4x512xf32>
    %563 = arith.mulf %561, %562 : vector<4x512xf32>
    %564 = arith.addf %558, %563 : vector<4x512xf32>
    %565 = vector.extract_strided_slice %319 {offsets = [0, 34], sizes = [4, 1], strides = [1, 1]} : vector<4x36xf32> to vector<4x1xf32>
    %566 = vector.extract_strided_slice %552 {offsets = [2, 0], sizes = [1, 512], strides = [1, 1]} : vector<4x512xf32> to vector<1x512xf32>
    %567 = vector.broadcast %565 : vector<4x1xf32> to vector<4x512xf32>
    %568 = vector.broadcast %566 : vector<1x512xf32> to vector<4x512xf32>
    %569 = arith.mulf %567, %568 : vector<4x512xf32>
    %570 = arith.addf %564, %569 : vector<4x512xf32>
    %571 = vector.extract_strided_slice %319 {offsets = [0, 35], sizes = [4, 1], strides = [1, 1]} : vector<4x36xf32> to vector<4x1xf32>
    %572 = vector.extract_strided_slice %552 {offsets = [3, 0], sizes = [1, 512], strides = [1, 1]} : vector<4x512xf32> to vector<1x512xf32>
    %573 = vector.broadcast %571 : vector<4x1xf32> to vector<4x512xf32>
    %574 = vector.broadcast %572 : vector<1x512xf32> to vector<4x512xf32>
    %575 = arith.mulf %573, %574 : vector<4x512xf32>
    %576 = arith.addf %570, %575 : vector<4x512xf32>
    %577 = vector.broadcast %6 : f32 to vector<4x512xf32>
    %578 = arith.mulf %576, %577 : vector<4x512xf32>
    %579 = arith.addf %578, %7 : vector<4x512xf32>
    %c0_45 = arith.constant 0 : index
    %c0_46 = arith.constant 0 : index
    %580 = vector.load %arg5[%c0_45, %c0_46] : memref<4x512xf32, #tpu.memory_space<vmem>>, vector<4x512xf32>
    tpu.vector_store %arg5[%c0_45, %c0_46], %579 {strides = array<i32>} : memref<4x512xf32, #tpu.memory_space<vmem>>, vector<4x512xf32>,
    return
  }
  func.func @transform_0(%arg0: i32) -> i32 {
    %c0_i32 = arith.constant 0 : i32
    %c0_i32_0 = arith.constant 0 : i32
    return %c0_i32 : i32
  }
  func.func @transform_1(%arg0: i32) -> (i32, i32) {
    %c0_i32 = arith.constant 0 : i32
    %c0_i32_0 = arith.constant 0 : i32
    return %c0_i32, %arg0 : i32, i32
  }
  func.func @transform_2(%arg0: i32) -> (i32, i32) {
    %c0_i32 = arith.constant 0 : i32
    %c0_i32_0 = arith.constant 0 : i32
    %c0_i32_1 = arith.constant 0 : i32
    return %c0_i32, %c0_i32_0 : i32, i32
  }
  func.func @transform_3(%arg0: i32) -> (i32, i32) {
    %c0_i32 = arith.constant 0 : i32
    %c0_i32_0 = arith.constant 0 : i32
    %c0_i32_1 = arith.constant 0 : i32
    return %c0_i32, %c0_i32_0 : i32, i32
  }
  func.func @transform_4(%arg0: i32) -> (i32, i32) {
    %c0_i32 = arith.constant 0 : i32
    %c0_i32_0 = arith.constant 0 : i32
    return %c0_i32, %arg0 : i32, i32
  }
}

</mosaic_0001>

<llo_original>
// kernel: tpu_custom_call.1
$region0: #{tpu_custom_call.1}
  #allocation0 [shape = 'u32[]', space=smem, size = 0x4, offset = 0x4, fixed_abs, tag = 'smem constant byte address 0x4 - core index']
  #allocation1 [shape = 'u32[144,128]{1,0:T(1,128)}', space=vmem, size = 0x12000, scoped, tag = 'internal scratch']
  %s0 = inlined_call_operand.hbm [shape: f32[7], index: 0, kind: input, shape index: {}]
  %s1 = inlined_call_operand.hbm [shape: f32[4,512], index: 1, kind: input, shape index: {}]
  %s2 = inlined_call_operand.vmem [shape: f32[4,36], index: 2, kind: input, shape index: {}]
  %s3 = inlined_call_operand.vmem [shape: f32[4,36], index: 3, kind: input, shape index: {}]
  %s4 = inlined_call_operand.hbm [shape: f32[4,512], index: 4, kind: output, shape index: {}]
  %s5 = sld [smem:[#allocation0]]
  $region34: #{tpu_custom_call.1} parent=0
    _
  %s7 = ssub.s32 1, %s5
  %s8 = scalar_select 0, %s7, %s5
  $region1: #{tpu_custom_call.1} parent=0
    #allocation2 [shape = 'u8[512]{0}', space=smem, size = 0x200, scoped, tag = 'input window, operand 0, single buffered']
    #allocation3 [shape = 's32[1]{0}', space=sflag, size = 0x4, scoped, tag = 'scoped memory for tpu_custom_call.1']
    #allocation4 [shape = 's32[1]{0}', space=sflag, size = 0x4, scoped, tag = 'scoped memory for tpu_custom_call.1']
    #allocation5 [shape = 's32[1]{0}', space=sflag, size = 0x4, scoped, tag = 'scoped memory for tpu_custom_call.1']
    #allocation6 [shape = 'u8[8192]{0}', space=vmem, size = 0x2000, scoped, tag = 'input window, operand 1, single buffered']
    #allocation7 [shape = 'u8[8192]{0}', space=vmem, size = 0x2000, scoped, tag = 'output window, operand 0, single buffered']
    %9 = vsyncpa [#allocation5], 0
    %10 = vsyncpa [#allocation3], 0
    %11 = vsyncpa [#allocation4], 0
    // Predicated region
    $region2: #{tpu_custom_call.1} parent=1 // pred_check
      _
    $region3: #{tpu_custom_call.1} parent=1 // pred_check_branch
      %13 = sbr.rel (0) target = $region5
    $region4: #{tpu_custom_call.1} parent=1 // pred_region
      %s15 = ssub.s32 16, 16
      %16 = vsyncadd [#allocation5], %s15
      %19 = dma.hbm_to_smem %s0, 16, [#allocation2], [#allocation5]
    $region5: #{tpu_custom_call.1} parent=1 // pred_fallthru
      _
    // Predicated region
    $region6: #{tpu_custom_call.1} parent=1 // pred_check
      _
    $region7: #{tpu_custom_call.1} parent=1 // pred_check_branch
      %21 = sbr.rel (0) target = $region9
    $region8: #{tpu_custom_call.1} parent=1 // pred_region
      %s23 = ssub.s32 256, 256
      %24 = vsyncadd [#allocation3], %s23
      %s26 = sshll.u32 [#allocation6], 4
      %s27 = int_to_ptr.vmem [resolvable:$true] %s26
      %29 = dma.hbm_to_vmem [thread:$0]  %s1, 256, %s27, [#allocation3]
    $region9: #{tpu_custom_call.1} parent=1 // pred_fallthru
      _
    // Predicated region
    $region10: #{tpu_custom_call.1} parent=1 // pred_check
      _
    $region11: #{tpu_custom_call.1} parent=1 // pred_check_branch
      %31 = sbr.rel (0) target = $region13
    $region12: #{tpu_custom_call.1} parent=1 // pred_region
      _
    $region13: #{tpu_custom_call.1} parent=1 // pred_fallthru
      _
    // Predicated region
    $region14: #{tpu_custom_call.1} parent=1 // pred_check
      _
    $region15: #{tpu_custom_call.1} parent=1 // pred_check_branch
      %33 = sbr.rel (0) target = $region17
    $region16: #{tpu_custom_call.1} parent=1 // pred_region
      _
    $region17: #{tpu_custom_call.1} parent=1 // pred_fallthru
      _
    // Predicated region
    $region18: #{tpu_custom_call.1} parent=1 // pred_check
      _
    $region19: #{tpu_custom_call.1} parent=1 // pred_check_branch
      %35 = sbr.rel (0) target = $region21
    $region20: #{tpu_custom_call.1} parent=1 // pred_region
      %36 = dma.done [#allocation5], 16
    $region21: #{tpu_custom_call.1} parent=1 // pred_fallthru
      _
    // Predicated region
    $region22: #{tpu_custom_call.1} parent=1 // pred_check
      _
    $region23: #{tpu_custom_call.1} parent=1 // pred_check_branch
      %38 = sbr.rel (0) target = $region25
    $region24: #{tpu_custom_call.1} parent=1 // pred_region
      %39 = dma.done [#allocation3], 256
    $region25: #{tpu_custom_call.1} parent=1 // pred_fallthru
      _
    %40 = sfence
    %s41 = sld [smem:[#allocation2]]
    %s42 = sld [smem:[#allocation2 + $0x1]]
    %s43 = sld [smem:[#allocation2 + $0x2]]
    %s44 = sld [smem:[#allocation2 + $0x3]]
    %s45 = sld [smem:[#allocation2 + $0x4]]
    %s46 = sld [smem:[#allocation2 + $0x5]]
    %s47 = sld [smem:[#allocation2 + $0x6]]
    %v48 = vld [vmem:[#allocation6] sm:$0xff]
    %v49 = vld [vmem:[#allocation6 + $0x8] sm:$0xff]
    %v50 = vlaneseq
    %v51 = vand.u32 %v50, 127
    %v52 = vadd.s32 %v51, 128
    %v53 = vadd.s32 %v51, 256
    %v54 = vadd.s32 %v51, 384
    %v55 = vand.u32 %v51, 255
    %v56 = vand.u32 %v52, 255
    %v57 = vand.u32 %v53, 255
    %v58 = vand.u32 %v54, 255
    %v59 = vand.u32 %v55, 15
    %v60 = vand.u32 %v56, 15
    %v61 = vand.u32 %v57, 15
    %v62 = vand.u32 %v58, 15
    %v63 = vshra.s32 %v55, 4
    %v64 = vshra.s32 %v56, 4
    %v65 = vshra.s32 %v57, 4
    %v66 = vshra.s32 %v58, 4
    %vm67 = vcmp.ge.s32.totalorder %v63, 1
    %vm68 = vcmp.ge.s32.totalorder %v64, 1
    %vm69 = vcmp.ge.s32.totalorder %v65, 1
    %vm70 = vcmp.ge.s32.totalorder %v66, 1
    %vm71 = vcmp.ge.s32.totalorder %v59, 1
    %vm72 = vcmp.ge.s32.totalorder %v60, 1
    %vm73 = vcmp.ge.s32.totalorder %v61, 1
    %vm74 = vcmp.ge.s32.totalorder %v62, 1
    %vm75 = vmand %vm67, %vm71
    %vm76 = vmand %vm68, %vm72
    %vm77 = vmand %vm69, %vm73
    %vm78 = vmand %vm70, %vm74
    %vm79 = vcmp.le.s32.totalorder %v59, 14
    %vm80 = vcmp.le.s32.totalorder %v60, 14
    %vm81 = vcmp.le.s32.totalorder %v61, 14
    %vm82 = vcmp.le.s32.totalorder %v62, 14
    %vm83 = vmand %vm67, %vm79
    %vm84 = vmand %vm68, %vm80
    %vm85 = vmand %vm69, %vm81
    %vm86 = vmand %vm70, %vm82
    %vm87 = vcmp.le.s32.totalorder %v63, 14
    %vm88 = vcmp.le.s32.totalorder %v64, 14
    %vm89 = vcmp.le.s32.totalorder %v65, 14
    %vm90 = vcmp.le.s32.totalorder %v66, 14
    %vm91 = vmand %vm87, %vm71
    %vm92 = vmand %vm88, %vm72
    %vm93 = vmand %vm89, %vm73
    %vm94 = vmand %vm90, %vm74
    %vm95 = vmand %vm87, %vm79
    %vm96 = vmand %vm88, %vm80
    %vm97 = vmand %vm89, %vm81
    %vm98 = vmand %vm90, %vm82
    %v99 = vstv %s41
    %v100 = vadd.f32 %v48, %v99
    %v101 = vadd.f32 %v49, %v99
    %vm102 = vcmp.gt.f32.partialorder %v100, 0.0
    %vm103 = vcmp.gt.f32.partialorder %v101, 0.0
    %v104 = vstv %s42
    %v105 = vmul.f32 %v104, %v100
    %v106 = vmul.f32 %v104, %v101
    %v107 = vsel %vm102, %v100, %v105
    %v108 = vsel %vm103, %v101, %v106
    %v109 = vstv %s43
    %v110 = vadd.f32 %v107, %v109
    %v111 = vadd.f32 %v108, %v109
    %v112 = vld [vmem:[%s2] sm:$0xf]
    %v115 = vcombine.high %v110, %v110
    %v116 = vcombine.high %v111, %v111
    %119 = vrot.lane.b32.xlu0 %v110, 17
    %v120 = vpop.permute.xlu0 %119
    %121 = vrot.lane.b32.xlu0 %v115, 17
    %v122 = vpop.permute.xlu0 %121
    %123 = vrot.lane.b32.xlu0 %v111, 17
    %v124 = vpop.permute.xlu0 %123
    %125 = vrot.lane.b32.xlu0 %v116, 17
    %v126 = vpop.permute.xlu0 %125
    %vm127 = vcmp.lt.s32.totalorder %v51, 17
    %v128 = vsel %vm127, %v124, %v126
    %v129 = vsel %vm127, %v122, %v124
    %v130 = vsel %vm127, %v120, %v122
    %v131 = vsel %vm127, %v126, %v120
    %v132 = vsel %vm75, 1, 0
    %v133 = vsel %vm76, 1, 0
    %v134 = vsel %vm77, 1, 0
    %v135 = vsel %vm78, 1, 0
    %vm136 = vcmp.eq.s32.totalorder %v132, 1
    %vm137 = vcmp.eq.s32.totalorder %v133, 1
    %vm138 = vcmp.eq.s32.totalorder %v134, 1
    %vm139 = vcmp.eq.s32.totalorder %v135, 1
    %v140 = vsel %vm136, %v131, 0.0
    %v141 = vsel %vm137, %v130, 0.0
    %v142 = vsel %vm138, %v129, 0.0
    %v143 = vsel %vm139, %v128, 0.0
    %145 = vset.pattern.permute.xlu0 0
    %146 = vperm.xlu0 %145, %v112
    %v147 = vpop.permute.xlu0 %146
    %v149 = vlaneseq
    %v150 = vshrl.u32 %v149, 7
    %v151 = vsub.s32 0, %v150
    %v152 = vrot.slane %v140, %v151
    %v153 = vlaneseq
    %v154 = vshrl.u32 %v153, 7
    %v155 = vsub.s32 0, %v154
    %v156 = vrot.slane %v141, %v155
    %v157 = vlaneseq
    %v158 = vshrl.u32 %v157, 7
    %v159 = vsub.s32 0, %v158
    %v160 = vrot.slane %v142, %v159
    %v161 = vlaneseq
    %v162 = vshrl.u32 %v161, 7
    %v163 = vsub.s32 0, %v162
    %v164 = vrot.slane %v143, %v163
    %v165 = vmul.f32 %v147, %v152
    %v166 = vmul.f32 %v147, %v156
    %v167 = vmul.f32 %v147, %v160
    %v168 = vmul.f32 %v147, %v164
    %v169 = vadd.f32 %v165, 0.0
    %v170 = vadd.f32 %v166, 0.0
    %v171 = vadd.f32 %v167, 0.0
    %v172 = vadd.f32 %v168, 0.0
    %173 = vset.pattern.permute.xlu0 1
    %174 = vperm.xlu0 %173, %v112
    %v175 = vpop.permute.xlu0 %174
    %v177 = vlaneseq
    %v178 = vshrl.u32 %v177, 7
    %v179 = vsub.s32 1, %v178
    %v180 = vrot.slane %v140, %v179
    %v181 = vlaneseq
    %v182 = vshrl.u32 %v181, 7
    %v183 = vsub.s32 1, %v182
    %v184 = vrot.slane %v141, %v183
    %v185 = vlaneseq
    %v186 = vshrl.u32 %v185, 7
    %v187 = vsub.s32 1, %v186
    %v188 = vrot.slane %v142, %v187
    %v189 = vlaneseq
    %v190 = vshrl.u32 %v189, 7
    %v191 = vsub.s32 1, %v190
    %v192 = vrot.slane %v143, %v191
    %v193 = vmul.f32 %v175, %v180
    %v194 = vmul.f32 %v175, %v184
    %v195 = vmul.f32 %v175, %v188
    %v196 = vmul.f32 %v175, %v192
    %v197 = vadd.f32 %v169, %v193
    %v198 = vadd.f32 %v170, %v194
    %v199 = vadd.f32 %v171, %v195
    %v200 = vadd.f32 %v172, %v196
    %201 = vset.pattern.permute.xlu0 2
    %202 = vperm.xlu0 %201, %v112
    %v203 = vpop.permute.xlu0 %202
    %v205 = vlaneseq
    %v206 = vshrl.u32 %v205, 7
    %v207 = vsub.s32 2, %v206
    %v208 = vrot.slane %v140, %v207
    %v209 = vlaneseq
    %v210 = vshrl.u32 %v209, 7
    %v211 = vsub.s32 2, %v210
    %v212 = vrot.slane %v141, %v211
    %v213 = vlaneseq
    %v214 = vshrl.u32 %v213, 7
    %v215 = vsub.s32 2, %v214
    %v216 = vrot.slane %v142, %v215
    %v217 = vlaneseq
    %v218 = vshrl.u32 %v217, 7
    %v219 = vsub.s32 2, %v218
    %v220 = vrot.slane %v143, %v219
    %v221 = vmul.f32 %v203, %v208
    %v222 = vmul.f32 %v203, %v212
    %v223 = vmul.f32 %v203, %v216
    %v224 = vmul.f32 %v203, %v220
    %v225 = vadd.f32 %v197, %v221
    %v226 = vadd.f32 %v198, %v222
    %v227 = vadd.f32 %v199, %v223
    %v228 = vadd.f32 %v200, %v224
    %229 = vset.pattern.permute.xlu0 3
    %230 = vperm.xlu0 %229, %v112
    %v231 = vpop.permute.xlu0 %230
    %v233 = vlaneseq
    %v234 = vshrl.u32 %v233, 7
    %v235 = vsub.s32 3, %v234
    %v236 = vrot.slane %v140, %v235
    %v237 = vlaneseq
    %v238 = vshrl.u32 %v237, 7
    %v239 = vsub.s32 3, %v238
    %v240 = vrot.slane %v141, %v239
    %v241 = vlaneseq
    %v242 = vshrl.u32 %v241, 7
    %v243 = vsub.s32 3, %v242
    %v244 = vrot.slane %v142, %v243
    %v245 = vlaneseq
    %v246 = vshrl.u32 %v245, 7
    %v247 = vsub.s32 3, %v246
    %v248 = vrot.slane %v143, %v247
    %v249 = vmul.f32 %v231, %v236
    %v250 = vmul.f32 %v231, %v240
    %v251 = vmul.f32 %v231, %v244
    %v252 = vmul.f32 %v231, %v248
    %v253 = vadd.f32 %v225, %v249
    %v254 = vadd.f32 %v226, %v250
    %v255 = vadd.f32 %v227, %v251
    %v256 = vadd.f32 %v228, %v252
    %257 = vrot.lane.b32.xlu0 %v110, 16
    %v258 = vpop.permute.xlu0 %257
    %259 = vrot.lane.b32.xlu0 %v115, 16
    %v260 = vpop.permute.xlu0 %259
    %261 = vrot.lane.b32.xlu0 %v111, 16
    %v262 = vpop.permute.xlu0 %261
    %263 = vrot.lane.b32.xlu0 %v116, 16
    %v264 = vpop.permute.xlu0 %263
    %vm265 = vcmp.lt.s32.totalorder %v51, 16
    %v266 = vsel %vm265, %v262, %v264
    %v267 = vsel %vm265, %v260, %v262
    %v268 = vsel %vm265, %v258, %v260
    %v269 = vsel %vm265, %v264, %v258
    %v270 = vsel %vm67, 1, 0
    %v271 = vsel %vm68, 1, 0
    %v272 = vsel %vm69, 1, 0
    %v273 = vsel %vm70, 1, 0
    %vm274 = vcmp.eq.s32.totalorder %v270, 1
    %vm275 = vcmp.eq.s32.totalorder %v271, 1
    %vm276 = vcmp.eq.s32.totalorder %v272, 1
    %vm277 = vcmp.eq.s32.totalorder %v273, 1
    %v278 = vsel %vm274, %v269, 0.0
    %v279 = vsel %vm275, %v268, 0.0
    %v280 = vsel %vm276, %v267, 0.0
    %v281 = vsel %vm277, %v266, 0.0
    %282 = vset.pattern.permute.xlu0 4
    %283 = vperm.xlu0 %282, %v112
    %v284 = vpop.permute.xlu0 %283
    %v286 = vlaneseq
    %v287 = vshrl.u32 %v286, 7
    %v288 = vsub.s32 0, %v287
    %v289 = vrot.slane %v278, %v288
    %v290 = vlaneseq
    %v291 = vshrl.u32 %v290, 7
    %v292 = vsub.s32 0, %v291
    %v293 = vrot.slane %v279, %v292
    %v294 = vlaneseq
    %v295 = vshrl.u32 %v294, 7
    %v296 = vsub.s32 0, %v295
    %v297 = vrot.slane %v280, %v296
    %v298 = vlaneseq
    %v299 = vshrl.u32 %v298, 7
    %v300 = vsub.s32 0, %v299
    %v301 = vrot.slane %v281, %v300
    %v302 = vmul.f32 %v284, %v289
    %v303 = vmul.f32 %v284, %v293
    %v304 = vmul.f32 %v284, %v297
    %v305 = vmul.f32 %v284, %v301
    %v306 = vadd.f32 %v253, %v302
    %v307 = vadd.f32 %v254, %v303
    %v308 = vadd.f32 %v255, %v304
    %v309 = vadd.f32 %v256, %v305
    %310 = vset.pattern.permute.xlu0 5
    %311 = vperm.xlu0 %310, %v112
    %v312 = vpop.permute.xlu0 %311
    %v314 = vlaneseq
    %v315 = vshrl.u32 %v314, 7
    %v316 = vsub.s32 1, %v315
    %v317 = vrot.slane %v278, %v316
    %v318 = vlaneseq
    %v319 = vshrl.u32 %v318, 7
    %v320 = vsub.s32 1, %v319
    %v321 = vrot.slane %v279, %v320
    %v322 = vlaneseq
    %v323 = vshrl.u32 %v322, 7
    %v324 = vsub.s32 1, %v323
    %v325 = vrot.slane %v280, %v324
    %v326 = vlaneseq
    %v327 = vshrl.u32 %v326, 7
    %v328 = vsub.s32 1, %v327
    %v329 = vrot.slane %v281, %v328
    %v330 = vmul.f32 %v312, %v317
    %v331 = vmul.f32 %v312, %v321
    %v332 = vmul.f32 %v312, %v325
    %v333 = vmul.f32 %v312, %v329
    %v334 = vadd.f32 %v306, %v330
    %v335 = vadd.f32 %v307, %v331
    %v336 = vadd.f32 %v308, %v332
    %v337 = vadd.f32 %v309, %v333
    %338 = vset.pattern.permute.xlu0 6
    %339 = vperm.xlu0 %338, %v112
    %v340 = vpop.permute.xlu0 %339
    %v342 = vlaneseq
    %v343 = vshrl.u32 %v342, 7
    %v344 = vsub.s32 2, %v343
    %v345 = vrot.slane %v278, %v344
    %v346 = vlaneseq
    %v347 = vshrl.u32 %v346, 7
    %v348 = vsub.s32 2, %v347
    %v349 = vrot.slane %v279, %v348
    %v350 = vlaneseq
    %v351 = vshrl.u32 %v350, 7
    %v352 = vsub.s32 2, %v351
    %v353 = vrot.slane %v280, %v352
    %v354 = vlaneseq
    %v355 = vshrl.u32 %v354, 7
    %v356 = vsub.s32 2, %v355
    %v357 = vrot.slane %v281, %v356
    %v358 = vmul.f32 %v340, %v345
    %v359 = vmul.f32 %v340, %v349
    %v360 = vmul.f32 %v340, %v353
    %v361 = vmul.f32 %v340, %v357
    %v362 = vadd.f32 %v334, %v358
    %v363 = vadd.f32 %v335, %v359
    %v364 = vadd.f32 %v336, %v360
    %v365 = vadd.f32 %v337, %v361
    %366 = vset.pattern.permute.xlu0 7
    %367 = vperm.xlu0 %366, %v112
    %v368 = vpop.permute.xlu0 %367
    %v370 = vlaneseq
    %v371 = vshrl.u32 %v370, 7
    %v372 = vsub.s32 3, %v371
    %v373 = vrot.slane %v278, %v372
    %v374 = vlaneseq
    %v375 = vshrl.u32 %v374, 7
    %v376 = vsub.s32 3, %v375
    %v377 = vrot.slane %v279, %v376
    %v378 = vlaneseq
    %v379 = vshrl.u32 %v378, 7
    %v380 = vsub.s32 3, %v379
    %v381 = vrot.slane %v280, %v380
    %v382 = vlaneseq
    %v383 = vshrl.u32 %v382, 7
    %v384 = vsub.s32 3, %v383
    %v385 = vrot.slane %v281, %v384
    %v386 = vmul.f32 %v368, %v373
    %v387 = vmul.f32 %v368, %v377
    %v388 = vmul.f32 %v368, %v381
    %v389 = vmul.f32 %v368, %v385
    %v390 = vadd.f32 %v362, %v386
    %v391 = vadd.f32 %v363, %v387
    %v392 = vadd.f32 %v364, %v388
    %v393 = vadd.f32 %v365, %v389
    %394 = vrot.lane.b32.xlu0 %v110, 15
    %v395 = vpop.permute.xlu0 %394
    %396 = vrot.lane.b32.xlu0 %v115, 15
    %v397 = vpop.permute.xlu0 %396
    %398 = vrot.lane.b32.xlu0 %v111, 15
    %v399 = vpop.permute.xlu0 %398
    %400 = vrot.lane.b32.xlu0 %v116, 15
    %v401 = vpop.permute.xlu0 %400
    %vm402 = vcmp.lt.s32.totalorder %v51, 15
    %v403 = vsel %vm402, %v399, %v401
    %v404 = vsel %vm402, %v397, %v399
    %v405 = vsel %vm402, %v395, %v397
    %v406 = vsel %vm402, %v401, %v395
    %v407 = vsel %vm83, 1, 0
    %v408 = vsel %vm84, 1, 0
    %v409 = vsel %vm85, 1, 0
    %v410 = vsel %vm86, 1, 0
    %vm411 = vcmp.eq.s32.totalorder %v407, 1
    %vm412 = vcmp.eq.s32.totalorder %v408, 1
    %vm413 = vcmp.eq.s32.totalorder %v409, 1
    %vm414 = vcmp.eq.s32.totalorder %v410, 1
    %v415 = vsel %vm411, %v406, 0.0
    %v416 = vsel %vm412, %v405, 0.0
    %v417 = vsel %vm413, %v404, 0.0
    %v418 = vsel %vm414, %v403, 0.0
    %419 = vset.pattern.permute.xlu0 8
    %420 = vperm.xlu0 %419, %v112
    %v421 = vpop.permute.xlu0 %420
    %v423 = vlaneseq
    %v424 = vshrl.u32 %v423, 7
    %v425 = vsub.s32 0, %v424
    %v426 = vrot.slane %v415, %v425
    %v427 = vlaneseq
    %v428 = vshrl.u32 %v427, 7
    %v429 = vsub.s32 0, %v428
    %v430 = vrot.slane %v416, %v429
    %v431 = vlaneseq
    %v432 = vshrl.u32 %v431, 7
    %v433 = vsub.s32 0, %v432
    %v434 = vrot.slane %v417, %v433
    %v435 = vlaneseq
    %v436 = vshrl.u32 %v435, 7
    %v437 = vsub.s32 0, %v436
    %v438 = vrot.slane %v418, %v437
    %v439 = vmul.f32 %v421, %v426
    %v440 = vmul.f32 %v421, %v430
    %v441 = vmul.f32 %v421, %v434
    %v442 = vmul.f32 %v421, %v438
    %v443 = vadd.f32 %v390, %v439
    %v444 = vadd.f32 %v391, %v440
    %v445 = vadd.f32 %v392, %v441
    %v446 = vadd.f32 %v393, %v442
    %447 = vset.pattern.permute.xlu0 9
    %448 = vperm.xlu0 %447, %v112
    %v449 = vpop.permute.xlu0 %448
    %v451 = vlaneseq
    %v452 = vshrl.u32 %v451, 7
    %v453 = vsub.s32 1, %v452
    %v454 = vrot.slane %v415, %v453
    %v455 = vlaneseq
    %v456 = vshrl.u32 %v455, 7
    %v457 = vsub.s32 1, %v456
    %v458 = vrot.slane %v416, %v457
    %v459 = vlaneseq
    %v460 = vshrl.u32 %v459, 7
    %v461 = vsub.s32 1, %v460
    %v462 = vrot.slane %v417, %v461
    %v463 = vlaneseq
    %v464 = vshrl.u32 %v463, 7
    %v465 = vsub.s32 1, %v464
    %v466 = vrot.slane %v418, %v465
    %v467 = vmul.f32 %v449, %v454
    %v468 = vmul.f32 %v449, %v458
    %v469 = vmul.f32 %v449, %v462
    %v470 = vmul.f32 %v449, %v466
    %v471 = vadd.f32 %v443, %v467
    %v472 = vadd.f32 %v444, %v468
    %v473 = vadd.f32 %v445, %v469
    %v474 = vadd.f32 %v446, %v470
    %475 = vset.pattern.permute.xlu0 10
    %476 = vperm.xlu0 %475, %v112
    %v477 = vpop.permute.xlu0 %476
    %v479 = vlaneseq
    %v480 = vshrl.u32 %v479, 7
    %v481 = vsub.s32 2, %v480
    %v482 = vrot.slane %v415, %v481
    %v483 = vlaneseq
    %v484 = vshrl.u32 %v483, 7
    %v485 = vsub.s32 2, %v484
    %v486 = vrot.slane %v416, %v485
    %v487 = vlaneseq
    %v488 = vshrl.u32 %v487, 7
    %v489 = vsub.s32 2, %v488
    %v490 = vrot.slane %v417, %v489
    %v491 = vlaneseq
    %v492 = vshrl.u32 %v491, 7
    %v493 = vsub.s32 2, %v492
    %v494 = vrot.slane %v418, %v493
    %v495 = vmul.f32 %v477, %v482
    %v496 = vmul.f32 %v477, %v486
    %v497 = vmul.f32 %v477, %v490
    %v498 = vmul.f32 %v477, %v494
    %v499 = vadd.f32 %v471, %v495
    %v500 = vadd.f32 %v472, %v496
    %v501 = vadd.f32 %v473, %v497
    %v502 = vadd.f32 %v474, %v498
    %503 = vset.pattern.permute.xlu0 11
    %504 = vperm.xlu0 %503, %v112
    %v505 = vpop.permute.xlu0 %504
    %v507 = vlaneseq
    %v508 = vshrl.u32 %v507, 7
    %v509 = vsub.s32 3, %v508
    %v510 = vrot.slane %v415, %v509
    %v511 = vlaneseq
    %v512 = vshrl.u32 %v511, 7
    %v513 = vsub.s32 3, %v512
    %v514 = vrot.slane %v416, %v513
    %v515 = vlaneseq
    %v516 = vshrl.u32 %v515, 7
    %v517 = vsub.s32 3, %v516
    %v518 = vrot.slane %v417, %v517
    %v519 = vlaneseq
    %v520 = vshrl.u32 %v519, 7
    %v521 = vsub.s32 3, %v520
    %v522 = vrot.slane %v418, %v521
    %v523 = vmul.f32 %v505, %v510
    %v524 = vmul.f32 %v505, %v514
    %v525 = vmul.f32 %v505, %v518
    %v526 = vmul.f32 %v505, %v522
    %v527 = vadd.f32 %v499, %v523
    %v528 = vadd.f32 %v500, %v524
    %v529 = vadd.f32 %v501, %v525
    %v530 = vadd.f32 %v502, %v526
    %531 = vrot.lane.b32.xlu0 %v110, 1
    %v532 = vpop.permute.xlu0 %531
    %533 = vrot.lane.b32.xlu0 %v115, 1
    %v534 = vpop.permute.xlu0 %533
    %535 = vrot.lane.b32.xlu0 %v111, 1
    %v536 = vpop.permute.xlu0 %535
    %537 = vrot.lane.b32.xlu0 %v116, 1
    %v538 = vpop.permute.xlu0 %537
    %vm539 = vcmp.lt.s32.totalorder %v51, 1
    %v540 = vsel %vm539, %v536, %v538
    %v541 = vsel %vm539, %v534, %v536
    %v542 = vsel %vm539, %v532, %v534
    %v543 = vsel %vm539, %v538, %v532
    %v544 = vsel %vm71, 1, 0
    %v545 = vsel %vm72, 1, 0
    %v546 = vsel %vm73, 1, 0
    %v547 = vsel %vm74, 1, 0
    %vm548 = vcmp.eq.s32.totalorder %v544, 1
    %vm549 = vcmp.eq.s32.totalorder %v545, 1
    %vm550 = vcmp.eq.s32.totalorder %v546, 1
    %vm551 = vcmp.eq.s32.totalorder %v547, 1
    %v552 = vsel %vm548, %v543, 0.0
    %v553 = vsel %vm549, %v542, 0.0
    %v554 = vsel %vm550, %v541, 0.0
    %v555 = vsel %vm551, %v540, 0.0
    %556 = vset.pattern.permute.xlu0 12
    %557 = vperm.xlu0 %556, %v112
    %v558 = vpop.permute.xlu0 %557
    %v560 = vlaneseq
    %v561 = vshrl.u32 %v560, 7
    %v562 = vsub.s32 0, %v561
    %v563 = vrot.slane %v552, %v562
    %v564 = vlaneseq
    %v565 = vshrl.u32 %v564, 7
    %v566 = vsub.s32 0, %v565
    %v567 = vrot.slane %v553, %v566
    %v568 = vlaneseq
    %v569 = vshrl.u32 %v568, 7
    %v570 = vsub.s32 0, %v569
    %v571 = vrot.slane %v554, %v570
    %v572 = vlaneseq
    %v573 = vshrl.u32 %v572, 7
    %v574 = vsub.s32 0, %v573
    %v575 = vrot.slane %v555, %v574
    %v576 = vmul.f32 %v558, %v563
    %v577 = vmul.f32 %v558, %v567
    %v578 = vmul.f32 %v558, %v571
    %v579 = vmul.f32 %v558, %v575
    %v580 = vadd.f32 %v527, %v576
    %v581 = vadd.f32 %v528, %v577
    %v582 = vadd.f32 %v529, %v578
    %v583 = vadd.f32 %v530, %v579
    %584 = vset.pattern.permute.xlu0 13
    %585 = vperm.xlu0 %584, %v112
    %v586 = vpop.permute.xlu0 %585
    %v588 = vlaneseq
    %v589 = vshrl.u32 %v588, 7
    %v590 = vsub.s32 1, %v589
    %v591 = vrot.slane %v552, %v590
    %v592 = vlaneseq
    %v593 = vshrl.u32 %v592, 7
    %v594 = vsub.s32 1, %v593
    %v595 = vrot.slane %v553, %v594
    %v596 = vlaneseq
    %v597 = vshrl.u32 %v596, 7
    %v598 = vsub.s32 1, %v597
    %v599 = vrot.slane %v554, %v598
    %v600 = vlaneseq
    %v601 = vshrl.u32 %v600, 7
    %v602 = vsub.s32 1, %v601
    %v603 = vrot.slane %v555, %v602
    %v604 = vmul.f32 %v586, %v591
    %v605 = vmul.f32 %v586, %v595
    %v606 = vmul.f32 %v586, %v599
    %v607 = vmul.f32 %v586, %v603
    %v608 = vadd.f32 %v580, %v604
    %v609 = vadd.f32 %v581, %v605
    %v610 = vadd.f32 %v582, %v606
    %v611 = vadd.f32 %v583, %v607
    %612 = vset.pattern.permute.xlu0 14
    %613 = vperm.xlu0 %612, %v112
    %v614 = vpop.permute.xlu0 %613
    %v616 = vlaneseq
    %v617 = vshrl.u32 %v616, 7
    %v618 = vsub.s32 2, %v617
    %v619 = vrot.slane %v552, %v618
    %v620 = vlaneseq
    %v621 = vshrl.u32 %v620, 7
    %v622 = vsub.s32 2, %v621
    %v623 = vrot.slane %v553, %v622
    %v624 = vlaneseq
    %v625 = vshrl.u32 %v624, 7
    %v626 = vsub.s32 2, %v625
    %v627 = vrot.slane %v554, %v626
    %v628 = vlaneseq
    %v629 = vshrl.u32 %v628, 7
    %v630 = vsub.s32 2, %v629
    %v631 = vrot.slane %v555, %v630
    %v632 = vmul.f32 %v614, %v619
    %v633 = vmul.f32 %v614, %v623
    %v634 = vmul.f32 %v614, %v627
    %v635 = vmul.f32 %v614, %v631
    %v636 = vadd.f32 %v608, %v632
    %v637 = vadd.f32 %v609, %v633
    %v638 = vadd.f32 %v610, %v634
    %v639 = vadd.f32 %v611, %v635
    %640 = vset.pattern.permute.xlu0 15
    %641 = vperm.xlu0 %640, %v112
    %v642 = vpop.permute.xlu0 %641
    %v644 = vlaneseq
    %v645 = vshrl.u32 %v644, 7
    %v646 = vsub.s32 3, %v645
    %v647 = vrot.slane %v552, %v646
    %v648 = vlaneseq
    %v649 = vshrl.u32 %v648, 7
    %v650 = vsub.s32 3, %v649
    %v651 = vrot.slane %v553, %v650
    %v652 = vlaneseq
    %v653 = vshrl.u32 %v652, 7
    %v654 = vsub.s32 3, %v653
    %v655 = vrot.slane %v554, %v654
    %v656 = vlaneseq
    %v657 = vshrl.u32 %v656, 7
    %v658 = vsub.s32 3, %v657
    %v659 = vrot.slane %v555, %v658
    %v660 = vmul.f32 %v642, %v647
    %v661 = vmul.f32 %v642, %v651
    %v662 = vmul.f32 %v642, %v655
    %v663 = vmul.f32 %v642, %v659
    %v664 = vadd.f32 %v636, %v660
    %v665 = vadd.f32 %v637, %v661
    %v666 = vadd.f32 %v638, %v662
    %v667 = vadd.f32 %v639, %v663
    %668 = vset.pattern.permute.xlu0 16
    %669 = vperm.xlu0 %668, %v112
    %v670 = vpop.permute.xlu0 %669
    %v672 = vlaneseq
    %v673 = vshrl.u32 %v672, 7
    %v674 = vsub.s32 0, %v673
    %v675 = vrot.slane %v110, %v674
    %v676 = vlaneseq
    %v677 = vshrl.u32 %v676, 7
    %v678 = vsub.s32 4, %v677
    %v679 = vrot.slane %v110, %v678
    %v680 = vlaneseq
    %v681 = vshrl.u32 %v680, 7
    %v682 = vsub.s32 0, %v681
    %v683 = vrot.slane %v111, %v682
    %v684 = vlaneseq
    %v685 = vshrl.u32 %v684, 7
    %v686 = vsub.s32 4, %v685
    %v687 = vrot.slane %v111, %v686
    %v692 = vlaneseq
    %v693 = vshrl.u32 %v692, 7
    %v694 = vsub.s32 0, %v693
    %v695 = vrot.slane %v675, %v694
    %v696 = vlaneseq
    %v697 = vshrl.u32 %v696, 7
    %v698 = vsub.s32 0, %v697
    %v699 = vrot.slane %v679, %v698
    %v700 = vlaneseq
    %v701 = vshrl.u32 %v700, 7
    %v702 = vsub.s32 0, %v701
    %v703 = vrot.slane %v683, %v702
    %v704 = vlaneseq
    %v705 = vshrl.u32 %v704, 7
    %v706 = vsub.s32 0, %v705
    %v707 = vrot.slane %v687, %v706
    %v708 = vmul.f32 %v670, %v695
    %v709 = vmul.f32 %v670, %v699
    %v710 = vmul.f32 %v670, %v703
    %v711 = vmul.f32 %v670, %v707
    %v712 = vadd.f32 %v664, %v708
    %v713 = vadd.f32 %v665, %v709
    %v714 = vadd.f32 %v666, %v710
    %v715 = vadd.f32 %v667, %v711
    %716 = vset.pattern.permute.xlu0 17
    %717 = vperm.xlu0 %716, %v112
    %v718 = vpop.permute.xlu0 %717
    %v720 = vlaneseq
    %v721 = vshrl.u32 %v720, 7
    %v722 = vsub.s32 1, %v721
    %v723 = vrot.slane %v110, %v722
    %v724 = vlaneseq
    %v725 = vshrl.u32 %v724, 7
    %v726 = vsub.s32 5, %v725
    %v727 = vrot.slane %v110, %v726
    %v728 = vlaneseq
    %v729 = vshrl.u32 %v728, 7
    %v730 = vsub.s32 1, %v729
    %v731 = vrot.slane %v111, %v730
    %v732 = vlaneseq
    %v733 = vshrl.u32 %v732, 7
    %v734 = vsub.s32 5, %v733
    %v735 = vrot.slane %v111, %v734
    %v740 = vlaneseq
    %v741 = vshrl.u32 %v740, 7
    %v742 = vsub.s32 1, %v741
    %v743 = vrot.slane %v723, %v742
    %v744 = vlaneseq
    %v745 = vshrl.u32 %v744, 7
    %v746 = vsub.s32 1, %v745
    %v747 = vrot.slane %v727, %v746
    %v748 = vlaneseq
    %v749 = vshrl.u32 %v748, 7
    %v750 = vsub.s32 1, %v749
    %v751 = vrot.slane %v731, %v750
    %v752 = vlaneseq
    %v753 = vshrl.u32 %v752, 7
    %v754 = vsub.s32 1, %v753
    %v755 = vrot.slane %v735, %v754
    %v756 = vmul.f32 %v718, %v743
    %v757 = vmul.f32 %v718, %v747
    %v758 = vmul.f32 %v718, %v751
    %v759 = vmul.f32 %v718, %v755
    %v760 = vadd.f32 %v712, %v756
    %v761 = vadd.f32 %v713, %v757
    %v762 = vadd.f32 %v714, %v758
    %v763 = vadd.f32 %v715, %v759
    %764 = vset.pattern.permute.xlu0 18
    %765 = vperm.xlu0 %764, %v112
    %v766 = vpop.permute.xlu0 %765
    %v768 = vlaneseq
    %v769 = vshrl.u32 %v768, 7
    %v770 = vsub.s32 2, %v769
    %v771 = vrot.slane %v110, %v770
    %v772 = vlaneseq
    %v773 = vshrl.u32 %v772, 7
    %v774 = vsub.s32 6, %v773
    %v775 = vrot.slane %v110, %v774
    %v776 = vlaneseq
    %v777 = vshrl.u32 %v776, 7
    %v778 = vsub.s32 2, %v777
    %v779 = vrot.slane %v111, %v778
    %v780 = vlaneseq
    %v781 = vshrl.u32 %v780, 7
    %v782 = vsub.s32 6, %v781
    %v783 = vrot.slane %v111, %v782
    %v788 = vlaneseq
    %v789 = vshrl.u32 %v788, 7
    %v790 = vsub.s32 2, %v789
    %v791 = vrot.slane %v771, %v790
    %v792 = vlaneseq
    %v793 = vshrl.u32 %v792, 7
    %v794 = vsub.s32 2, %v793
    %v795 = vrot.slane %v775, %v794
    %v796 = vlaneseq
    %v797 = vshrl.u32 %v796, 7
    %v798 = vsub.s32 2, %v797
    %v799 = vrot.slane %v779, %v798
    %v800 = vlaneseq
    %v801 = vshrl.u32 %v800, 7
    %v802 = vsub.s32 2, %v801
    %v803 = vrot.slane %v783, %v802
    %v804 = vmul.f32 %v766, %v791
    %v805 = vmul.f32 %v766, %v795
    %v806 = vmul.f32 %v766, %v799
    %v807 = vmul.f32 %v766, %v803
    %v808 = vadd.f32 %v760, %v804
    %v809 = vadd.f32 %v761, %v805
    %v810 = vadd.f32 %v762, %v806
    %v811 = vadd.f32 %v763, %v807
    %812 = vset.pattern.permute.xlu0 19
    %813 = vperm.xlu0 %812, %v112
    %v814 = vpop.permute.xlu0 %813
    %v816 = vlaneseq
    %v817 = vshrl.u32 %v816, 7
    %v818 = vsub.s32 3, %v817
    %v819 = vrot.slane %v110, %v818
    %v820 = vlaneseq
    %v821 = vshrl.u32 %v820, 7
    %v822 = vsub.s32 7, %v821
    %v823 = vrot.slane %v110, %v822
    %v824 = vlaneseq
    %v825 = vshrl.u32 %v824, 7
    %v826 = vsub.s32 3, %v825
    %v827 = vrot.slane %v111, %v826
    %v828 = vlaneseq
    %v829 = vshrl.u32 %v828, 7
    %v830 = vsub.s32 7, %v829
    %v831 = vrot.slane %v111, %v830
    %v836 = vlaneseq
    %v837 = vshrl.u32 %v836, 7
    %v838 = vsub.s32 3, %v837
    %v839 = vrot.slane %v819, %v838
    %v840 = vlaneseq
    %v841 = vshrl.u32 %v840, 7
    %v842 = vsub.s32 3, %v841
    %v843 = vrot.slane %v823, %v842
    %v844 = vlaneseq
    %v845 = vshrl.u32 %v844, 7
    %v846 = vsub.s32 3, %v845
    %v847 = vrot.slane %v827, %v846
    %v848 = vlaneseq
    %v849 = vshrl.u32 %v848, 7
    %v850 = vsub.s32 3, %v849
    %v851 = vrot.slane %v831, %v850
    %v852 = vmul.f32 %v814, %v839
    %v853 = vmul.f32 %v814, %v843
    %v854 = vmul.f32 %v814, %v847
    %v855 = vmul.f32 %v814, %v851
    %v856 = vadd.f32 %v808, %v852
    %v857 = vadd.f32 %v809, %v853
    %v858 = vadd.f32 %v810, %v854
    %v859 = vadd.f32 %v811, %v855
    %860 = vrot.lane.b32.xlu0 %v110, 127
    %v861 = vpop.permute.xlu0 %860
    %862 = vrot.lane.b32.xlu0 %v115, 127
    %v863 = vpop.permute.xlu0 %862
    %864 = vrot.lane.b32.xlu0 %v111, 127
    %v865 = vpop.permute.xlu0 %864
    %866 = vrot.lane.b32.xlu0 %v116, 127
    %v867 = vpop.permute.xlu0 %866
    %vm868 = vcmp.lt.s32.totalorder %v51, 127
    %v869 = vsel %vm868, %v865, %v867
    %v870 = vsel %vm868, %v863, %v865
    %v871 = vsel %vm868, %v861, %v863
    %v872 = vsel %vm868, %v867, %v861
    %v873 = vsel %vm79, 1, 0
    %v874 = vsel %vm80, 1, 0
    %v875 = vsel %vm81, 1, 0
    %v876 = vsel %vm82, 1, 0
    %vm877 = vcmp.eq.s32.totalorder %v873, 1
    %vm878 = vcmp.eq.s32.totalorder %v874, 1
    %vm879 = vcmp.eq.s32.totalorder %v875, 1
    %vm880 = vcmp.eq.s32.totalorder %v876, 1
    %v881 = vsel %vm877, %v871, 0.0
    %v882 = vsel %vm878, %v870, 0.0
    %v883 = vsel %vm879, %v869, 0.0
    %v884 = vsel %vm880, %v872, 0.0
    %885 = vset.pattern.permute.xlu0 20
    %886 = vperm.xlu0 %885, %v112
    %v887 = vpop.permute.xlu0 %886
    %v889 = vlaneseq
    %v890 = vshrl.u32 %v889, 7
    %v891 = vsub.s32 0, %v890
    %v892 = vrot.slane %v881, %v891
    %v893 = vlaneseq
    %v894 = vshrl.u32 %v893, 7
    %v895 = vsub.s32 0, %v894
    %v896 = vrot.slane %v882, %v895
    %v897 = vlaneseq
    %v898 = vshrl.u32 %v897, 7
    %v899 = vsub.s32 0, %v898
    %v900 = vrot.slane %v883, %v899
    %v901 = vlaneseq
    %v902 = vshrl.u32 %v901, 7
    %v903 = vsub.s32 0, %v902
    %v904 = vrot.slane %v884, %v903
    %v905 = vmul.f32 %v887, %v892
    %v906 = vmul.f32 %v887, %v896
    %v907 = vmul.f32 %v887, %v900
    %v908 = vmul.f32 %v887, %v904
    %v909 = vadd.f32 %v856, %v905
    %v910 = vadd.f32 %v857, %v906
    %v911 = vadd.f32 %v858, %v907
    %v912 = vadd.f32 %v859, %v908
    %913 = vset.pattern.permute.xlu0 21
    %914 = vperm.xlu0 %913, %v112
    %v915 = vpop.permute.xlu0 %914
    %v917 = vlaneseq
    %v918 = vshrl.u32 %v917, 7
    %v919 = vsub.s32 1, %v918
    %v920 = vrot.slane %v881, %v919
    %v921 = vlaneseq
    %v922 = vshrl.u32 %v921, 7
    %v923 = vsub.s32 1, %v922
    %v924 = vrot.slane %v882, %v923
    %v925 = vlaneseq
    %v926 = vshrl.u32 %v925, 7
    %v927 = vsub.s32 1, %v926
    %v928 = vrot.slane %v883, %v927
    %v929 = vlaneseq
    %v930 = vshrl.u32 %v929, 7
    %v931 = vsub.s32 1, %v930
    %v932 = vrot.slane %v884, %v931
    %v933 = vmul.f32 %v915, %v920
    %v934 = vmul.f32 %v915, %v924
    %v935 = vmul.f32 %v915, %v928
    %v936 = vmul.f32 %v915, %v932
    %v937 = vadd.f32 %v909, %v933
    %v938 = vadd.f32 %v910, %v934
    %v939 = vadd.f32 %v911, %v935
    %v940 = vadd.f32 %v912, %v936
    %941 = vset.pattern.permute.xlu0 22
    %942 = vperm.xlu0 %941, %v112
    %v943 = vpop.permute.xlu0 %942
    %v945 = vlaneseq
    %v946 = vshrl.u32 %v945, 7
    %v947 = vsub.s32 2, %v946
    %v948 = vrot.slane %v881, %v947
    %v949 = vlaneseq
    %v950 = vshrl.u32 %v949, 7
    %v951 = vsub.s32 2, %v950
    %v952 = vrot.slane %v882, %v951
    %v953 = vlaneseq
    %v954 = vshrl.u32 %v953, 7
    %v955 = vsub.s32 2, %v954
    %v956 = vrot.slane %v883, %v955
    %v957 = vlaneseq
    %v958 = vshrl.u32 %v957, 7
    %v959 = vsub.s32 2, %v958
    %v960 = vrot.slane %v884, %v959
    %v961 = vmul.f32 %v943, %v948
    %v962 = vmul.f32 %v943, %v952
    %v963 = vmul.f32 %v943, %v956
    %v964 = vmul.f32 %v943, %v960
    %v965 = vadd.f32 %v937, %v961
    %v966 = vadd.f32 %v938, %v962
    %v967 = vadd.f32 %v939, %v963
    %v968 = vadd.f32 %v940, %v964
    %969 = vset.pattern.permute.xlu0 23
    %970 = vperm.xlu0 %969, %v112
    %v971 = vpop.permute.xlu0 %970
    %v973 = vlaneseq
    %v974 = vshrl.u32 %v973, 7
    %v975 = vsub.s32 3, %v974
    %v976 = vrot.slane %v881, %v975
    %v977 = vlaneseq
    %v978 = vshrl.u32 %v977, 7
    %v979 = vsub.s32 3, %v978
    %v980 = vrot.slane %v882, %v979
    %v981 = vlaneseq
    %v982 = vshrl.u32 %v981, 7
    %v983 = vsub.s32 3, %v982
    %v984 = vrot.slane %v883, %v983
    %v985 = vlaneseq
    %v986 = vshrl.u32 %v985, 7
    %v987 = vsub.s32 3, %v986
    %v988 = vrot.slane %v884, %v987
    %v989 = vmul.f32 %v971, %v976
    %v990 = vmul.f32 %v971, %v980
    %v991 = vmul.f32 %v971, %v984
    %v992 = vmul.f32 %v971, %v988
    %v993 = vadd.f32 %v965, %v989
    %v994 = vadd.f32 %v966, %v990
    %v995 = vadd.f32 %v967, %v991
    %v996 = vadd.f32 %v968, %v992
    %997 = vrot.lane.b32.xlu0 %v110, 113
    %v998 = vpop.permute.xlu0 %997
    %999 = vrot.lane.b32.xlu0 %v115, 113
    %v1000 = vpop.permute.xlu0 %999
    %1001 = vrot.lane.b32.xlu0 %v111, 113
    %v1002 = vpop.permute.xlu0 %1001
    %1003 = vrot.lane.b32.xlu0 %v116, 113
    %v1004 = vpop.permute.xlu0 %1003
    %vm1005 = vcmp.lt.s32.totalorder %v51, 113
    %v1006 = vsel %vm1005, %v1002, %v1004
    %v1007 = vsel %vm1005, %v1000, %v1002
    %v1008 = vsel %vm1005, %v998, %v1000
    %v1009 = vsel %vm1005, %v1004, %v998
    %v1010 = vsel %vm91, 1, 0
    %v1011 = vsel %vm92, 1, 0
    %v1012 = vsel %vm93, 1, 0
    %v1013 = vsel %vm94, 1, 0
    %vm1014 = vcmp.eq.s32.totalorder %v1010, 1
    %vm1015 = vcmp.eq.s32.totalorder %v1011, 1
    %vm1016 = vcmp.eq.s32.totalorder %v1012, 1
    %vm1017 = vcmp.eq.s32.totalorder %v1013, 1
    %v1018 = vsel %vm1014, %v1008, 0.0
    %v1019 = vsel %vm1015, %v1007, 0.0
    %v1020 = vsel %vm1016, %v1006, 0.0
    %v1021 = vsel %vm1017, %v1009, 0.0
    %1022 = vset.pattern.permute.xlu0 24
    %1023 = vperm.xlu0 %1022, %v112
    %v1024 = vpop.permute.xlu0 %1023
    %v1026 = vlaneseq
    %v1027 = vshrl.u32 %v1026, 7
    %v1028 = vsub.s32 0, %v1027
    %v1029 = vrot.slane %v1018, %v1028
    %v1030 = vlaneseq
    %v1031 = vshrl.u32 %v1030, 7
    %v1032 = vsub.s32 0, %v1031
    %v1033 = vrot.slane %v1019, %v1032
    %v1034 = vlaneseq
    %v1035 = vshrl.u32 %v1034, 7
    %v1036 = vsub.s32 0, %v1035
    %v1037 = vrot.slane %v1020, %v1036
    %v1038 = vlaneseq
    %v1039 = vshrl.u32 %v1038, 7
    %v1040 = vsub.s32 0, %v1039
    %v1041 = vrot.slane %v1021, %v1040
    %v1042 = vmul.f32 %v1024, %v1029
    %v1043 = vmul.f32 %v1024, %v1033
    %v1044 = vmul.f32 %v1024, %v1037
    %v1045 = vmul.f32 %v1024, %v1041
    %v1046 = vadd.f32 %v993, %v1042
    %v1047 = vadd.f32 %v994, %v1043
    %v1048 = vadd.f32 %v995, %v1044
    %v1049 = vadd.f32 %v996, %v1045
    %1050 = vset.pattern.permute.xlu0 25
    %1051 = vperm.xlu0 %1050, %v112
    %v1052 = vpop.permute.xlu0 %1051
    %v1054 = vlaneseq
    %v1055 = vshrl.u32 %v1054, 7
    %v1056 = vsub.s32 1, %v1055
    %v1057 = vrot.slane %v1018, %v1056
    %v1058 = vlaneseq
    %v1059 = vshrl.u32 %v1058, 7
    %v1060 = vsub.s32 1, %v1059
    %v1061 = vrot.slane %v1019, %v1060
    %v1062 = vlaneseq
    %v1063 = vshrl.u32 %v1062, 7
    %v1064 = vsub.s32 1, %v1063
    %v1065 = vrot.slane %v1020, %v1064
    %v1066 = vlaneseq
    %v1067 = vshrl.u32 %v1066, 7
    %v1068 = vsub.s32 1, %v1067
    %v1069 = vrot.slane %v1021, %v1068
    %v1070 = vmul.f32 %v1052, %v1057
    %v1071 = vmul.f32 %v1052, %v1061
    %v1072 = vmul.f32 %v1052, %v1065
    %v1073 = vmul.f32 %v1052, %v1069
    %v1074 = vadd.f32 %v1046, %v1070
    %v1075 = vadd.f32 %v1047, %v1071
    %v1076 = vadd.f32 %v1048, %v1072
    %v1077 = vadd.f32 %v1049, %v1073
    %1078 = vset.pattern.permute.xlu0 26
    %1079 = vperm.xlu0 %1078, %v112
    %v1080 = vpop.permute.xlu0 %1079
    %v1082 = vlaneseq
    %v1083 = vshrl.u32 %v1082, 7
    %v1084 = vsub.s32 2, %v1083
    %v1085 = vrot.slane %v1018, %v1084
    %v1086 = vlaneseq
    %v1087 = vshrl.u32 %v1086, 7
    %v1088 = vsub.s32 2, %v1087
    %v1089 = vrot.slane %v1019, %v1088
    %v1090 = vlaneseq
    %v1091 = vshrl.u32 %v1090, 7
    %v1092 = vsub.s32 2, %v1091
    %v1093 = vrot.slane %v1020, %v1092
    %v1094 = vlaneseq
    %v1095 = vshrl.u32 %v1094, 7
    %v1096 = vsub.s32 2, %v1095
    %v1097 = vrot.slane %v1021, %v1096
    %v1098 = vmul.f32 %v1080, %v1085
    %v1099 = vmul.f32 %v1080, %v1089
    %v1100 = vmul.f32 %v1080, %v1093
    %v1101 = vmul.f32 %v1080, %v1097
    %v1102 = vadd.f32 %v1074, %v1098
    %v1103 = vadd.f32 %v1075, %v1099
    %v1104 = vadd.f32 %v1076, %v1100
    %v1105 = vadd.f32 %v1077, %v1101
    %1106 = vset.pattern.permute.xlu0 27
    %1107 = vperm.xlu0 %1106, %v112
    %v1108 = vpop.permute.xlu0 %1107
    %v1110 = vlaneseq
    %v1111 = vshrl.u32 %v1110, 7
    %v1112 = vsub.s32 3, %v1111
    %v1113 = vrot.slane %v1018, %v1112
    %v1114 = vlaneseq
    %v1115 = vshrl.u32 %v1114, 7
    %v1116 = vsub.s32 3, %v1115
    %v1117 = vrot.slane %v1019, %v1116
    %v1118 = vlaneseq
    %v1119 = vshrl.u32 %v1118, 7
    %v1120 = vsub.s32 3, %v1119
    %v1121 = vrot.slane %v1020, %v1120
    %v1122 = vlaneseq
    %v1123 = vshrl.u32 %v1122, 7
    %v1124 = vsub.s32 3, %v1123
    %v1125 = vrot.slane %v1021, %v1124
    %v1126 = vmul.f32 %v1108, %v1113
    %v1127 = vmul.f32 %v1108, %v1117
    %v1128 = vmul.f32 %v1108, %v1121
    %v1129 = vmul.f32 %v1108, %v1125
    %v1130 = vadd.f32 %v1102, %v1126
    %v1131 = vadd.f32 %v1103, %v1127
    %v1132 = vadd.f32 %v1104, %v1128
    %v1133 = vadd.f32 %v1105, %v1129
    %1134 = vrot.lane.b32.xlu0 %v110, 112
    %v1135 = vpop.permute.xlu0 %1134
    %1136 = vrot.lane.b32.xlu0 %v115, 112
    %v1137 = vpop.permute.xlu0 %1136
    %1138 = vrot.lane.b32.xlu0 %v111, 112
    %v1139 = vpop.permute.xlu0 %1138
    %1140 = vrot.lane.b32.xlu0 %v116, 112
    %v1141 = vpop.permute.xlu0 %1140
    %vm1142 = vcmp.lt.s32.totalorder %v51, 112
    %v1143 = vsel %vm1142, %v1139, %v1141
    %v1144 = vsel %vm1142, %v1137, %v1139
    %v1145 = vsel %vm1142, %v1135, %v1137
    %v1146 = vsel %vm1142, %v1141, %v1135
    %v1147 = vsel %vm87, 1, 0
    %v1148 = vsel %vm88, 1, 0
    %v1149 = vsel %vm89, 1, 0
    %v1150 = vsel %vm90, 1, 0
    %vm1151 = vcmp.eq.s32.totalorder %v1147, 1
    %vm1152 = vcmp.eq.s32.totalorder %v1148, 1
    %vm1153 = vcmp.eq.s32.totalorder %v1149, 1
    %vm1154 = vcmp.eq.s32.totalorder %v1150, 1
    %v1155 = vsel %vm1151, %v1145, 0.0
    %v1156 = vsel %vm1152, %v1144, 0.0
    %v1157 = vsel %vm1153, %v1143, 0.0
    %v1158 = vsel %vm1154, %v1146, 0.0
    %1159 = vset.pattern.permute.xlu0 28
    %1160 = vperm.xlu0 %1159, %v112
    %v1161 = vpop.permute.xlu0 %1160
    %v1163 = vlaneseq
    %v1164 = vshrl.u32 %v1163, 7
    %v1165 = vsub.s32 0, %v1164
    %v1166 = vrot.slane %v1155, %v1165
    %v1167 = vlaneseq
    %v1168 = vshrl.u32 %v1167, 7
    %v1169 = vsub.s32 0, %v1168
    %v1170 = vrot.slane %v1156, %v1169
    %v1171 = vlaneseq
    %v1172 = vshrl.u32 %v1171, 7
    %v1173 = vsub.s32 0, %v1172
    %v1174 = vrot.slane %v1157, %v1173
    %v1175 = vlaneseq
    %v1176 = vshrl.u32 %v1175, 7
    %v1177 = vsub.s32 0, %v1176
    %v1178 = vrot.slane %v1158, %v1177
    %v1179 = vmul.f32 %v1161, %v1166
    %v1180 = vmul.f32 %v1161, %v1170
    %v1181 = vmul.f32 %v1161, %v1174
    %v1182 = vmul.f32 %v1161, %v1178
    %v1183 = vadd.f32 %v1130, %v1179
    %v1184 = vadd.f32 %v1131, %v1180
    %v1185 = vadd.f32 %v1132, %v1181
    %v1186 = vadd.f32 %v1133, %v1182
    %1187 = vset.pattern.permute.xlu0 29
    %1188 = vperm.xlu0 %1187, %v112
    %v1189 = vpop.permute.xlu0 %1188
    %v1191 = vlaneseq
    %v1192 = vshrl.u32 %v1191, 7
    %v1193 = vsub.s32 1, %v1192
    %v1194 = vrot.slane %v1155, %v1193
    %v1195 = vlaneseq
    %v1196 = vshrl.u32 %v1195, 7
    %v1197 = vsub.s32 1, %v1196
    %v1198 = vrot.slane %v1156, %v1197
    %v1199 = vlaneseq
    %v1200 = vshrl.u32 %v1199, 7
    %v1201 = vsub.s32 1, %v1200
    %v1202 = vrot.slane %v1157, %v1201
    %v1203 = vlaneseq
    %v1204 = vshrl.u32 %v1203, 7
    %v1205 = vsub.s32 1, %v1204
    %v1206 = vrot.slane %v1158, %v1205
    %v1207 = vmul.f32 %v1189, %v1194
    %v1208 = vmul.f32 %v1189, %v1198
    %v1209 = vmul.f32 %v1189, %v1202
    %v1210 = vmul.f32 %v1189, %v1206
    %v1211 = vadd.f32 %v1183, %v1207
    %v1212 = vadd.f32 %v1184, %v1208
    %v1213 = vadd.f32 %v1185, %v1209
    %v1214 = vadd.f32 %v1186, %v1210
    %1215 = vset.pattern.permute.xlu0 30
    %1216 = vperm.xlu0 %1215, %v112
    %v1217 = vpop.permute.xlu0 %1216
    %v1219 = vlaneseq
    %v1220 = vshrl.u32 %v1219, 7
    %v1221 = vsub.s32 2, %v1220
    %v1222 = vrot.slane %v1155, %v1221
    %v1223 = vlaneseq
    %v1224 = vshrl.u32 %v1223, 7
    %v1225 = vsub.s32 2, %v1224
    %v1226 = vrot.slane %v1156, %v1225
    %v1227 = vlaneseq
    %v1228 = vshrl.u32 %v1227, 7
    %v1229 = vsub.s32 2, %v1228
    %v1230 = vrot.slane %v1157, %v1229
    %v1231 = vlaneseq
    %v1232 = vshrl.u32 %v1231, 7
    %v1233 = vsub.s32 2, %v1232
    %v1234 = vrot.slane %v1158, %v1233
    %v1235 = vmul.f32 %v1217, %v1222
    %v1236 = vmul.f32 %v1217, %v1226
    %v1237 = vmul.f32 %v1217, %v1230
    %v1238 = vmul.f32 %v1217, %v1234
    %v1239 = vadd.f32 %v1211, %v1235
    %v1240 = vadd.f32 %v1212, %v1236
    %v1241 = vadd.f32 %v1213, %v1237
    %v1242 = vadd.f32 %v1214, %v1238
    %1243 = vset.pattern.permute.xlu0 31
    %1244 = vperm.xlu0 %1243, %v112
    %v1245 = vpop.permute.xlu0 %1244
    %v1247 = vlaneseq
    %v1248 = vshrl.u32 %v1247, 7
    %v1249 = vsub.s32 3, %v1248
    %v1250 = vrot.slane %v1155, %v1249
    %v1251 = vlaneseq
    %v1252 = vshrl.u32 %v1251, 7
    %v1253 = vsub.s32 3, %v1252
    %v1254 = vrot.slane %v1156, %v1253
    %v1255 = vlaneseq
    %v1256 = vshrl.u32 %v1255, 7
    %v1257 = vsub.s32 3, %v1256
    %v1258 = vrot.slane %v1157, %v1257
    %v1259 = vlaneseq
    %v1260 = vshrl.u32 %v1259, 7
    %v1261 = vsub.s32 3, %v1260
    %v1262 = vrot.slane %v1158, %v1261
    %v1263 = vmul.f32 %v1245, %v1250
    %v1264 = vmul.f32 %v1245, %v1254
    %v1265 = vmul.f32 %v1245, %v1258
    %v1266 = vmul.f32 %v1245, %v1262
    %v1267 = vadd.f32 %v1239, %v1263
    %v1268 = vadd.f32 %v1240, %v1264
    %v1269 = vadd.f32 %v1241, %v1265
    %v1270 = vadd.f32 %v1242, %v1266
    %1271 = vrot.lane.b32.xlu0 %v110, 111
    %v1272 = vpop.permute.xlu0 %1271
    %1273 = vrot.lane.b32.xlu0 %v115, 111
    %v1274 = vpop.permute.xlu0 %1273
    %1275 = vrot.lane.b32.xlu0 %v111, 111
    %v1276 = vpop.permute.xlu0 %1275
    %1277 = vrot.lane.b32.xlu0 %v116, 111
    %v1278 = vpop.permute.xlu0 %1277
    %vm1279 = vcmp.lt.s32.totalorder %v51, 111
    %v1280 = vsel %vm1279, %v1276, %v1278
    %v1281 = vsel %vm1279, %v1274, %v1276
    %v1282 = vsel %vm1279, %v1272, %v1274
    %v1283 = vsel %vm1279, %v1278, %v1272
    %v1284 = vsel %vm95, 1, 0
    %v1285 = vsel %vm96, 1, 0
    %v1286 = vsel %vm97, 1, 0
    %v1287 = vsel %vm98, 1, 0
    %vm1288 = vcmp.eq.s32.totalorder %v1284, 1
    %vm1289 = vcmp.eq.s32.totalorder %v1285, 1
    %vm1290 = vcmp.eq.s32.totalorder %v1286, 1
    %vm1291 = vcmp.eq.s32.totalorder %v1287, 1
    %v1292 = vsel %vm1288, %v1282, 0.0
    %v1293 = vsel %vm1289, %v1281, 0.0
    %v1294 = vsel %vm1290, %v1280, 0.0
    %v1295 = vsel %vm1291, %v1283, 0.0
    %1296 = vset.pattern.permute.xlu0 32
    %1297 = vperm.xlu0 %1296, %v112
    %v1298 = vpop.permute.xlu0 %1297
    %v1300 = vlaneseq
    %v1301 = vshrl.u32 %v1300, 7
    %v1302 = vsub.s32 0, %v1301
    %v1303 = vrot.slane %v1292, %v1302
    %v1304 = vlaneseq
    %v1305 = vshrl.u32 %v1304, 7
    %v1306 = vsub.s32 0, %v1305
    %v1307 = vrot.slane %v1293, %v1306
    %v1308 = vlaneseq
    %v1309 = vshrl.u32 %v1308, 7
    %v1310 = vsub.s32 0, %v1309
    %v1311 = vrot.slane %v1294, %v1310
    %v1312 = vlaneseq
    %v1313 = vshrl.u32 %v1312, 7
    %v1314 = vsub.s32 0, %v1313
    %v1315 = vrot.slane %v1295, %v1314
    %v1316 = vmul.f32 %v1298, %v1303
    %v1317 = vmul.f32 %v1298, %v1307
    %v1318 = vmul.f32 %v1298, %v1311
    %v1319 = vmul.f32 %v1298, %v1315
    %v1320 = vadd.f32 %v1267, %v1316
    %v1321 = vadd.f32 %v1268, %v1317
    %v1322 = vadd.f32 %v1269, %v1318
    %v1323 = vadd.f32 %v1270, %v1319
    %1324 = vset.pattern.permute.xlu0 33
    %1325 = vperm.xlu0 %1324, %v112
    %v1326 = vpop.permute.xlu0 %1325
    %v1328 = vlaneseq
    %v1329 = vshrl.u32 %v1328, 7
    %v1330 = vsub.s32 1, %v1329
    %v1331 = vrot.slane %v1292, %v1330
    %v1332 = vlaneseq
    %v1333 = vshrl.u32 %v1332, 7
    %v1334 = vsub.s32 1, %v1333
    %v1335 = vrot.slane %v1293, %v1334
    %v1336 = vlaneseq
    %v1337 = vshrl.u32 %v1336, 7
    %v1338 = vsub.s32 1, %v1337
    %v1339 = vrot.slane %v1294, %v1338
    %v1340 = vlaneseq
    %v1341 = vshrl.u32 %v1340, 7
    %v1342 = vsub.s32 1, %v1341
    %v1343 = vrot.slane %v1295, %v1342
    %v1344 = vmul.f32 %v1326, %v1331
    %v1345 = vmul.f32 %v1326, %v1335
    %v1346 = vmul.f32 %v1326, %v1339
    %v1347 = vmul.f32 %v1326, %v1343
    %v1348 = vadd.f32 %v1320, %v1344
    %v1349 = vadd.f32 %v1321, %v1345
    %v1350 = vadd.f32 %v1322, %v1346
    %v1351 = vadd.f32 %v1323, %v1347
    %1352 = vset.pattern.permute.xlu0 34
    %1353 = vperm.xlu0 %1352, %v112
    %v1354 = vpop.permute.xlu0 %1353
    %v1356 = vlaneseq
    %v1357 = vshrl.u32 %v1356, 7
    %v1358 = vsub.s32 2, %v1357
    %v1359 = vrot.slane %v1292, %v1358
    %v1360 = vlaneseq
    %v1361 = vshrl.u32 %v1360, 7
    %v1362 = vsub.s32 2, %v1361
    %v1363 = vrot.slane %v1293, %v1362
    %v1364 = vlaneseq
    %v1365 = vshrl.u32 %v1364, 7
    %v1366 = vsub.s32 2, %v1365
    %v1367 = vrot.slane %v1294, %v1366
    %v1368 = vlaneseq
    %v1369 = vshrl.u32 %v1368, 7
    %v1370 = vsub.s32 2, %v1369
    %v1371 = vrot.slane %v1295, %v1370
    %v1372 = vmul.f32 %v1354, %v1359
    %v1373 = vmul.f32 %v1354, %v1363
    %v1374 = vmul.f32 %v1354, %v1367
    %v1375 = vmul.f32 %v1354, %v1371
    %v1376 = vadd.f32 %v1348, %v1372
    %v1377 = vadd.f32 %v1349, %v1373
    %v1378 = vadd.f32 %v1350, %v1374
    %v1379 = vadd.f32 %v1351, %v1375
    %1380 = vset.pattern.permute.xlu0 35
    %1381 = vperm.xlu0 %1380, %v112
    %v1382 = vpop.permute.xlu0 %1381
    %v1384 = vlaneseq
    %v1385 = vshrl.u32 %v1384, 7
    %v1386 = vsub.s32 3, %v1385
    %v1387 = vrot.slane %v1292, %v1386
    %v1388 = vlaneseq
    %v1389 = vshrl.u32 %v1388, 7
    %v1390 = vsub.s32 3, %v1389
    %v1391 = vrot.slane %v1293, %v1390
    %v1392 = vlaneseq
    %v1393 = vshrl.u32 %v1392, 7
    %v1394 = vsub.s32 3, %v1393
    %v1395 = vrot.slane %v1294, %v1394
    %v1396 = vlaneseq
    %v1397 = vshrl.u32 %v1396, 7
    %v1398 = vsub.s32 3, %v1397
    %v1399 = vrot.slane %v1295, %v1398
    %v1400 = vmul.f32 %v1382, %v1387
    %v1401 = vmul.f32 %v1382, %v1391
    %v1402 = vmul.f32 %v1382, %v1395
    %v1403 = vmul.f32 %v1382, %v1399
    %v1404 = vadd.f32 %v1376, %v1400
    %v1405 = vadd.f32 %v1377, %v1401
    %v1406 = vadd.f32 %v1378, %v1402
    %v1407 = vadd.f32 %v1379, %v1403
    %v1408 = vstv %s44
    %v1409 = vadd.f32 %v1404, %v1408
    %v1410 = vadd.f32 %v1405, %v1408
    %v1411 = vadd.f32 %v1406, %v1408
    %v1412 = vadd.f32 %v1407, %v1408
    %vm1413 = vcmp.gt.f32.partialorder %v1409, 0.0
    %vm1414 = vcmp.gt.f32.partialorder %v1410, 0.0
    %vm1415 = vcmp.gt.f32.partialorder %v1411, 0.0
    %vm1416 = vcmp.gt.f32.partialorder %v1412, 0.0
    %v1417 = vstv %s45
    %v1418 = vmul.f32 %v1417, %v1409
    %v1419 = vmul.f32 %v1417, %v1410
    %v1420 = vmul.f32 %v1417, %v1411
    %v1421 = vmul.f32 %v1417, %v1412
    %v1422 = vsel %vm1413, %v1409, %v1418
    %v1423 = vsel %vm1414, %v1410, %v1419
    %v1424 = vsel %vm1415, %v1411, %v1420
    %v1425 = vsel %vm1416, %v1412, %v1421
    %v1426 = vstv %s46
    %v1427 = vadd.f32 %v1422, %v1426
    %v1428 = vadd.f32 %v1423, %v1426
    %v1429 = vadd.f32 %v1424, %v1426
    %v1430 = vadd.f32 %v1425, %v1426
    %v1431 = vld [vmem:[%s3] sm:$0xf]
    %1432 = vrot.lane.b32.xlu0 %v1427, 17
    %v1433 = vpop.permute.xlu0 %1432
    %1434 = vrot.lane.b32.xlu0 %v1428, 17
    %v1435 = vpop.permute.xlu0 %1434
    %1436 = vrot.lane.b32.xlu0 %v1429, 17
    %v1437 = vpop.permute.xlu0 %1436
    %1438 = vrot.lane.b32.xlu0 %v1430, 17
    %v1439 = vpop.permute.xlu0 %1438
    %v1440 = vsel %vm127, %v1437, %v1439
    %v1441 = vsel %vm127, %v1435, %v1437
    %v1442 = vsel %vm127, %v1433, %v1435
    %v1443 = vsel %vm127, %v1439, %v1433
    %v1444 = vsel %vm136, %v1443, 0.0
    %v1445 = vsel %vm137, %v1442, 0.0
    %v1446 = vsel %vm138, %v1441, 0.0
    %v1447 = vsel %vm139, %v1440, 0.0
    %1449 = vset.pattern.permute.xlu0 0
    %1450 = vperm.xlu0 %1449, %v1431
    %v1451 = vpop.permute.xlu0 %1450
    %v1453 = vlaneseq
    %v1454 = vshrl.u32 %v1453, 7
    %v1455 = vsub.s32 0, %v1454
    %v1456 = vrot.slane %v1444, %v1455
    %v1457 = vlaneseq
    %v1458 = vshrl.u32 %v1457, 7
    %v1459 = vsub.s32 0, %v1458
    %v1460 = vrot.slane %v1445, %v1459
    %v1461 = vlaneseq
    %v1462 = vshrl.u32 %v1461, 7
    %v1463 = vsub.s32 0, %v1462
    %v1464 = vrot.slane %v1446, %v1463
    %v1465 = vlaneseq
    %v1466 = vshrl.u32 %v1465, 7
    %v1467 = vsub.s32 0, %v1466
    %v1468 = vrot.slane %v1447, %v1467
    %v1469 = vmul.f32 %v1451, %v1456
    %v1470 = vmul.f32 %v1451, %v1460
    %v1471 = vmul.f32 %v1451, %v1464
    %v1472 = vmul.f32 %v1451, %v1468
    %v1473 = vadd.f32 %v1469, 0.0
    %v1474 = vadd.f32 %v1470, 0.0
    %v1475 = vadd.f32 %v1471, 0.0
    %v1476 = vadd.f32 %v1472, 0.0
    %1477 = vset.pattern.permute.xlu0 1
    %1478 = vperm.xlu0 %1477, %v1431
    %v1479 = vpop.permute.xlu0 %1478
    %v1481 = vlaneseq
    %v1482 = vshrl.u32 %v1481, 7
    %v1483 = vsub.s32 1, %v1482
    %v1484 = vrot.slane %v1444, %v1483
    %v1485 = vlaneseq
    %v1486 = vshrl.u32 %v1485, 7
    %v1487 = vsub.s32 1, %v1486
    %v1488 = vrot.slane %v1445, %v1487
    %v1489 = vlaneseq
    %v1490 = vshrl.u32 %v1489, 7
    %v1491 = vsub.s32 1, %v1490
    %v1492 = vrot.slane %v1446, %v1491
    %v1493 = vlaneseq
    %v1494 = vshrl.u32 %v1493, 7
    %v1495 = vsub.s32 1, %v1494
    %v1496 = vrot.slane %v1447, %v1495
    %v1497 = vmul.f32 %v1479, %v1484
    %v1498 = vmul.f32 %v1479, %v1488
    %v1499 = vmul.f32 %v1479, %v1492
    %v1500 = vmul.f32 %v1479, %v1496
    %v1501 = vadd.f32 %v1473, %v1497
    %v1502 = vadd.f32 %v1474, %v1498
    %v1503 = vadd.f32 %v1475, %v1499
    %v1504 = vadd.f32 %v1476, %v1500
    %1505 = vset.pattern.permute.xlu0 2
    %1506 = vperm.xlu0 %1505, %v1431
    %v1507 = vpop.permute.xlu0 %1506
    %v1509 = vlaneseq
    %v1510 = vshrl.u32 %v1509, 7
    %v1511 = vsub.s32 2, %v1510
    %v1512 = vrot.slane %v1444, %v1511
    %v1513 = vlaneseq
    %v1514 = vshrl.u32 %v1513, 7
    %v1515 = vsub.s32 2, %v1514
    %v1516 = vrot.slane %v1445, %v1515
    %v1517 = vlaneseq
    %v1518 = vshrl.u32 %v1517, 7
    %v1519 = vsub.s32 2, %v1518
    %v1520 = vrot.slane %v1446, %v1519
    %v1521 = vlaneseq
    %v1522 = vshrl.u32 %v1521, 7
    %v1523 = vsub.s32 2, %v1522
    %v1524 = vrot.slane %v1447, %v1523
    %v1525 = vmul.f32 %v1507, %v1512
    %v1526 = vmul.f32 %v1507, %v1516
    %v1527 = vmul.f32 %v1507, %v1520
    %v1528 = vmul.f32 %v1507, %v1524
    %v1529 = vadd.f32 %v1501, %v1525
    %v1530 = vadd.f32 %v1502, %v1526
    %v1531 = vadd.f32 %v1503, %v1527
    %v1532 = vadd.f32 %v1504, %v1528
    %1533 = vset.pattern.permute.xlu0 3
    %1534 = vperm.xlu0 %1533, %v1431
    %v1535 = vpop.permute.xlu0 %1534
    %v1537 = vlaneseq
    %v1538 = vshrl.u32 %v1537, 7
    %v1539 = vsub.s32 3, %v1538
    %v1540 = vrot.slane %v1444, %v1539
    %v1541 = vlaneseq
    %v1542 = vshrl.u32 %v1541, 7
    %v1543 = vsub.s32 3, %v1542
    %v1544 = vrot.slane %v1445, %v1543
    %v1545 = vlaneseq
    %v1546 = vshrl.u32 %v1545, 7
    %v1547 = vsub.s32 3, %v1546
    %v1548 = vrot.slane %v1446, %v1547
    %v1549 = vlaneseq
    %v1550 = vshrl.u32 %v1549, 7
    %v1551 = vsub.s32 3, %v1550
    %v1552 = vrot.slane %v1447, %v1551
    %v1553 = vmul.f32 %v1535, %v1540
    %v1554 = vmul.f32 %v1535, %v1544
    %v1555 = vmul.f32 %v1535, %v1548
    %v1556 = vmul.f32 %v1535, %v1552
    %v1557 = vadd.f32 %v1529, %v1553
    %v1558 = vadd.f32 %v1530, %v1554
    %v1559 = vadd.f32 %v1531, %v1555
    %v1560 = vadd.f32 %v1532, %v1556
    %1561 = vrot.lane.b32.xlu0 %v1427, 16
    %v1562 = vpop.permute.xlu0 %1561
    %1563 = vrot.lane.b32.xlu0 %v1428, 16
    %v1564 = vpop.permute.xlu0 %1563
    %1565 = vrot.lane.b32.xlu0 %v1429, 16
    %v1566 = vpop.permute.xlu0 %1565
    %1567 = vrot.lane.b32.xlu0 %v1430, 16
    %v1568 = vpop.permute.xlu0 %1567
    %v1569 = vsel %vm265, %v1566, %v1568
    %v1570 = vsel %vm265, %v1564, %v1566
    %v1571 = vsel %vm265, %v1562, %v1564
    %v1572 = vsel %vm265, %v1568, %v1562
    %v1573 = vsel %vm274, %v1572, 0.0
    %v1574 = vsel %vm275, %v1571, 0.0
    %v1575 = vsel %vm276, %v1570, 0.0
    %v1576 = vsel %vm277, %v1569, 0.0
    %1577 = vset.pattern.permute.xlu0 4
    %1578 = vperm.xlu0 %1577, %v1431
    %v1579 = vpop.permute.xlu0 %1578
    %v1581 = vlaneseq
    %v1582 = vshrl.u32 %v1581, 7
    %v1583 = vsub.s32 0, %v1582
    %v1584 = vrot.slane %v1573, %v1583
    %v1585 = vlaneseq
    %v1586 = vshrl.u32 %v1585, 7
    %v1587 = vsub.s32 0, %v1586
    %v1588 = vrot.slane %v1574, %v1587
    %v1589 = vlaneseq
    %v1590 = vshrl.u32 %v1589, 7
    %v1591 = vsub.s32 0, %v1590
    %v1592 = vrot.slane %v1575, %v1591
    %v1593 = vlaneseq
    %v1594 = vshrl.u32 %v1593, 7
    %v1595 = vsub.s32 0, %v1594
    %v1596 = vrot.slane %v1576, %v1595
    %v1597 = vmul.f32 %v1579, %v1584
    %v1598 = vmul.f32 %v1579, %v1588
    %v1599 = vmul.f32 %v1579, %v1592
    %v1600 = vmul.f32 %v1579, %v1596
    %v1601 = vadd.f32 %v1557, %v1597
    %v1602 = vadd.f32 %v1558, %v1598
    %v1603 = vadd.f32 %v1559, %v1599
    %v1604 = vadd.f32 %v1560, %v1600
    %1605 = vset.pattern.permute.xlu0 5
    %1606 = vperm.xlu0 %1605, %v1431
    %v1607 = vpop.permute.xlu0 %1606
    %v1609 = vlaneseq
    %v1610 = vshrl.u32 %v1609, 7
    %v1611 = vsub.s32 1, %v1610
    %v1612 = vrot.slane %v1573, %v1611
    %v1613 = vlaneseq
    %v1614 = vshrl.u32 %v1613, 7
    %v1615 = vsub.s32 1, %v1614
    %v1616 = vrot.slane %v1574, %v1615
    %v1617 = vlaneseq
    %v1618 = vshrl.u32 %v1617, 7
    %v1619 = vsub.s32 1, %v1618
    %v1620 = vrot.slane %v1575, %v1619
    %v1621 = vlaneseq
    %v1622 = vshrl.u32 %v1621, 7
    %v1623 = vsub.s32 1, %v1622
    %v1624 = vrot.slane %v1576, %v1623
    %v1625 = vmul.f32 %v1607, %v1612
    %v1626 = vmul.f32 %v1607, %v1616
    %v1627 = vmul.f32 %v1607, %v1620
    %v1628 = vmul.f32 %v1607, %v1624
    %v1629 = vadd.f32 %v1601, %v1625
    %v1630 = vadd.f32 %v1602, %v1626
    %v1631 = vadd.f32 %v1603, %v1627
    %v1632 = vadd.f32 %v1604, %v1628
    %1633 = vset.pattern.permute.xlu0 6
    %1634 = vperm.xlu0 %1633, %v1431
    %v1635 = vpop.permute.xlu0 %1634
    %v1637 = vlaneseq
    %v1638 = vshrl.u32 %v1637, 7
    %v1639 = vsub.s32 2, %v1638
    %v1640 = vrot.slane %v1573, %v1639
    %v1641 = vlaneseq
    %v1642 = vshrl.u32 %v1641, 7
    %v1643 = vsub.s32 2, %v1642
    %v1644 = vrot.slane %v1574, %v1643
    %v1645 = vlaneseq
    %v1646 = vshrl.u32 %v1645, 7
    %v1647 = vsub.s32 2, %v1646
    %v1648 = vrot.slane %v1575, %v1647
    %v1649 = vlaneseq
    %v1650 = vshrl.u32 %v1649, 7
    %v1651 = vsub.s32 2, %v1650
    %v1652 = vrot.slane %v1576, %v1651
    %v1653 = vmul.f32 %v1635, %v1640
    %v1654 = vmul.f32 %v1635, %v1644
    %v1655 = vmul.f32 %v1635, %v1648
    %v1656 = vmul.f32 %v1635, %v1652
    %v1657 = vadd.f32 %v1629, %v1653
    %v1658 = vadd.f32 %v1630, %v1654
    %v1659 = vadd.f32 %v1631, %v1655
    %v1660 = vadd.f32 %v1632, %v1656
    %1661 = vset.pattern.permute.xlu0 7
    %1662 = vperm.xlu0 %1661, %v1431
    %v1663 = vpop.permute.xlu0 %1662
    %v1665 = vlaneseq
    %v1666 = vshrl.u32 %v1665, 7
    %v1667 = vsub.s32 3, %v1666
    %v1668 = vrot.slane %v1573, %v1667
    %v1669 = vlaneseq
    %v1670 = vshrl.u32 %v1669, 7
    %v1671 = vsub.s32 3, %v1670
    %v1672 = vrot.slane %v1574, %v1671
    %v1673 = vlaneseq
    %v1674 = vshrl.u32 %v1673, 7
    %v1675 = vsub.s32 3, %v1674
    %v1676 = vrot.slane %v1575, %v1675
    %v1677 = vlaneseq
    %v1678 = vshrl.u32 %v1677, 7
    %v1679 = vsub.s32 3, %v1678
    %v1680 = vrot.slane %v1576, %v1679
    %v1681 = vmul.f32 %v1663, %v1668
    %v1682 = vmul.f32 %v1663, %v1672
    %v1683 = vmul.f32 %v1663, %v1676
    %v1684 = vmul.f32 %v1663, %v1680
    %v1685 = vadd.f32 %v1657, %v1681
    %v1686 = vadd.f32 %v1658, %v1682
    %v1687 = vadd.f32 %v1659, %v1683
    %v1688 = vadd.f32 %v1660, %v1684
    %1689 = vrot.lane.b32.xlu0 %v1427, 15
    %v1690 = vpop.permute.xlu0 %1689
    %1691 = vrot.lane.b32.xlu0 %v1428, 15
    %v1692 = vpop.permute.xlu0 %1691
    %1693 = vrot.lane.b32.xlu0 %v1429, 15
    %v1694 = vpop.permute.xlu0 %1693
    %1695 = vrot.lane.b32.xlu0 %v1430, 15
    %v1696 = vpop.permute.xlu0 %1695
    %v1697 = vsel %vm402, %v1694, %v1696
    %v1698 = vsel %vm402, %v1692, %v1694
    %v1699 = vsel %vm402, %v1690, %v1692
    %v1700 = vsel %vm402, %v1696, %v1690
    %v1701 = vsel %vm411, %v1700, 0.0
    %v1702 = vsel %vm412, %v1699, 0.0
    %v1703 = vsel %vm413, %v1698, 0.0
    %v1704 = vsel %vm414, %v1697, 0.0
    %1705 = vset.pattern.permute.xlu0 8
    %1706 = vperm.xlu0 %1705, %v1431
    %v1707 = vpop.permute.xlu0 %1706
    %v1709 = vlaneseq
    %v1710 = vshrl.u32 %v1709, 7
    %v1711 = vsub.s32 0, %v1710
    %v1712 = vrot.slane %v1701, %v1711
    %v1713 = vlaneseq
    %v1714 = vshrl.u32 %v1713, 7
    %v1715 = vsub.s32 0, %v1714
    %v1716 = vrot.slane %v1702, %v1715
    %v1717 = vlaneseq
    %v1718 = vshrl.u32 %v1717, 7
    %v1719 = vsub.s32 0, %v1718
    %v1720 = vrot.slane %v1703, %v1719
    %v1721 = vlaneseq
    %v1722 = vshrl.u32 %v1721, 7
    %v1723 = vsub.s32 0, %v1722
    %v1724 = vrot.slane %v1704, %v1723
    %v1725 = vmul.f32 %v1707, %v1712
    %v1726 = vmul.f32 %v1707, %v1716
    %v1727 = vmul.f32 %v1707, %v1720
    %v1728 = vmul.f32 %v1707, %v1724
    %v1729 = vadd.f32 %v1685, %v1725
    %v1730 = vadd.f32 %v1686, %v1726
    %v1731 = vadd.f32 %v1687, %v1727
    %v1732 = vadd.f32 %v1688, %v1728
    %1733 = vset.pattern.permute.xlu0 9
    %1734 = vperm.xlu0 %1733, %v1431
    %v1735 = vpop.permute.xlu0 %1734
    %v1737 = vlaneseq
    %v1738 = vshrl.u32 %v1737, 7
    %v1739 = vsub.s32 1, %v1738
    %v1740 = vrot.slane %v1701, %v1739
    %v1741 = vlaneseq
    %v1742 = vshrl.u32 %v1741, 7
    %v1743 = vsub.s32 1, %v1742
    %v1744 = vrot.slane %v1702, %v1743
    %v1745 = vlaneseq
    %v1746 = vshrl.u32 %v1745, 7
    %v1747 = vsub.s32 1, %v1746
    %v1748 = vrot.slane %v1703, %v1747
    %v1749 = vlaneseq
    %v1750 = vshrl.u32 %v1749, 7
    %v1751 = vsub.s32 1, %v1750
    %v1752 = vrot.slane %v1704, %v1751
    %v1753 = vmul.f32 %v1735, %v1740
    %v1754 = vmul.f32 %v1735, %v1744
    %v1755 = vmul.f32 %v1735, %v1748
    %v1756 = vmul.f32 %v1735, %v1752
    %v1757 = vadd.f32 %v1729, %v1753
    %v1758 = vadd.f32 %v1730, %v1754
    %v1759 = vadd.f32 %v1731, %v1755
    %v1760 = vadd.f32 %v1732, %v1756
    %1761 = vset.pattern.permute.xlu0 10
    %1762 = vperm.xlu0 %1761, %v1431
    %v1763 = vpop.permute.xlu0 %1762
    %v1765 = vlaneseq
    %v1766 = vshrl.u32 %v1765, 7
    %v1767 = vsub.s32 2, %v1766
    %v1768 = vrot.slane %v1701, %v1767
    %v1769 = vlaneseq
    %v1770 = vshrl.u32 %v1769, 7
    %v1771 = vsub.s32 2, %v1770
    %v1772 = vrot.slane %v1702, %v1771
    %v1773 = vlaneseq
    %v1774 = vshrl.u32 %v1773, 7
    %v1775 = vsub.s32 2, %v1774
    %v1776 = vrot.slane %v1703, %v1775
    %v1777 = vlaneseq
    %v1778 = vshrl.u32 %v1777, 7
    %v1779 = vsub.s32 2, %v1778
    %v1780 = vrot.slane %v1704, %v1779
    %v1781 = vmul.f32 %v1763, %v1768
    %v1782 = vmul.f32 %v1763, %v1772
    %v1783 = vmul.f32 %v1763, %v1776
    %v1784 = vmul.f32 %v1763, %v1780
    %v1785 = vadd.f32 %v1757, %v1781
    %v1786 = vadd.f32 %v1758, %v1782
    %v1787 = vadd.f32 %v1759, %v1783
    %v1788 = vadd.f32 %v1760, %v1784
    %1789 = vset.pattern.permute.xlu0 11
    %1790 = vperm.xlu0 %1789, %v1431
    %v1791 = vpop.permute.xlu0 %1790
    %v1793 = vlaneseq
    %v1794 = vshrl.u32 %v1793, 7
    %v1795 = vsub.s32 3, %v1794
    %v1796 = vrot.slane %v1701, %v1795
    %v1797 = vlaneseq
    %v1798 = vshrl.u32 %v1797, 7
    %v1799 = vsub.s32 3, %v1798
    %v1800 = vrot.slane %v1702, %v1799
    %v1801 = vlaneseq
    %v1802 = vshrl.u32 %v1801, 7
    %v1803 = vsub.s32 3, %v1802
    %v1804 = vrot.slane %v1703, %v1803
    %v1805 = vlaneseq
    %v1806 = vshrl.u32 %v1805, 7
    %v1807 = vsub.s32 3, %v1806
    %v1808 = vrot.slane %v1704, %v1807
    %v1809 = vmul.f32 %v1791, %v1796
    %v1810 = vmul.f32 %v1791, %v1800
    %v1811 = vmul.f32 %v1791, %v1804
    %v1812 = vmul.f32 %v1791, %v1808
    %v1813 = vadd.f32 %v1785, %v1809
    %v1814 = vadd.f32 %v1786, %v1810
    %v1815 = vadd.f32 %v1787, %v1811
    %v1816 = vadd.f32 %v1788, %v1812
    %1817 = vrot.lane.b32.xlu0 %v1427, 1
    %v1818 = vpop.permute.xlu0 %1817
    %1819 = vrot.lane.b32.xlu0 %v1428, 1
    %v1820 = vpop.permute.xlu0 %1819
    %1821 = vrot.lane.b32.xlu0 %v1429, 1
    %v1822 = vpop.permute.xlu0 %1821
    %1823 = vrot.lane.b32.xlu0 %v1430, 1
    %v1824 = vpop.permute.xlu0 %1823
    %v1825 = vsel %vm539, %v1822, %v1824
    %v1826 = vsel %vm539, %v1820, %v1822
    %v1827 = vsel %vm539, %v1818, %v1820
    %v1828 = vsel %vm539, %v1824, %v1818
    %v1829 = vsel %vm548, %v1828, 0.0
    %v1830 = vsel %vm549, %v1827, 0.0
    %v1831 = vsel %vm550, %v1826, 0.0
    %v1832 = vsel %vm551, %v1825, 0.0
    %1833 = vset.pattern.permute.xlu0 12
    %1834 = vperm.xlu0 %1833, %v1431
    %v1835 = vpop.permute.xlu0 %1834
    %v1837 = vlaneseq
    %v1838 = vshrl.u32 %v1837, 7
    %v1839 = vsub.s32 0, %v1838
    %v1840 = vrot.slane %v1829, %v1839
    %v1841 = vlaneseq
    %v1842 = vshrl.u32 %v1841, 7
    %v1843 = vsub.s32 0, %v1842
    %v1844 = vrot.slane %v1830, %v1843
    %v1845 = vlaneseq
    %v1846 = vshrl.u32 %v1845, 7
    %v1847 = vsub.s32 0, %v1846
    %v1848 = vrot.slane %v1831, %v1847
    %v1849 = vlaneseq
    %v1850 = vshrl.u32 %v1849, 7
    %v1851 = vsub.s32 0, %v1850
    %v1852 = vrot.slane %v1832, %v1851
    %v1853 = vmul.f32 %v1835, %v1840
    %v1854 = vmul.f32 %v1835, %v1844
    %v1855 = vmul.f32 %v1835, %v1848
    %v1856 = vmul.f32 %v1835, %v1852
    %v1857 = vadd.f32 %v1813, %v1853
    %v1858 = vadd.f32 %v1814, %v1854
    %v1859 = vadd.f32 %v1815, %v1855
    %v1860 = vadd.f32 %v1816, %v1856
    %1861 = vset.pattern.permute.xlu0 13
    %1862 = vperm.xlu0 %1861, %v1431
    %v1863 = vpop.permute.xlu0 %1862
    %v1865 = vlaneseq
    %v1866 = vshrl.u32 %v1865, 7
    %v1867 = vsub.s32 1, %v1866
    %v1868 = vrot.slane %v1829, %v1867
    %v1869 = vlaneseq
    %v1870 = vshrl.u32 %v1869, 7
    %v1871 = vsub.s32 1, %v1870
    %v1872 = vrot.slane %v1830, %v1871
    %v1873 = vlaneseq
    %v1874 = vshrl.u32 %v1873, 7
    %v1875 = vsub.s32 1, %v1874
    %v1876 = vrot.slane %v1831, %v1875
    %v1877 = vlaneseq
    %v1878 = vshrl.u32 %v1877, 7
    %v1879 = vsub.s32 1, %v1878
    %v1880 = vrot.slane %v1832, %v1879
    %v1881 = vmul.f32 %v1863, %v1868
    %v1882 = vmul.f32 %v1863, %v1872
    %v1883 = vmul.f32 %v1863, %v1876
    %v1884 = vmul.f32 %v1863, %v1880
    %v1885 = vadd.f32 %v1857, %v1881
    %v1886 = vadd.f32 %v1858, %v1882
    %v1887 = vadd.f32 %v1859, %v1883
    %v1888 = vadd.f32 %v1860, %v1884
    %1889 = vset.pattern.permute.xlu0 14
    %1890 = vperm.xlu0 %1889, %v1431
    %v1891 = vpop.permute.xlu0 %1890
    %v1893 = vlaneseq
    %v1894 = vshrl.u32 %v1893, 7
    %v1895 = vsub.s32 2, %v1894
    %v1896 = vrot.slane %v1829, %v1895
    %v1897 = vlaneseq
    %v1898 = vshrl.u32 %v1897, 7
    %v1899 = vsub.s32 2, %v1898
    %v1900 = vrot.slane %v1830, %v1899
    %v1901 = vlaneseq
    %v1902 = vshrl.u32 %v1901, 7
    %v1903 = vsub.s32 2, %v1902
    %v1904 = vrot.slane %v1831, %v1903
    %v1905 = vlaneseq
    %v1906 = vshrl.u32 %v1905, 7
    %v1907 = vsub.s32 2, %v1906
    %v1908 = vrot.slane %v1832, %v1907
    %v1909 = vmul.f32 %v1891, %v1896
    %v1910 = vmul.f32 %v1891, %v1900
    %v1911 = vmul.f32 %v1891, %v1904
    %v1912 = vmul.f32 %v1891, %v1908
    %v1913 = vadd.f32 %v1885, %v1909
    %v1914 = vadd.f32 %v1886, %v1910
    %v1915 = vadd.f32 %v1887, %v1911
    %v1916 = vadd.f32 %v1888, %v1912
    %1917 = vset.pattern.permute.xlu0 15
    %1918 = vperm.xlu0 %1917, %v1431
    %v1919 = vpop.permute.xlu0 %1918
    %v1921 = vlaneseq
    %v1922 = vshrl.u32 %v1921, 7
    %v1923 = vsub.s32 3, %v1922
    %v1924 = vrot.slane %v1829, %v1923
    %v1925 = vlaneseq
    %v1926 = vshrl.u32 %v1925, 7
    %v1927 = vsub.s32 3, %v1926
    %v1928 = vrot.slane %v1830, %v1927
    %v1929 = vlaneseq
    %v1930 = vshrl.u32 %v1929, 7
    %v1931 = vsub.s32 3, %v1930
    %v1932 = vrot.slane %v1831, %v1931
    %v1933 = vlaneseq
    %v1934 = vshrl.u32 %v1933, 7
    %v1935 = vsub.s32 3, %v1934
    %v1936 = vrot.slane %v1832, %v1935
    %v1937 = vmul.f32 %v1919, %v1924
    %v1938 = vmul.f32 %v1919, %v1928
    %v1939 = vmul.f32 %v1919, %v1932
    %v1940 = vmul.f32 %v1919, %v1936
    %v1941 = vadd.f32 %v1913, %v1937
    %v1942 = vadd.f32 %v1914, %v1938
    %v1943 = vadd.f32 %v1915, %v1939
    %v1944 = vadd.f32 %v1916, %v1940
    %1945 = vset.pattern.permute.xlu0 16
    %1946 = vperm.xlu0 %1945, %v1431
    %v1947 = vpop.permute.xlu0 %1946
    %v1949 = vlaneseq
    %v1950 = vshrl.u32 %v1949, 7
    %v1951 = vsub.s32 0, %v1950
    %v1952 = vrot.slane %v1427, %v1951
    %v1953 = vlaneseq
    %v1954 = vshrl.u32 %v1953, 7
    %v1955 = vsub.s32 0, %v1954
    %v1956 = vrot.slane %v1428, %v1955
    %v1957 = vlaneseq
    %v1958 = vshrl.u32 %v1957, 7
    %v1959 = vsub.s32 0, %v1958
    %v1960 = vrot.slane %v1429, %v1959
    %v1961 = vlaneseq
    %v1962 = vshrl.u32 %v1961, 7
    %v1963 = vsub.s32 0, %v1962
    %v1964 = vrot.slane %v1430, %v1963
    %v1965 = vmul.f32 %v1947, %v1952
    %v1966 = vmul.f32 %v1947, %v1956
    %v1967 = vmul.f32 %v1947, %v1960
    %v1968 = vmul.f32 %v1947, %v1964
    %v1969 = vadd.f32 %v1941, %v1965
    %v1970 = vadd.f32 %v1942, %v1966
    %v1971 = vadd.f32 %v1943, %v1967
    %v1972 = vadd.f32 %v1944, %v1968
    %1973 = vset.pattern.permute.xlu0 17
    %1974 = vperm.xlu0 %1973, %v1431
    %v1975 = vpop.permute.xlu0 %1974
    %v1977 = vlaneseq
    %v1978 = vshrl.u32 %v1977, 7
    %v1979 = vsub.s32 1, %v1978
    %v1980 = vrot.slane %v1427, %v1979
    %v1981 = vlaneseq
    %v1982 = vshrl.u32 %v1981, 7
    %v1983 = vsub.s32 1, %v1982
    %v1984 = vrot.slane %v1428, %v1983
    %v1985 = vlaneseq
    %v1986 = vshrl.u32 %v1985, 7
    %v1987 = vsub.s32 1, %v1986
    %v1988 = vrot.slane %v1429, %v1987
    %v1989 = vlaneseq
    %v1990 = vshrl.u32 %v1989, 7
    %v1991 = vsub.s32 1, %v1990
    %v1992 = vrot.slane %v1430, %v1991
    %v1993 = vmul.f32 %v1975, %v1980
    %v1994 = vmul.f32 %v1975, %v1984
    %v1995 = vmul.f32 %v1975, %v1988
    %v1996 = vmul.f32 %v1975, %v1992
    %v1997 = vadd.f32 %v1969, %v1993
    %v1998 = vadd.f32 %v1970, %v1994
    %v1999 = vadd.f32 %v1971, %v1995
    %v2000 = vadd.f32 %v1972, %v1996
    %2001 = vset.pattern.permute.xlu0 18
    %2002 = vperm.xlu0 %2001, %v1431
    %v2003 = vpop.permute.xlu0 %2002
    %v2005 = vlaneseq
    %v2006 = vshrl.u32 %v2005, 7
    %v2007 = vsub.s32 2, %v2006
    %v2008 = vrot.slane %v1427, %v2007
    %v2009 = vlaneseq
    %v2010 = vshrl.u32 %v2009, 7
    %v2011 = vsub.s32 2, %v2010
    %v2012 = vrot.slane %v1428, %v2011
    %v2013 = vlaneseq
    %v2014 = vshrl.u32 %v2013, 7
    %v2015 = vsub.s32 2, %v2014
    %v2016 = vrot.slane %v1429, %v2015
    %v2017 = vlaneseq
    %v2018 = vshrl.u32 %v2017, 7
    %v2019 = vsub.s32 2, %v2018
    %v2020 = vrot.slane %v1430, %v2019
    %v2021 = vmul.f32 %v2003, %v2008
    %v2022 = vmul.f32 %v2003, %v2012
    %v2023 = vmul.f32 %v2003, %v2016
    %v2024 = vmul.f32 %v2003, %v2020
    %v2025 = vadd.f32 %v1997, %v2021
    %v2026 = vadd.f32 %v1998, %v2022
    %v2027 = vadd.f32 %v1999, %v2023
    %v2028 = vadd.f32 %v2000, %v2024
    %2029 = vset.pattern.permute.xlu0 19
    %2030 = vperm.xlu0 %2029, %v1431
    %v2031 = vpop.permute.xlu0 %2030
    %v2033 = vlaneseq
    %v2034 = vshrl.u32 %v2033, 7
    %v2035 = vsub.s32 3, %v2034
    %v2036 = vrot.slane %v1427, %v2035
    %v2037 = vlaneseq
    %v2038 = vshrl.u32 %v2037, 7
    %v2039 = vsub.s32 3, %v2038
    %v2040 = vrot.slane %v1428, %v2039
    %v2041 = vlaneseq
    %v2042 = vshrl.u32 %v2041, 7
    %v2043 = vsub.s32 3, %v2042
    %v2044 = vrot.slane %v1429, %v2043
    %v2045 = vlaneseq
    %v2046 = vshrl.u32 %v2045, 7
    %v2047 = vsub.s32 3, %v2046
    %v2048 = vrot.slane %v1430, %v2047
    %v2049 = vmul.f32 %v2031, %v2036
    %v2050 = vmul.f32 %v2031, %v2040
    %v2051 = vmul.f32 %v2031, %v2044
    %v2052 = vmul.f32 %v2031, %v2048
    %v2053 = vadd.f32 %v2025, %v2049
    %v2054 = vadd.f32 %v2026, %v2050
    %v2055 = vadd.f32 %v2027, %v2051
    %v2056 = vadd.f32 %v2028, %v2052
    %2057 = vrot.lane.b32.xlu0 %v1427, 127
    %v2058 = vpop.permute.xlu0 %2057
    %2059 = vrot.lane.b32.xlu0 %v1428, 127
    %v2060 = vpop.permute.xlu0 %2059
    %2061 = vrot.lane.b32.xlu0 %v1429, 127
    %v2062 = vpop.permute.xlu0 %2061
    %2063 = vrot.lane.b32.xlu0 %v1430, 127
    %v2064 = vpop.permute.xlu0 %2063
    %v2065 = vsel %vm868, %v2062, %v2064
    %v2066 = vsel %vm868, %v2060, %v2062
    %v2067 = vsel %vm868, %v2058, %v2060
    %v2068 = vsel %vm868, %v2064, %v2058
    %v2069 = vsel %vm877, %v2067, 0.0
    %v2070 = vsel %vm878, %v2066, 0.0
    %v2071 = vsel %vm879, %v2065, 0.0
    %v2072 = vsel %vm880, %v2068, 0.0
    %2073 = vset.pattern.permute.xlu0 20
    %2074 = vperm.xlu0 %2073, %v1431
    %v2075 = vpop.permute.xlu0 %2074
    %v2077 = vlaneseq
    %v2078 = vshrl.u32 %v2077, 7
    %v2079 = vsub.s32 0, %v2078
    %v2080 = vrot.slane %v2069, %v2079
    %v2081 = vlaneseq
    %v2082 = vshrl.u32 %v2081, 7
    %v2083 = vsub.s32 0, %v2082
    %v2084 = vrot.slane %v2070, %v2083
    %v2085 = vlaneseq
    %v2086 = vshrl.u32 %v2085, 7
    %v2087 = vsub.s32 0, %v2086
    %v2088 = vrot.slane %v2071, %v2087
    %v2089 = vlaneseq
    %v2090 = vshrl.u32 %v2089, 7
    %v2091 = vsub.s32 0, %v2090
    %v2092 = vrot.slane %v2072, %v2091
    %v2093 = vmul.f32 %v2075, %v2080
    %v2094 = vmul.f32 %v2075, %v2084
    %v2095 = vmul.f32 %v2075, %v2088
    %v2096 = vmul.f32 %v2075, %v2092
    %v2097 = vadd.f32 %v2053, %v2093
    %v2098 = vadd.f32 %v2054, %v2094
    %v2099 = vadd.f32 %v2055, %v2095
    %v2100 = vadd.f32 %v2056, %v2096
    %2101 = vset.pattern.permute.xlu0 21
    %2102 = vperm.xlu0 %2101, %v1431
    %v2103 = vpop.permute.xlu0 %2102
    %v2105 = vlaneseq
    %v2106 = vshrl.u32 %v2105, 7
    %v2107 = vsub.s32 1, %v2106
    %v2108 = vrot.slane %v2069, %v2107
    %v2109 = vlaneseq
    %v2110 = vshrl.u32 %v2109, 7
    %v2111 = vsub.s32 1, %v2110
    %v2112 = vrot.slane %v2070, %v2111
    %v2113 = vlaneseq
    %v2114 = vshrl.u32 %v2113, 7
    %v2115 = vsub.s32 1, %v2114
    %v2116 = vrot.slane %v2071, %v2115
    %v2117 = vlaneseq
    %v2118 = vshrl.u32 %v2117, 7
    %v2119 = vsub.s32 1, %v2118
    %v2120 = vrot.slane %v2072, %v2119
    %v2121 = vmul.f32 %v2103, %v2108
    %v2122 = vmul.f32 %v2103, %v2112
    %v2123 = vmul.f32 %v2103, %v2116
    %v2124 = vmul.f32 %v2103, %v2120
    %v2125 = vadd.f32 %v2097, %v2121
    %v2126 = vadd.f32 %v2098, %v2122
    %v2127 = vadd.f32 %v2099, %v2123
    %v2128 = vadd.f32 %v2100, %v2124
    %2129 = vset.pattern.permute.xlu0 22
    %2130 = vperm.xlu0 %2129, %v1431
    %v2131 = vpop.permute.xlu0 %2130
    %v2133 = vlaneseq
    %v2134 = vshrl.u32 %v2133, 7
    %v2135 = vsub.s32 2, %v2134
    %v2136 = vrot.slane %v2069, %v2135
    %v2137 = vlaneseq
    %v2138 = vshrl.u32 %v2137, 7
    %v2139 = vsub.s32 2, %v2138
    %v2140 = vrot.slane %v2070, %v2139
    %v2141 = vlaneseq
    %v2142 = vshrl.u32 %v2141, 7
    %v2143 = vsub.s32 2, %v2142
    %v2144 = vrot.slane %v2071, %v2143
    %v2145 = vlaneseq
    %v2146 = vshrl.u32 %v2145, 7
    %v2147 = vsub.s32 2, %v2146
    %v2148 = vrot.slane %v2072, %v2147
    %v2149 = vmul.f32 %v2131, %v2136
    %v2150 = vmul.f32 %v2131, %v2140
    %v2151 = vmul.f32 %v2131, %v2144
    %v2152 = vmul.f32 %v2131, %v2148
    %v2153 = vadd.f32 %v2125, %v2149
    %v2154 = vadd.f32 %v2126, %v2150
    %v2155 = vadd.f32 %v2127, %v2151
    %v2156 = vadd.f32 %v2128, %v2152
    %2157 = vset.pattern.permute.xlu0 23
    %2158 = vperm.xlu0 %2157, %v1431
    %v2159 = vpop.permute.xlu0 %2158
    %v2161 = vlaneseq
    %v2162 = vshrl.u32 %v2161, 7
    %v2163 = vsub.s32 3, %v2162
    %v2164 = vrot.slane %v2069, %v2163
    %v2165 = vlaneseq
    %v2166 = vshrl.u32 %v2165, 7
    %v2167 = vsub.s32 3, %v2166
    %v2168 = vrot.slane %v2070, %v2167
    %v2169 = vlaneseq
    %v2170 = vshrl.u32 %v2169, 7
    %v2171 = vsub.s32 3, %v2170
    %v2172 = vrot.slane %v2071, %v2171
    %v2173 = vlaneseq
    %v2174 = vshrl.u32 %v2173, 7
    %v2175 = vsub.s32 3, %v2174
    %v2176 = vrot.slane %v2072, %v2175
    %v2177 = vmul.f32 %v2159, %v2164
    %v2178 = vmul.f32 %v2159, %v2168
    %v2179 = vmul.f32 %v2159, %v2172
    %v2180 = vmul.f32 %v2159, %v2176
    %v2181 = vadd.f32 %v2153, %v2177
    %v2182 = vadd.f32 %v2154, %v2178
    %v2183 = vadd.f32 %v2155, %v2179
    %v2184 = vadd.f32 %v2156, %v2180
    %2185 = vrot.lane.b32.xlu0 %v1427, 113
    %v2186 = vpop.permute.xlu0 %2185
    %2187 = vrot.lane.b32.xlu0 %v1428, 113
    %v2188 = vpop.permute.xlu0 %2187
    %2189 = vrot.lane.b32.xlu0 %v1429, 113
    %v2190 = vpop.permute.xlu0 %2189
    %2191 = vrot.lane.b32.xlu0 %v1430, 113
    %v2192 = vpop.permute.xlu0 %2191
    %v2193 = vsel %vm1005, %v2190, %v2192
    %v2194 = vsel %vm1005, %v2188, %v2190
    %v2195 = vsel %vm1005, %v2186, %v2188
    %v2196 = vsel %vm1005, %v2192, %v2186
    %v2197 = vsel %vm1014, %v2195, 0.0
    %v2198 = vsel %vm1015, %v2194, 0.0
    %v2199 = vsel %vm1016, %v2193, 0.0
    %v2200 = vsel %vm1017, %v2196, 0.0
    %2201 = vset.pattern.permute.xlu0 24
    %2202 = vperm.xlu0 %2201, %v1431
    %v2203 = vpop.permute.xlu0 %2202
    %v2205 = vlaneseq
    %v2206 = vshrl.u32 %v2205, 7
    %v2207 = vsub.s32 0, %v2206
    %v2208 = vrot.slane %v2197, %v2207
    %v2209 = vlaneseq
    %v2210 = vshrl.u32 %v2209, 7
    %v2211 = vsub.s32 0, %v2210
    %v2212 = vrot.slane %v2198, %v2211
    %v2213 = vlaneseq
    %v2214 = vshrl.u32 %v2213, 7
    %v2215 = vsub.s32 0, %v2214
    %v2216 = vrot.slane %v2199, %v2215
    %v2217 = vlaneseq
    %v2218 = vshrl.u32 %v2217, 7
    %v2219 = vsub.s32 0, %v2218
    %v2220 = vrot.slane %v2200, %v2219
    %v2221 = vmul.f32 %v2203, %v2208
    %v2222 = vmul.f32 %v2203, %v2212
    %v2223 = vmul.f32 %v2203, %v2216
    %v2224 = vmul.f32 %v2203, %v2220
    %v2225 = vadd.f32 %v2181, %v2221
    %v2226 = vadd.f32 %v2182, %v2222
    %v2227 = vadd.f32 %v2183, %v2223
    %v2228 = vadd.f32 %v2184, %v2224
    %2229 = vset.pattern.permute.xlu0 25
    %2230 = vperm.xlu0 %2229, %v1431
    %v2231 = vpop.permute.xlu0 %2230
    %v2233 = vlaneseq
    %v2234 = vshrl.u32 %v2233, 7
    %v2235 = vsub.s32 1, %v2234
    %v2236 = vrot.slane %v2197, %v2235
    %v2237 = vlaneseq
    %v2238 = vshrl.u32 %v2237, 7
    %v2239 = vsub.s32 1, %v2238
    %v2240 = vrot.slane %v2198, %v2239
    %v2241 = vlaneseq
    %v2242 = vshrl.u32 %v2241, 7
    %v2243 = vsub.s32 1, %v2242
    %v2244 = vrot.slane %v2199, %v2243
    %v2245 = vlaneseq
    %v2246 = vshrl.u32 %v2245, 7
    %v2247 = vsub.s32 1, %v2246
    %v2248 = vrot.slane %v2200, %v2247
    %v2249 = vmul.f32 %v2231, %v2236
    %v2250 = vmul.f32 %v2231, %v2240
    %v2251 = vmul.f32 %v2231, %v2244
    %v2252 = vmul.f32 %v2231, %v2248
    %v2253 = vadd.f32 %v2225, %v2249
    %v2254 = vadd.f32 %v2226, %v2250
    %v2255 = vadd.f32 %v2227, %v2251
    %v2256 = vadd.f32 %v2228, %v2252
    %2257 = vset.pattern.permute.xlu0 26
    %2258 = vperm.xlu0 %2257, %v1431
    %v2259 = vpop.permute.xlu0 %2258
    %v2261 = vlaneseq
    %v2262 = vshrl.u32 %v2261, 7
    %v2263 = vsub.s32 2, %v2262
    %v2264 = vrot.slane %v2197, %v2263
    %v2265 = vlaneseq
    %v2266 = vshrl.u32 %v2265, 7
    %v2267 = vsub.s32 2, %v2266
    %v2268 = vrot.slane %v2198, %v2267
    %v2269 = vlaneseq
    %v2270 = vshrl.u32 %v2269, 7
    %v2271 = vsub.s32 2, %v2270
    %v2272 = vrot.slane %v2199, %v2271
    %v2273 = vlaneseq
    %v2274 = vshrl.u32 %v2273, 7
    %v2275 = vsub.s32 2, %v2274
    %v2276 = vrot.slane %v2200, %v2275
    %v2277 = vmul.f32 %v2259, %v2264
    %v2278 = vmul.f32 %v2259, %v2268
    %v2279 = vmul.f32 %v2259, %v2272
    %v2280 = vmul.f32 %v2259, %v2276
    %v2281 = vadd.f32 %v2253, %v2277
    %v2282 = vadd.f32 %v2254, %v2278
    %v2283 = vadd.f32 %v2255, %v2279
    %v2284 = vadd.f32 %v2256, %v2280
    %2285 = vset.pattern.permute.xlu0 27
    %2286 = vperm.xlu0 %2285, %v1431
    %v2287 = vpop.permute.xlu0 %2286
    %v2289 = vlaneseq
    %v2290 = vshrl.u32 %v2289, 7
    %v2291 = vsub.s32 3, %v2290
    %v2292 = vrot.slane %v2197, %v2291
    %v2293 = vlaneseq
    %v2294 = vshrl.u32 %v2293, 7
    %v2295 = vsub.s32 3, %v2294
    %v2296 = vrot.slane %v2198, %v2295
    %v2297 = vlaneseq
    %v2298 = vshrl.u32 %v2297, 7
    %v2299 = vsub.s32 3, %v2298
    %v2300 = vrot.slane %v2199, %v2299
    %v2301 = vlaneseq
    %v2302 = vshrl.u32 %v2301, 7
    %v2303 = vsub.s32 3, %v2302
    %v2304 = vrot.slane %v2200, %v2303
    %v2305 = vmul.f32 %v2287, %v2292
    %v2306 = vmul.f32 %v2287, %v2296
    %v2307 = vmul.f32 %v2287, %v2300
    %v2308 = vmul.f32 %v2287, %v2304
    %v2309 = vadd.f32 %v2281, %v2305
    %v2310 = vadd.f32 %v2282, %v2306
    %v2311 = vadd.f32 %v2283, %v2307
    %v2312 = vadd.f32 %v2284, %v2308
    %2313 = vrot.lane.b32.xlu0 %v1427, 112
    %v2314 = vpop.permute.xlu0 %2313
    %2315 = vrot.lane.b32.xlu0 %v1428, 112
    %v2316 = vpop.permute.xlu0 %2315
    %2317 = vrot.lane.b32.xlu0 %v1429, 112
    %v2318 = vpop.permute.xlu0 %2317
    %2319 = vrot.lane.b32.xlu0 %v1430, 112
    %v2320 = vpop.permute.xlu0 %2319
    %v2321 = vsel %vm1142, %v2318, %v2320
    %v2322 = vsel %vm1142, %v2316, %v2318
    %v2323 = vsel %vm1142, %v2314, %v2316
    %v2324 = vsel %vm1142, %v2320, %v2314
    %v2325 = vsel %vm1151, %v2323, 0.0
    %v2326 = vsel %vm1152, %v2322, 0.0
    %v2327 = vsel %vm1153, %v2321, 0.0
    %v2328 = vsel %vm1154, %v2324, 0.0
    %2329 = vset.pattern.permute.xlu0 28
    %2330 = vperm.xlu0 %2329, %v1431
    %v2331 = vpop.permute.xlu0 %2330
    %v2333 = vlaneseq
    %v2334 = vshrl.u32 %v2333, 7
    %v2335 = vsub.s32 0, %v2334
    %v2336 = vrot.slane %v2325, %v2335
    %v2337 = vlaneseq
    %v2338 = vshrl.u32 %v2337, 7
    %v2339 = vsub.s32 0, %v2338
    %v2340 = vrot.slane %v2326, %v2339
    %v2341 = vlaneseq
    %v2342 = vshrl.u32 %v2341, 7
    %v2343 = vsub.s32 0, %v2342
    %v2344 = vrot.slane %v2327, %v2343
    %v2345 = vlaneseq
    %v2346 = vshrl.u32 %v2345, 7
    %v2347 = vsub.s32 0, %v2346
    %v2348 = vrot.slane %v2328, %v2347
    %v2349 = vmul.f32 %v2331, %v2336
    %v2350 = vmul.f32 %v2331, %v2340
    %v2351 = vmul.f32 %v2331, %v2344
    %v2352 = vmul.f32 %v2331, %v2348
    %v2353 = vadd.f32 %v2309, %v2349
    %v2354 = vadd.f32 %v2310, %v2350
    %v2355 = vadd.f32 %v2311, %v2351
    %v2356 = vadd.f32 %v2312, %v2352
    %2357 = vset.pattern.permute.xlu0 29
    %2358 = vperm.xlu0 %2357, %v1431
    %v2359 = vpop.permute.xlu0 %2358
    %v2361 = vlaneseq
    %v2362 = vshrl.u32 %v2361, 7
    %v2363 = vsub.s32 1, %v2362
    %v2364 = vrot.slane %v2325, %v2363
    %v2365 = vlaneseq
    %v2366 = vshrl.u32 %v2365, 7
    %v2367 = vsub.s32 1, %v2366
    %v2368 = vrot.slane %v2326, %v2367
    %v2369 = vlaneseq
    %v2370 = vshrl.u32 %v2369, 7
    %v2371 = vsub.s32 1, %v2370
    %v2372 = vrot.slane %v2327, %v2371
    %v2373 = vlaneseq
    %v2374 = vshrl.u32 %v2373, 7
    %v2375 = vsub.s32 1, %v2374
    %v2376 = vrot.slane %v2328, %v2375
    %v2377 = vmul.f32 %v2359, %v2364
    %v2378 = vmul.f32 %v2359, %v2368
    %v2379 = vmul.f32 %v2359, %v2372
    %v2380 = vmul.f32 %v2359, %v2376
    %v2381 = vadd.f32 %v2353, %v2377
    %v2382 = vadd.f32 %v2354, %v2378
    %v2383 = vadd.f32 %v2355, %v2379
    %v2384 = vadd.f32 %v2356, %v2380
    %2385 = vset.pattern.permute.xlu0 30
    %2386 = vperm.xlu0 %2385, %v1431
    %v2387 = vpop.permute.xlu0 %2386
    %v2389 = vlaneseq
    %v2390 = vshrl.u32 %v2389, 7
    %v2391 = vsub.s32 2, %v2390
    %v2392 = vrot.slane %v2325, %v2391
    %v2393 = vlaneseq
    %v2394 = vshrl.u32 %v2393, 7
    %v2395 = vsub.s32 2, %v2394
    %v2396 = vrot.slane %v2326, %v2395
    %v2397 = vlaneseq
    %v2398 = vshrl.u32 %v2397, 7
    %v2399 = vsub.s32 2, %v2398
    %v2400 = vrot.slane %v2327, %v2399
    %v2401 = vlaneseq
    %v2402 = vshrl.u32 %v2401, 7
    %v2403 = vsub.s32 2, %v2402
    %v2404 = vrot.slane %v2328, %v2403
    %v2405 = vmul.f32 %v2387, %v2392
    %v2406 = vmul.f32 %v2387, %v2396
    %v2407 = vmul.f32 %v2387, %v2400
    %v2408 = vmul.f32 %v2387, %v2404
    %v2409 = vadd.f32 %v2381, %v2405
    %v2410 = vadd.f32 %v2382, %v2406
    %v2411 = vadd.f32 %v2383, %v2407
    %v2412 = vadd.f32 %v2384, %v2408
    %2413 = vset.pattern.permute.xlu0 31
    %2414 = vperm.xlu0 %2413, %v1431
    %v2415 = vpop.permute.xlu0 %2414
    %v2417 = vlaneseq
    %v2418 = vshrl.u32 %v2417, 7
    %v2419 = vsub.s32 3, %v2418
    %v2420 = vrot.slane %v2325, %v2419
    %v2421 = vlaneseq
    %v2422 = vshrl.u32 %v2421, 7
    %v2423 = vsub.s32 3, %v2422
    %v2424 = vrot.slane %v2326, %v2423
    %v2425 = vlaneseq
    %v2426 = vshrl.u32 %v2425, 7
    %v2427 = vsub.s32 3, %v2426
    %v2428 = vrot.slane %v2327, %v2427
    %v2429 = vlaneseq
    %v2430 = vshrl.u32 %v2429, 7
    %v2431 = vsub.s32 3, %v2430
    %v2432 = vrot.slane %v2328, %v2431
    %v2433 = vmul.f32 %v2415, %v2420
    %v2434 = vmul.f32 %v2415, %v2424
    %v2435 = vmul.f32 %v2415, %v2428
    %v2436 = vmul.f32 %v2415, %v2432
    %v2437 = vadd.f32 %v2409, %v2433
    %v2438 = vadd.f32 %v2410, %v2434
    %v2439 = vadd.f32 %v2411, %v2435
    %v2440 = vadd.f32 %v2412, %v2436
    %2441 = vrot.lane.b32.xlu0 %v1427, 111
    %v2442 = vpop.permute.xlu0 %2441
    %2443 = vrot.lane.b32.xlu0 %v1428, 111
    %v2444 = vpop.permute.xlu0 %2443
    %2445 = vrot.lane.b32.xlu0 %v1429, 111
    %v2446 = vpop.permute.xlu0 %2445
    %2447 = vrot.lane.b32.xlu0 %v1430, 111
    %v2448 = vpop.permute.xlu0 %2447
    %v2449 = vsel %vm1279, %v2446, %v2448
    %v2450 = vsel %vm1279, %v2444, %v2446
    %v2451 = vsel %vm1279, %v2442, %v2444
    %v2452 = vsel %vm1279, %v2448, %v2442
    %v2453 = vsel %vm1288, %v2451, 0.0
    %v2454 = vsel %vm1289, %v2450, 0.0
    %v2455 = vsel %vm1290, %v2449, 0.0
    %v2456 = vsel %vm1291, %v2452, 0.0
    %2457 = vset.pattern.permute.xlu0 32
    %2458 = vperm.xlu0 %2457, %v1431
    %v2459 = vpop.permute.xlu0 %2458
    %v2461 = vlaneseq
    %v2462 = vshrl.u32 %v2461, 7
    %v2463 = vsub.s32 0, %v2462
    %v2464 = vrot.slane %v2453, %v2463
    %v2465 = vlaneseq
    %v2466 = vshrl.u32 %v2465, 7
    %v2467 = vsub.s32 0, %v2466
    %v2468 = vrot.slane %v2454, %v2467
    %v2469 = vlaneseq
    %v2470 = vshrl.u32 %v2469, 7
    %v2471 = vsub.s32 0, %v2470
    %v2472 = vrot.slane %v2455, %v2471
    %v2473 = vlaneseq
    %v2474 = vshrl.u32 %v2473, 7
    %v2475 = vsub.s32 0, %v2474
    %v2476 = vrot.slane %v2456, %v2475
    %v2477 = vmul.f32 %v2459, %v2464
    %v2478 = vmul.f32 %v2459, %v2468
    %v2479 = vmul.f32 %v2459, %v2472
    %v2480 = vmul.f32 %v2459, %v2476
    %v2481 = vadd.f32 %v2437, %v2477
    %v2482 = vadd.f32 %v2438, %v2478
    %v2483 = vadd.f32 %v2439, %v2479
    %v2484 = vadd.f32 %v2440, %v2480
    %2485 = vset.pattern.permute.xlu0 33
    %2486 = vperm.xlu0 %2485, %v1431
    %v2487 = vpop.permute.xlu0 %2486
    %v2489 = vlaneseq
    %v2490 = vshrl.u32 %v2489, 7
    %v2491 = vsub.s32 1, %v2490
    %v2492 = vrot.slane %v2453, %v2491
    %v2493 = vlaneseq
    %v2494 = vshrl.u32 %v2493, 7
    %v2495 = vsub.s32 1, %v2494
    %v2496 = vrot.slane %v2454, %v2495
    %v2497 = vlaneseq
    %v2498 = vshrl.u32 %v2497, 7
    %v2499 = vsub.s32 1, %v2498
    %v2500 = vrot.slane %v2455, %v2499
    %v2501 = vlaneseq
    %v2502 = vshrl.u32 %v2501, 7
    %v2503 = vsub.s32 1, %v2502
    %v2504 = vrot.slane %v2456, %v2503
    %v2505 = vmul.f32 %v2487, %v2492
    %v2506 = vmul.f32 %v2487, %v2496
    %v2507 = vmul.f32 %v2487, %v2500
    %v2508 = vmul.f32 %v2487, %v2504
    %v2509 = vadd.f32 %v2481, %v2505
    %v2510 = vadd.f32 %v2482, %v2506
    %v2511 = vadd.f32 %v2483, %v2507
    %v2512 = vadd.f32 %v2484, %v2508
    %2513 = vset.pattern.permute.xlu0 34
    %2514 = vperm.xlu0 %2513, %v1431
    %v2515 = vpop.permute.xlu0 %2514
    %v2517 = vlaneseq
    %v2518 = vshrl.u32 %v2517, 7
    %v2519 = vsub.s32 2, %v2518
    %v2520 = vrot.slane %v2453, %v2519
    %v2521 = vlaneseq
    %v2522 = vshrl.u32 %v2521, 7
    %v2523 = vsub.s32 2, %v2522
    %v2524 = vrot.slane %v2454, %v2523
    %v2525 = vlaneseq
    %v2526 = vshrl.u32 %v2525, 7
    %v2527 = vsub.s32 2, %v2526
    %v2528 = vrot.slane %v2455, %v2527
    %v2529 = vlaneseq
    %v2530 = vshrl.u32 %v2529, 7
    %v2531 = vsub.s32 2, %v2530
    %v2532 = vrot.slane %v2456, %v2531
    %v2533 = vmul.f32 %v2515, %v2520
    %v2534 = vmul.f32 %v2515, %v2524
    %v2535 = vmul.f32 %v2515, %v2528
    %v2536 = vmul.f32 %v2515, %v2532
    %v2537 = vadd.f32 %v2509, %v2533
    %v2538 = vadd.f32 %v2510, %v2534
    %v2539 = vadd.f32 %v2511, %v2535
    %v2540 = vadd.f32 %v2512, %v2536
    %2541 = vset.pattern.permute.xlu0 35
    %2542 = vperm.xlu0 %2541, %v1431
    %v2543 = vpop.permute.xlu0 %2542
    %v2545 = vlaneseq
    %v2546 = vshrl.u32 %v2545, 7
    %v2547 = vsub.s32 3, %v2546
    %v2548 = vrot.slane %v2453, %v2547
    %v2549 = vlaneseq
    %v2550 = vshrl.u32 %v2549, 7
    %v2551 = vsub.s32 3, %v2550
    %v2552 = vrot.slane %v2454, %v2551
    %v2553 = vlaneseq
    %v2554 = vshrl.u32 %v2553, 7
    %v2555 = vsub.s32 3, %v2554
    %v2556 = vrot.slane %v2455, %v2555
    %v2557 = vlaneseq
    %v2558 = vshrl.u32 %v2557, 7
    %v2559 = vsub.s32 3, %v2558
    %v2560 = vrot.slane %v2456, %v2559
    %v2561 = vmul.f32 %v2543, %v2548
    %v2562 = vmul.f32 %v2543, %v2552
    %v2563 = vmul.f32 %v2543, %v2556
    %v2564 = vmul.f32 %v2543, %v2560
    %v2565 = vadd.f32 %v2537, %v2561
    %v2566 = vadd.f32 %v2538, %v2562
    %v2567 = vadd.f32 %v2539, %v2563
    %v2568 = vadd.f32 %v2540, %v2564
    %v2569 = vstv %s47
    %v2570 = vmul.f32 %v2565, %v2569
    %v2571 = vmul.f32 %v2566, %v2569
    %v2572 = vmul.f32 %v2567, %v2569
    %v2573 = vmul.f32 %v2568, %v2569
    %v2576 = vcombine.high %v48, %v48
    %v2577 = vcombine.high %v49, %v49
    %v2580 = vadd.f32 %v2570, %v48
    %v2581 = vadd.f32 %v2571, %v2576
    %v2582 = vadd.f32 %v2572, %v49
    %v2583 = vadd.f32 %v2573, %v2577
    %v2588 = vcombine.low %v2580, %v2581
    %v2589 = vcombine.low %v2582, %v2583
    %2592 = vst [vmem:[#allocation7] sm:$0xff] %v2588
    %2593 = vst [vmem:[#allocation7 + $0x8] sm:$0xff] %v2589
    // Predicated region
    $region26: #{tpu_custom_call.1} parent=1 // pred_check
      _
    $region27: #{tpu_custom_call.1} parent=1 // pred_check_branch
      %2595 = sbr.rel (0) target = $region29
    $region28: #{tpu_custom_call.1} parent=1 // pred_region
      %s2597 = ssub.s32 256, 256
      %2598 = vsyncadd [#allocation4], %s2597
      %s2600 = sshll.u32 [#allocation7], 4
      %s2601 = int_to_ptr.vmem [resolvable:$true] %s2600
      %2603 = dma.vmem_to_hbm [thread:$0]  %s2601, 256, %s4, [#allocation4]
    $region29: #{tpu_custom_call.1} parent=1 // pred_fallthru
      _
    // Predicated region
    $region30: #{tpu_custom_call.1} parent=1 // pred_check
      _
    $region31: #{tpu_custom_call.1} parent=1 // pred_check_branch
      %2605 = sbr.rel (0) target = $region33
    $region32: #{tpu_custom_call.1} parent=1 // pred_region
      %2606 = dma.done [#allocation4], 256
    $region33: #{tpu_custom_call.1} parent=1 // pred_fallthru
      _
    %2607 = vsyncpa [#allocation3], 1
    %2608 = vsyncpa [#allocation4], 1
    %2609 = vsyncpa [#allocation5], 1

</llo_original>
